<compile_context>
chip_gen: v7x
topology: tpu7x:2x2x1
jax: 0.10.0
libtpu: 0.0.40
codegen_flags: <defaults>
</compile_context>

<pallas_src>
import functools

import jax
import jax.numpy as jnp
from jax.experimental import pallas as pl
from jax.experimental.pallas import tpu as pltpu


def _double_conv_kernel(x_ref, w1_ref, s1_ref, b1_ref, w2_ref, s2_ref, b2_ref,
                        o_ref, xp_ref, mid_ref):
    """Fused DoubleConv for one batch element.

    x_ref:   (1, H, W, Cin)      NHWC input tile
    w1_ref:  (9*Cin, Cout)       conv1 weights, rows ordered (dy, dx, cin)
    s1_ref:  (1, Cout)           folded BN1 scale (f32)
    b1_ref:  (1, Cout)           folded BN1 bias  (f32)
    w2_ref:  (9*Cout, Cout)      conv2 weights, rows ordered (dy, dx, c)
    s2_ref:  (1, Cout)           folded BN2 scale (f32)
    b2_ref:  (1, Cout)           folded BN2 bias  (f32)
    o_ref:   (1, Cout, H*W)      output tile, channel-major (== NCHW when reshaped)
    xp_ref:  (H+2, W+2, Cin)     VMEM scratch: zero-padded input
    mid_ref: (H+2, W+2, Cout)    VMEM scratch: zero-padded intermediate activation
    """
    _, H, W, Cin = x_ref.shape
    Cout = o_ref.shape[1]

    # ---- stage 1 input: halo handled in-kernel (no wrapper-side jnp.pad HBM pass).
    # Zeroing must be unconditional: with a "parallel" grid a core may never run n==0.
    xp_ref[...] = jnp.zeros_like(xp_ref)
    xp_ref[1:H + 1, 1:W + 1, :] = x_ref[0]

    def conv3x3_bn_relu(src_ref, c, w2d_ref, scale_ref, bias_ref):
        # im2col-lite: 9 shifted views concatenated along the contraction axis ->
        # ONE (H*W, 9*c) x (9*c, Cout) MXU contraction (f32 accumulation).
        parts = []
        for dy in range(3):
            for dx in range(3):
                parts.append(src_ref[dy:dy + H, dx:dx + W, :].reshape(H * W, c))
        patches = jnp.concatenate(parts, axis=-1)                    # (H*W, 9*c)
        acc = jnp.dot(patches, w2d_ref[...],
                      preferred_element_type=jnp.float32)            # (H*W, Cout) f32
        y = acc * scale_ref[...] + bias_ref[...]                     # folded BatchNorm (eval)
        return jnp.maximum(y, 0.0)                                   # ReLU

    y1 = conv3x3_bn_relu(xp_ref, Cin, w1_ref, s1_ref, b1_ref)        # (H*W, Cout) f32

    # ---- stage 2: intermediate stays in VMEM (no HBM round trip), re-padded for conv2.
    mid_ref[...] = jnp.zeros_like(mid_ref)
    mid_ref[1:H + 1, 1:W + 1, :] = y1.reshape(H, W, Cout).astype(mid_ref.dtype)

    y2 = conv3x3_bn_relu(mid_ref, Cout, w2_ref, s2_ref, b2_ref)      # (H*W, Cout) f32

    # Dropout (eval mode) == identity.
    # Lane-dense store: channel-major (Cout, H*W) -> last (lane) dim is H*W, a
    # multiple of 128, so the output is written with full (unmasked) vector stores
    # and is already laid out as NCHW.
    o_ref[0] = y2.T.astype(o_ref.dtype)


def double_conv_fused(x_nhwc, w1_2d, s1, b1, w2_2d, s2, b2):
    """x_nhwc: (N,H,W,Cin); w1_2d: (9*Cin,Cout); w2_2d: (9*Cout,Cout); s*/b*: (1,Cout) f32.

    Returns (N, Cout, H, W)  (NCHW, like the PyTorch module).
    """
    N, H, W, Cin = x_nhwc.shape
    Cout = w2_2d.shape[-1]
    itemsize = jnp.dtype(x_nhwc.dtype).itemsize

    cost = pl.CostEstimate(
        flops=2 * N * H * W * 9 * (Cin * Cout + Cout * Cout),
        transcendentals=0,
        bytes_accessed=(N * H * W * Cin * itemsize           # input read
                        + N * Cout * H * W * itemsize        # output write
                        + (w1_2d.size + w2_2d.size) * jnp.dtype(w1_2d.dtype).itemsize
                        + 4 * Cout * 4),                     # BN scale/bias (f32)
    )

    out = pl.pallas_call(
        _double_conv_kernel,
        out_shape=jax.ShapeDtypeStruct((N, Cout, H * W), x_nhwc.dtype),
        grid=(N,),
        in_specs=[
            pl.BlockSpec((1, H, W, Cin), lambda n: (n, 0, 0, 0)),
            pl.BlockSpec((9 * Cin, Cout), lambda n: (0, 0)),
            pl.BlockSpec((1, Cout), lambda n: (0, 0)),
            pl.BlockSpec((1, Cout), lambda n: (0, 0)),
            pl.BlockSpec((9 * Cout, Cout), lambda n: (0, 0)),
            pl.BlockSpec((1, Cout), lambda n: (0, 0)),
            pl.BlockSpec((1, Cout), lambda n: (0, 0)),
        ],
        out_specs=pl.BlockSpec((1, Cout, H * W), lambda n: (n, 0, 0)),
        scratch_shapes=[
            pltpu.VMEM((H + 2, W + 2, Cin), x_nhwc.dtype),    # padded input
            pltpu.VMEM((H + 2, W + 2, Cout), x_nhwc.dtype),   # padded intermediate
        ],
        compiler_params=pltpu.CompilerParams(dimension_semantics=("parallel",)),
        cost_estimate=cost,
    )(x_nhwc, w1_2d, s1, b1, w2_2d, s2, b2)

    return out.reshape(N, Cout, H, W)   # already channel-major -> NCHW


def _fold_bn(gamma, beta, running_mean, running_var, eps=1e-5):
    scale = gamma / jnp.sqrt(running_var + eps)
    bias = beta - running_mean * scale
    return scale, bias


def init_double_conv_params(key, in_ch, out_ch):
    """Deterministic synthetic parameters matching nn.Conv2d/nn.BatchNorm2d shapes."""
    k = jax.random.split(key, 8)
    fan1 = in_ch * 9
    fan2 = out_ch * 9
    return {
        # conv weights in (kh, kw, Cin, Cout)  (HWIO)
        "w1": jax.random.normal(k[0], (3, 3, in_ch, out_ch), jnp.float32) / jnp.sqrt(fan1),
        "w2": jax.random.normal(k[1], (3, 3, out_ch, out_ch), jnp.float32) / jnp.sqrt(fan2),
        # BatchNorm2d #1
        "gamma1": 1.0 + 0.1 * jax.random.normal(k[2], (out_ch,), jnp.float32),
        "beta1": 0.1 * jax.random.normal(k[3], (out_ch,), jnp.float32),
        "mean1": 0.05 * jax.random.normal(k[4], (out_ch,), jnp.float32),
        "var1": 1.0 + 0.1 * jax.random.uniform(k[5], (out_ch,), jnp.float32),
        # BatchNorm2d #2
        "gamma2": 1.0 + 0.1 * jax.random.normal(k[6], (out_ch,), jnp.float32),
        "beta2": 0.1 * jax.random.normal(k[7], (out_ch,), jnp.float32),
        "mean2": jnp.zeros((out_ch,), jnp.float32),
        "var2": jnp.ones((out_ch,), jnp.float32),
    }


@functools.partial(jax.jit, static_argnames=("compute_dtype",))
def double_conv_forward(x_nchw, params, compute_dtype=jnp.float32):
    """Forward pass of DoubleConv. Input/output are NCHW like the PyTorch module.

    compute_dtype=jnp.bfloat16 enables the bandwidth-friendly path (v6e/v7x):
    bf16 activations/weights with f32 MXU accumulation and f32 BN scale/bias.
    """
    Cin, Cout = params["w1"].shape[2], params["w1"].shape[3]

    x = jnp.transpose(x_nchw, (0, 2, 3, 1)).astype(compute_dtype)    # NCHW -> NHWC

    s1, b1 = _fold_bn(params["gamma1"], params["beta1"], params["mean1"], params["var1"])
    s2, b2 = _fold_bn(params["gamma2"], params["beta2"], params["mean2"], params["var2"])

    # Flatten (dy, dx, cin) taps into the contraction axis (matches kernel patch order).
    w1_2d = params["w1"].reshape(9 * Cin, Cout).astype(compute_dtype)
    w2_2d = params["w2"].reshape(9 * Cout, Cout).astype(compute_dtype)

    out = double_conv_fused(
        x, w1_2d,
        s1.reshape(1, Cout).astype(jnp.float32), b1.reshape(1, Cout).astype(jnp.float32),
        w2_2d,
        s2.reshape(1, Cout).astype(jnp.float32), b2.reshape(1, Cout).astype(jnp.float32),
    )
    return out.astype(x_nchw.dtype)


def _reference_forward(x_nchw, params):
    """Pure-JAX reference (lax conv) for a correctness check."""
    x = jnp.transpose(x_nchw, (0, 2, 3, 1))
    dn = ("NHWC", "HWIO", "NHWC")

    def block(x, w, g, b, m, v):
        y = jax.lax.conv_general_dilated(x, w, (1, 1), "SAME", dimension_numbers=dn)
        s = g / jnp.sqrt(v + 1e-5)
        y = y * s + (b - m * s)
        return jnp.maximum(y, 0.0)

    y = block(x, params["w1"], params["gamma1"], params["beta1"], params["mean1"], params["var1"])
    y = block(y, params["w2"], params["gamma2"], params["beta2"], params["mean2"], params["var2"])
    return jnp.transpose(y, (0, 3, 1, 2))


if __name__ == "__main__":
    key = jax.random.PRNGKey(0)
    k_x, k_p = jax.random.split(key)

    N, C_IN, C_OUT, H, W = 2, 4, 8, 16, 16
    x = jax.random.normal(k_x, (N, C_IN, H, W), jnp.float32)     # NCHW, like PyTorch
    params = init_double_conv_params(k_p, C_IN, C_OUT)

    # f32 path (exact check against lax.conv reference).
    out = jax.block_until_ready(double_conv_forward(x, params))
    assert out.shape == (N, C_OUT, H, W), out.shape
    ref = jax.block_until_ready(_reference_forward(x, params))
    assert jnp.allclose(out, ref, atol=1e-3, rtol=1e-3), float(jnp.max(jnp.abs(out - ref)))

    # bf16 compute path (v6e/v7x bandwidth optimization); looser tolerance vs f32 reference.
    out_bf16 = jax.block_until_ready(
        double_conv_forward(x, params, compute_dtype=jnp.bfloat16))
    assert out_bf16.shape == (N, C_OUT, H, W), out_bf16.shape
    err_bf16 = float(jnp.max(jnp.abs(out_bf16.astype(jnp.float32) - ref)))
    assert err_bf16 < 5e-2 * (1.0 + float(jnp.max(jnp.abs(ref)))), err_bf16

    print("KERNEL_OK")
</pallas_src>

<mosaic_0001>
module attributes {stable_mosaic.version = 11 : i64} {
  func.func @_double_conv_kernel(%arg0: i32, %arg1: memref<1x16x16x4xf32, #tpu.memory_space<vmem>>, %arg2: memref<36x8xf32, #tpu.memory_space<vmem>>, %arg3: memref<1x8xf32, #tpu.memory_space<vmem>>, %arg4: memref<1x8xf32, #tpu.memory_space<vmem>>, %arg5: memref<72x8xf32, #tpu.memory_space<vmem>>, %arg6: memref<1x8xf32, #tpu.memory_space<vmem>>, %arg7: memref<1x8xf32, #tpu.memory_space<vmem>>, %arg8: memref<1x8x256xf32, #tpu.memory_space<vmem>>, %arg9: memref<18x18x4xf32, #tpu.memory_space<vmem>>, %arg10: memref<18x18x8xf32, #tpu.memory_space<vmem>>) attributes {dimension_semantics = [#tpu.dimension_semantics<parallel>], iteration_bounds = array<i64: 2>, scalar_prefetch = 0 : i64, scratch_operands = 2 : i64, tpu.core_type = #tpu.core_type<tc>, window_params = [{transform_indices = @transform_0, window_bounds = array<i64: 1, 16, 16, 4>}, {pipeline_mode = #tpu.pipeline_mode<synchronous>, transform_indices = @transform_1, window_bounds = array<i64: 36, 8>}, {pipeline_mode = #tpu.pipeline_mode<synchronous>, transform_indices = @transform_2, window_bounds = array<i64: 1, 8>}, {pipeline_mode = #tpu.pipeline_mode<synchronous>, transform_indices = @transform_3, window_bounds = array<i64: 1, 8>}, {pipeline_mode = #tpu.pipeline_mode<synchronous>, transform_indices = @transform_4, window_bounds = array<i64: 72, 8>}, {pipeline_mode = #tpu.pipeline_mode<synchronous>, transform_indices = @transform_5, window_bounds = array<i64: 1, 8>}, {pipeline_mode = #tpu.pipeline_mode<synchronous>, transform_indices = @transform_6, window_bounds = array<i64: 1, 8>}, {transform_indices = @transform_7, window_bounds = array<i64: 1, 8, 256>}]} {
    %cst = arith.constant 0.000000e+00 : f32
    %0 = vector.broadcast %cst : f32 to vector<18x18x4xf32>
    %c0 = arith.constant 0 : index
    %c0_0 = arith.constant 0 : index
    %c0_1 = arith.constant 0 : index
    %1 = vector.load %arg9[%c0, %c0_0, %c0_1] : memref<18x18x4xf32, #tpu.memory_space<vmem>>, vector<18x18x4xf32>
    tpu.vector_store %arg9[%c0, %c0_0, %c0_1], %0 {strides = array<i32>} : memref<18x18x4xf32, #tpu.memory_space<vmem>>, vector<18x18x4xf32>,
    %c0_2 = arith.constant 0 : index
    %c0_3 = arith.constant 0 : index
    %c0_4 = arith.constant 0 : index
    %c0_5 = arith.constant 0 : index
    %2 = vector.load %arg1[%c0_2, %c0_3, %c0_4, %c0_5] : memref<1x16x16x4xf32, #tpu.memory_space<vmem>>, vector<1x16x16x4xf32>
    %3 = vector.shape_cast %2 : vector<1x16x16x4xf32> to vector<16x16x4xf32>
    %c1 = arith.constant 1 : index
    %c1_6 = arith.constant 1 : index
    %c0_7 = arith.constant 0 : index
    %4 = vector.load %arg9[%c1, %c1_6, %c0_7] : memref<18x18x4xf32, #tpu.memory_space<vmem>>, vector<16x16x4xf32>
    tpu.vector_store %arg9[%c1, %c1_6, %c0_7], %3 {strides = array<i32>} : memref<18x18x4xf32, #tpu.memory_space<vmem>>, vector<16x16x4xf32>,
    %c0_8 = arith.constant 0 : index
    %c0_9 = arith.constant 0 : index
    %c0_10 = arith.constant 0 : index
    %5 = vector.load %arg9[%c0_8, %c0_9, %c0_10] : memref<18x18x4xf32, #tpu.memory_space<vmem>>, vector<16x16x4xf32>
    %6 = vector.shape_cast %5 : vector<16x16x4xf32> to vector<256x4xf32>
    %c0_11 = arith.constant 0 : index
    %c1_12 = arith.constant 1 : index
    %c0_13 = arith.constant 0 : index
    %7 = vector.load %arg9[%c0_11, %c1_12, %c0_13] : memref<18x18x4xf32, #tpu.memory_space<vmem>>, vector<16x16x4xf32>
    %8 = vector.shape_cast %7 : vector<16x16x4xf32> to vector<256x4xf32>
    %c0_14 = arith.constant 0 : index
    %c2 = arith.constant 2 : index
    %c0_15 = arith.constant 0 : index
    %9 = vector.load %arg9[%c0_14, %c2, %c0_15] : memref<18x18x4xf32, #tpu.memory_space<vmem>>, vector<16x16x4xf32>
    %10 = vector.shape_cast %9 : vector<16x16x4xf32> to vector<256x4xf32>
    %c1_16 = arith.constant 1 : index
    %c0_17 = arith.constant 0 : index
    %c0_18 = arith.constant 0 : index
    %11 = vector.load %arg9[%c1_16, %c0_17, %c0_18] : memref<18x18x4xf32, #tpu.memory_space<vmem>>, vector<16x16x4xf32>
    %12 = vector.shape_cast %11 : vector<16x16x4xf32> to vector<256x4xf32>
    %c1_19 = arith.constant 1 : index
    %c1_20 = arith.constant 1 : index
    %c0_21 = arith.constant 0 : index
    %13 = vector.load %arg9[%c1_19, %c1_20, %c0_21] : memref<18x18x4xf32, #tpu.memory_space<vmem>>, vector<16x16x4xf32>
    %14 = vector.shape_cast %13 : vector<16x16x4xf32> to vector<256x4xf32>
    %c1_22 = arith.constant 1 : index
    %c2_23 = arith.constant 2 : index
    %c0_24 = arith.constant 0 : index
    %15 = vector.load %arg9[%c1_22, %c2_23, %c0_24] : memref<18x18x4xf32, #tpu.memory_space<vmem>>, vector<16x16x4xf32>
    %16 = vector.shape_cast %15 : vector<16x16x4xf32> to vector<256x4xf32>
    %c2_25 = arith.constant 2 : index
    %c0_26 = arith.constant 0 : index
    %c0_27 = arith.constant 0 : index
    %17 = vector.load %arg9[%c2_25, %c0_26, %c0_27] : memref<18x18x4xf32, #tpu.memory_space<vmem>>, vector<16x16x4xf32>
    %18 = vector.shape_cast %17 : vector<16x16x4xf32> to vector<256x4xf32>
    %c2_28 = arith.constant 2 : index
    %c1_29 = arith.constant 1 : index
    %c0_30 = arith.constant 0 : index
    %19 = vector.load %arg9[%c2_28, %c1_29, %c0_30] : memref<18x18x4xf32, #tpu.memory_space<vmem>>, vector<16x16x4xf32>
    %20 = vector.shape_cast %19 : vector<16x16x4xf32> to vector<256x4xf32>
    %c2_31 = arith.constant 2 : index
    %c2_32 = arith.constant 2 : index
    %c0_33 = arith.constant 0 : index
    %21 = vector.load %arg9[%c2_31, %c2_32, %c0_33] : memref<18x18x4xf32, #tpu.memory_space<vmem>>, vector<16x16x4xf32>
    %22 = vector.shape_cast %21 : vector<16x16x4xf32> to vector<256x4xf32>
    %23 = tpu.concatenate %6, %8, %10, %12, %14, %16, %18, %20, %22 in 1 : vector<256x4xf32>, vector<256x4xf32>, vector<256x4xf32>, vector<256x4xf32>, vector<256x4xf32>, vector<256x4xf32>, vector<256x4xf32>, vector<256x4xf32>, vector<256x4xf32> -> vector<256x36xf32>
    %c0_34 = arith.constant 0 : index
    %c0_35 = arith.constant 0 : index
    %24 = vector.load %arg2[%c0_34, %c0_35] : memref<36x8xf32, #tpu.memory_space<vmem>>, vector<36x8xf32>
    %cst_36 = arith.constant dense<0.000000e+00> : vector<256x8xf32>
    %25 = tpu.matmul %23, %24, %cst_36 {dimension_numbers = #tpu.dot_dimension_numbers<[1], [0], [0], [1], [0, 0, 1, 1], [], []>} : vector<256x36xf32>, vector<36x8xf32>, vector<256x8xf32> -> vector<256x8xf32>
    %c0_37 = arith.constant 0 : index
    %c0_38 = arith.constant 0 : index
    %26 = vector.load %arg3[%c0_37, %c0_38] : memref<1x8xf32, #tpu.memory_space<vmem>>, vector<1x8xf32>
    %27 = vector.broadcast %26 : vector<1x8xf32> to vector<256x8xf32>
    %28 = arith.mulf %25, %27 : vector<256x8xf32>
    %c0_39 = arith.constant 0 : index
    %c0_40 = arith.constant 0 : index
    %29 = vector.load %arg4[%c0_39, %c0_40] : memref<1x8xf32, #tpu.memory_space<vmem>>, vector<1x8xf32>
    %30 = vector.broadcast %29 : vector<1x8xf32> to vector<256x8xf32>
    %31 = arith.addf %28, %30 : vector<256x8xf32>
    %cst_41 = arith.constant 0.000000e+00 : f32
    %32 = vector.broadcast %cst_41 : f32 to vector<256x8xf32>
    %33 = arith.maximumf %31, %32 : vector<256x8xf32>
    %cst_42 = arith.constant 0.000000e+00 : f32
    %34 = vector.broadcast %cst_42 : f32 to vector<18x18x8xf32>
    %c0_43 = arith.constant 0 : index
    %c0_44 = arith.constant 0 : index
    %c0_45 = arith.constant 0 : index
    %35 = vector.load %arg10[%c0_43, %c0_44, %c0_45] : memref<18x18x8xf32, #tpu.memory_space<vmem>>, vector<18x18x8xf32>
    tpu.vector_store %arg10[%c0_43, %c0_44, %c0_45], %34 {strides = array<i32>} : memref<18x18x8xf32, #tpu.memory_space<vmem>>, vector<18x18x8xf32>,
    %36 = vector.shape_cast %33 : vector<256x8xf32> to vector<16x16x8xf32>
    %c1_46 = arith.constant 1 : index
    %c1_47 = arith.constant 1 : index
    %c0_48 = arith.constant 0 : index
    %37 = vector.load %arg10[%c1_46, %c1_47, %c0_48] : memref<18x18x8xf32, #tpu.memory_space<vmem>>, vector<16x16x8xf32>
    tpu.vector_store %arg10[%c1_46, %c1_47, %c0_48], %36 {strides = array<i32>} : memref<18x18x8xf32, #tpu.memory_space<vmem>>, vector<16x16x8xf32>,
    %c0_49 = arith.constant 0 : index
    %c0_50 = arith.constant 0 : index
    %c0_51 = arith.constant 0 : index
    %38 = vector.load %arg10[%c0_49, %c0_50, %c0_51] : memref<18x18x8xf32, #tpu.memory_space<vmem>>, vector<16x16x8xf32>
    %39 = vector.shape_cast %38 : vector<16x16x8xf32> to vector<256x8xf32>
    %c0_52 = arith.constant 0 : index
    %c1_53 = arith.constant 1 : index
    %c0_54 = arith.constant 0 : index
    %40 = vector.load %arg10[%c0_52, %c1_53, %c0_54] : memref<18x18x8xf32, #tpu.memory_space<vmem>>, vector<16x16x8xf32>
    %41 = vector.shape_cast %40 : vector<16x16x8xf32> to vector<256x8xf32>
    %c0_55 = arith.constant 0 : index
    %c2_56 = arith.constant 2 : index
    %c0_57 = arith.constant 0 : index
    %42 = vector.load %arg10[%c0_55, %c2_56, %c0_57] : memref<18x18x8xf32, #tpu.memory_space<vmem>>, vector<16x16x8xf32>
    %43 = vector.shape_cast %42 : vector<16x16x8xf32> to vector<256x8xf32>
    %c1_58 = arith.constant 1 : index
    %c0_59 = arith.constant 0 : index
    %c0_60 = arith.constant 0 : index
    %44 = vector.load %arg10[%c1_58, %c0_59, %c0_60] : memref<18x18x8xf32, #tpu.memory_space<vmem>>, vector<16x16x8xf32>
    %45 = vector.shape_cast %44 : vector<16x16x8xf32> to vector<256x8xf32>
    %c1_61 = arith.constant 1 : index
    %c1_62 = arith.constant 1 : index
    %c0_63 = arith.constant 0 : index
    %46 = vector.load %arg10[%c1_61, %c1_62, %c0_63] : memref<18x18x8xf32, #tpu.memory_space<vmem>>, vector<16x16x8xf32>
    %47 = vector.shape_cast %46 : vector<16x16x8xf32> to vector<256x8xf32>
    %c1_64 = arith.constant 1 : index
    %c2_65 = arith.constant 2 : index
    %c0_66 = arith.constant 0 : index
    %48 = vector.load %arg10[%c1_64, %c2_65, %c0_66] : memref<18x18x8xf32, #tpu.memory_space<vmem>>, vector<16x16x8xf32>
    %49 = vector.shape_cast %48 : vector<16x16x8xf32> to vector<256x8xf32>
    %c2_67 = arith.constant 2 : index
    %c0_68 = arith.constant 0 : index
    %c0_69 = arith.constant 0 : index
    %50 = vector.load %arg10[%c2_67, %c0_68, %c0_69] : memref<18x18x8xf32, #tpu.memory_space<vmem>>, vector<16x16x8xf32>
    %51 = vector.shape_cast %50 : vector<16x16x8xf32> to vector<256x8xf32>
    %c2_70 = arith.constant 2 : index
    %c1_71 = arith.constant 1 : index
    %c0_72 = arith.constant 0 : index
    %52 = vector.load %arg10[%c2_70, %c1_71, %c0_72] : memref<18x18x8xf32, #tpu.memory_space<vmem>>, vector<16x16x8xf32>
    %53 = vector.shape_cast %52 : vector<16x16x8xf32> to vector<256x8xf32>
    %c2_73 = arith.constant 2 : index
    %c2_74 = arith.constant 2 : index
    %c0_75 = arith.constant 0 : index
    %54 = vector.load %arg10[%c2_73, %c2_74, %c0_75] : memref<18x18x8xf32, #tpu.memory_space<vmem>>, vector<16x16x8xf32>
    %55 = vector.shape_cast %54 : vector<16x16x8xf32> to vector<256x8xf32>
    %56 = tpu.concatenate %39, %41, %43, %45, %47, %49, %51, %53, %55 in 1 : vector<256x8xf32>, vector<256x8xf32>, vector<256x8xf32>, vector<256x8xf32>, vector<256x8xf32>, vector<256x8xf32>, vector<256x8xf32>, vector<256x8xf32>, vector<256x8xf32> -> vector<256x72xf32>
    %c0_76 = arith.constant 0 : index
    %c0_77 = arith.constant 0 : index
    %57 = vector.load %arg5[%c0_76, %c0_77] : memref<72x8xf32, #tpu.memory_space<vmem>>, vector<72x8xf32>
    %cst_78 = arith.constant dense<0.000000e+00> : vector<256x8xf32>
    %58 = tpu.matmul %56, %57, %cst_78 {dimension_numbers = #tpu.dot_dimension_numbers<[1], [0], [0], [1], [0, 0, 1, 1], [], []>} : vector<256x72xf32>, vector<72x8xf32>, vector<256x8xf32> -> vector<256x8xf32>
    %c0_79 = arith.constant 0 : index
    %c0_80 = arith.constant 0 : index
    %59 = vector.load %arg6[%c0_79, %c0_80] : memref<1x8xf32, #tpu.memory_space<vmem>>, vector<1x8xf32>
    %60 = vector.broadcast %59 : vector<1x8xf32> to vector<256x8xf32>
    %61 = arith.mulf %58, %60 : vector<256x8xf32>
    %c0_81 = arith.constant 0 : index
    %c0_82 = arith.constant 0 : index
    %62 = vector.load %arg7[%c0_81, %c0_82] : memref<1x8xf32, #tpu.memory_space<vmem>>, vector<1x8xf32>
    %63 = vector.broadcast %62 : vector<1x8xf32> to vector<256x8xf32>
    %64 = arith.addf %61, %63 : vector<256x8xf32>
    %cst_83 = arith.constant 0.000000e+00 : f32
    %65 = vector.broadcast %cst_83 : f32 to vector<256x8xf32>
    %66 = arith.maximumf %64, %65 : vector<256x8xf32>
    %67 = tpu.transpose %66, [1, 0] : vector<256x8xf32> -> vector<8x256xf32>
    %c0_84 = arith.constant 0 : index
    %c0_85 = arith.constant 0 : index
    %c0_86 = arith.constant 0 : index
    %68 = vector.load %arg8[%c0_84, %c0_85, %c0_86] : memref<1x8x256xf32, #tpu.memory_space<vmem>>, vector<1x8x256xf32>
    %69 = vector.shape_cast %68 : vector<1x8x256xf32> to vector<8x256xf32>
    %70 = vector.shape_cast %67 : vector<8x256xf32> to vector<1x8x256xf32>
    tpu.vector_store %arg8[%c0_84, %c0_85, %c0_86], %70 {strides = array<i32>} : memref<1x8x256xf32, #tpu.memory_space<vmem>>, vector<1x8x256xf32>,
    return
  }
  func.func @transform_0(%arg0: i32) -> (i32, i32, i32, i32) {
    %c0_i32 = arith.constant 0 : i32
    %c0_i32_0 = arith.constant 0 : i32
    %c0_i32_1 = arith.constant 0 : i32
    %c0_i32_2 = arith.constant 0 : i32
    return %arg0, %c0_i32, %c0_i32_0, %c0_i32_1 : i32, i32, i32, i32
  }
  func.func @transform_1(%arg0: i32) -> (i32, i32) {
    %c0_i32 = arith.constant 0 : i32
    %c0_i32_0 = arith.constant 0 : i32
    %c0_i32_1 = arith.constant 0 : i32
    return %c0_i32, %c0_i32_0 : i32, i32
  }
  func.func @transform_2(%arg0: i32) -> (i32, i32) {
    %c0_i32 = arith.constant 0 : i32
    %c0_i32_0 = arith.constant 0 : i32
    %c0_i32_1 = arith.constant 0 : i32
    return %c0_i32, %c0_i32_0 : i32, i32
  }
  func.func @transform_3(%arg0: i32) -> (i32, i32) {
    %c0_i32 = arith.constant 0 : i32
    %c0_i32_0 = arith.constant 0 : i32
    %c0_i32_1 = arith.constant 0 : i32
    return %c0_i32, %c0_i32_0 : i32, i32
  }
  func.func @transform_4(%arg0: i32) -> (i32, i32) {
    %c0_i32 = arith.constant 0 : i32
    %c0_i32_0 = arith.constant 0 : i32
    %c0_i32_1 = arith.constant 0 : i32
    return %c0_i32, %c0_i32_0 : i32, i32
  }
  func.func @transform_5(%arg0: i32) -> (i32, i32) {
    %c0_i32 = arith.constant 0 : i32
    %c0_i32_0 = arith.constant 0 : i32
    %c0_i32_1 = arith.constant 0 : i32
    return %c0_i32, %c0_i32_0 : i32, i32
  }
  func.func @transform_6(%arg0: i32) -> (i32, i32) {
    %c0_i32 = arith.constant 0 : i32
    %c0_i32_0 = arith.constant 0 : i32
    %c0_i32_1 = arith.constant 0 : i32
    return %c0_i32, %c0_i32_0 : i32, i32
  }
  func.func @transform_7(%arg0: i32) -> (i32, i32, i32) {
    %c0_i32 = arith.constant 0 : i32
    %c0_i32_0 = arith.constant 0 : i32
    %c0_i32_1 = arith.constant 0 : i32
    return %arg0, %c0_i32, %c0_i32_0 : i32, i32, i32
  }
}

</mosaic_0001>

<llo_original>
// kernel: double_conv_forward.1
$region0: #{double_conv_forward.1}
  #allocation0 [shape = 'u32[]', space=smem, size = 0x4, offset = 0x4, fixed_abs, tag = 'smem constant byte address 0x4 - core index']
  #allocation1 [shape = 'u32[144,128]{1,0:T(1,128)}', space=vmem, size = 0x12000, scoped, tag = 'internal scratch']
  #allocation2 [shape = 'f32[18,18,4]{2,1,0:T(8,128)}', space=vmem, size = 0x36000, scoped, tag = 'scratch operand']
  #allocation3 [shape = 'f32[18,18,8]{2,1,0:T(8,128)}', space=vmem, size = 0x36000, scoped, tag = 'scratch operand']
  %s0 = inlined_call_operand.vmem [shape: f32[2,16,16,4], index: 0, kind: input, shape index: {}]
  %s1 = inlined_call_operand.vmem [shape: f32[36,8], index: 1, kind: input, shape index: {}]
  %s2 = inlined_call_operand.vmem [shape: f32[1,8], index: 2, kind: input, shape index: {}]
  %s3 = inlined_call_operand.vmem [shape: f32[1,8], index: 3, kind: input, shape index: {}]
  %s4 = inlined_call_operand.vmem [shape: f32[72,8], index: 4, kind: input, shape index: {}]
  %s5 = inlined_call_operand.vmem [shape: f32[1,8], index: 5, kind: input, shape index: {}]
  %s6 = inlined_call_operand.vmem [shape: f32[1,8], index: 6, kind: input, shape index: {}]
  %s7 = inlined_call_operand.vmem [shape: f32[2,8,256], index: 7, kind: output, shape index: {}]
  %s8 = sld [smem:[#allocation0]]
  $region61: #{double_conv_forward.1} parent=0
    _
  %s10 = ssub.s32 1, %s8
  %s11 = scalar_select 0, %s10, %s8
  loop: start=0, step=1, limit=4
  $region2: #{double_conv_forward.1} parent=0 // loop_pre_header
    _
  $region3: #{double_conv_forward.1} parent=0 // loop_header
    %s13 = sphi 0, %s17
    %p14 = scmp.ge.s32.totalorder %s13, 4
    %s23 = sphi 0, %s25
    %s26 = sphi 0, %s23
    %s27 = sphi 0, %s26
    %s43 = sphi 0, %s27
    %s47 = sphi 0, %s47
    %s49 = sphi 0, %s47
    %s50 = sphi 0, %s49
    %s64 = sphi 0, %s50
    %s68 = sphi 0, %s68
    %s70 = sphi 0, %s68
    %s71 = sphi 0, %s70
    %s85 = sphi 0, %s71
    %s89 = sphi 0, %s89
    %s91 = sphi 0, %s89
    %s92 = sphi 0, %s91
    %s106 = sphi 0, %s92
    %s110 = sphi 0, %s110
    %s112 = sphi 0, %s110
    %s113 = sphi 0, %s112
    %s127 = sphi 0, %s113
    %s131 = sphi 0, %s131
    %s133 = sphi 0, %s131
    %s134 = sphi 0, %s133
    %s148 = sphi 0, %s134
    %s152 = sphi 0, %s152
    %s154 = sphi 0, %s152
    %s155 = sphi 0, %s154
    %s169 = sphi 0, %s155
    %s175 = sphi 0, %s177
    %s178 = sphi 0, %s175
    %s179 = sphi 0, %s178
    %s195 = sphi 0, %s179
  $region4: #{double_conv_forward.1} parent=0 // loop_header_branch
    %16 = sbr.rel (%p14) target = $region8
  $region5: #{double_conv_forward.1} parent=0 // loop_body
    %s18 = ssub.s32 %s13, 1
    %s19 = ssub.s32 %s13, 2
    %s20 = sadd.s32 %s13, 1
    %s21 = ssub.s32 %s13, %s20
    %p22 = scmp.eq.s32.totalorder %s21, 0
    %s24 = sadd.s32 %s23, 1
    %s25 = scalar_select %p22, %s23, %s24
    %p28 = pneg %p22
    %p29 = scmp.eq.s32.totalorder %s13, 1
    %p30 = por %p28, %p29
    %p31 = scmp.ne.s32.totalorder %s23, %s26
    %p32 = scmp.eq.s32.totalorder %s13, 0
    %p33 = por %p31, %p32
    %p34 = scmp.ne.s32.totalorder %s23, %s26
    %p35 = scmp.eq.s32.totalorder %s18, 1
    %p36 = por %p34, %p35
    %p37 = scmp.ne.s32.totalorder %s26, %s27
    %p38 = scmp.eq.s32.totalorder %s18, 0
    %p39 = por %p37, %p38
    %p40 = scmp.ne.s32.totalorder %s26, %s27
    %p41 = scmp.eq.s32.totalorder %s19, 1
    %p42 = por %p40, %p41
    %p44 = scmp.ne.s32.totalorder %s27, %s43
    %p45 = scmp.eq.s32.totalorder %s19, 0
    %p46 = por %p44, %p45
    %s48 = sadd.s32 %s47, 1
    %p51 = scmp.eq.s32.totalorder %s13, 1
    %p52 = scmp.ne.s32.totalorder %s47, %s49
    %p53 = scmp.eq.s32.totalorder %s13, 0
    %p54 = por %p52, %p53
    %p55 = scmp.ne.s32.totalorder %s47, %s49
    %p56 = scmp.eq.s32.totalorder %s18, 1
    %p57 = por %p55, %p56
    %p58 = scmp.ne.s32.totalorder %s49, %s50
    %p59 = scmp.eq.s32.totalorder %s18, 0
    %p60 = por %p58, %p59
    %p61 = scmp.ne.s32.totalorder %s49, %s50
    %p62 = scmp.eq.s32.totalorder %s19, 1
    %p63 = por %p61, %p62
    %p65 = scmp.ne.s32.totalorder %s50, %s64
    %p66 = scmp.eq.s32.totalorder %s19, 0
    %p67 = por %p65, %p66
    %s69 = sadd.s32 %s68, 1
    %p72 = scmp.eq.s32.totalorder %s13, 1
    %p73 = scmp.ne.s32.totalorder %s68, %s70
    %p74 = scmp.eq.s32.totalorder %s13, 0
    %p75 = por %p73, %p74
    %p76 = scmp.ne.s32.totalorder %s68, %s70
    %p77 = scmp.eq.s32.totalorder %s18, 1
    %p78 = por %p76, %p77
    %p79 = scmp.ne.s32.totalorder %s70, %s71
    %p80 = scmp.eq.s32.totalorder %s18, 0
    %p81 = por %p79, %p80
    %p82 = scmp.ne.s32.totalorder %s70, %s71
    %p83 = scmp.eq.s32.totalorder %s19, 1
    %p84 = por %p82, %p83
    %p86 = scmp.ne.s32.totalorder %s71, %s85
    %p87 = scmp.eq.s32.totalorder %s19, 0
    %p88 = por %p86, %p87
    %s90 = sadd.s32 %s89, 1
    %p93 = scmp.eq.s32.totalorder %s13, 1
    %p94 = scmp.ne.s32.totalorder %s89, %s91
    %p95 = scmp.eq.s32.totalorder %s13, 0
    %p96 = por %p94, %p95
    %p97 = scmp.ne.s32.totalorder %s89, %s91
    %p98 = scmp.eq.s32.totalorder %s18, 1
    %p99 = por %p97, %p98
    %p100 = scmp.ne.s32.totalorder %s91, %s92
    %p101 = scmp.eq.s32.totalorder %s18, 0
    %p102 = por %p100, %p101
    %p103 = scmp.ne.s32.totalorder %s91, %s92
    %p104 = scmp.eq.s32.totalorder %s19, 1
    %p105 = por %p103, %p104
    %p107 = scmp.ne.s32.totalorder %s92, %s106
    %p108 = scmp.eq.s32.totalorder %s19, 0
    %p109 = por %p107, %p108
    %s111 = sadd.s32 %s110, 1
    %p114 = scmp.eq.s32.totalorder %s13, 1
    %p115 = scmp.ne.s32.totalorder %s110, %s112
    %p116 = scmp.eq.s32.totalorder %s13, 0
    %p117 = por %p115, %p116
    %p118 = scmp.ne.s32.totalorder %s110, %s112
    %p119 = scmp.eq.s32.totalorder %s18, 1
    %p120 = por %p118, %p119
    %p121 = scmp.ne.s32.totalorder %s112, %s113
    %p122 = scmp.eq.s32.totalorder %s18, 0
    %p123 = por %p121, %p122
    %p124 = scmp.ne.s32.totalorder %s112, %s113
    %p125 = scmp.eq.s32.totalorder %s19, 1
    %p126 = por %p124, %p125
    %p128 = scmp.ne.s32.totalorder %s113, %s127
    %p129 = scmp.eq.s32.totalorder %s19, 0
    %p130 = por %p128, %p129
    %s132 = sadd.s32 %s131, 1
    %p135 = scmp.eq.s32.totalorder %s13, 1
    %p136 = scmp.ne.s32.totalorder %s131, %s133
    %p137 = scmp.eq.s32.totalorder %s13, 0
    %p138 = por %p136, %p137
    %p139 = scmp.ne.s32.totalorder %s131, %s133
    %p140 = scmp.eq.s32.totalorder %s18, 1
    %p141 = por %p139, %p140
    %p142 = scmp.ne.s32.totalorder %s133, %s134
    %p143 = scmp.eq.s32.totalorder %s18, 0
    %p144 = por %p142, %p143
    %p145 = scmp.ne.s32.totalorder %s133, %s134
    %p146 = scmp.eq.s32.totalorder %s19, 1
    %p147 = por %p145, %p146
    %p149 = scmp.ne.s32.totalorder %s134, %s148
    %p150 = scmp.eq.s32.totalorder %s19, 0
    %p151 = por %p149, %p150
    %s153 = sadd.s32 %s152, 1
    %p156 = scmp.eq.s32.totalorder %s13, 1
    %p157 = scmp.ne.s32.totalorder %s152, %s154
    %p158 = scmp.eq.s32.totalorder %s13, 0
    %p159 = por %p157, %p158
    %p160 = scmp.ne.s32.totalorder %s152, %s154
    %p161 = scmp.eq.s32.totalorder %s18, 1
    %p162 = por %p160, %p161
    %p163 = scmp.ne.s32.totalorder %s154, %s155
    %p164 = scmp.eq.s32.totalorder %s18, 0
    %p165 = por %p163, %p164
    %p166 = scmp.ne.s32.totalorder %s154, %s155
    %p167 = scmp.eq.s32.totalorder %s19, 1
    %p168 = por %p166, %p167
    %p170 = scmp.ne.s32.totalorder %s155, %s169
    %p171 = scmp.eq.s32.totalorder %s19, 0
    %p172 = por %p170, %p171
    %s173 = ssub.s32 %s13, %s20
    %p174 = scmp.eq.s32.totalorder %s173, 0
    %s176 = sadd.s32 %s175, 1
    %s177 = scalar_select %p174, %s175, %s176
    %p180 = pneg %p174
    %p181 = scmp.eq.s32.totalorder %s13, 1
    %p182 = por %p180, %p181
    %p183 = scmp.ne.s32.totalorder %s175, %s178
    %p184 = scmp.eq.s32.totalorder %s13, 0
    %p185 = por %p183, %p184
    %p186 = scmp.ne.s32.totalorder %s175, %s178
    %p187 = scmp.eq.s32.totalorder %s18, 1
    %p188 = por %p186, %p187
    %p189 = scmp.ne.s32.totalorder %s178, %s179
    %p190 = scmp.eq.s32.totalorder %s18, 0
    %p191 = por %p189, %p190
    %p192 = scmp.ne.s32.totalorder %s178, %s179
    %p193 = scmp.eq.s32.totalorder %s19, 1
    %p194 = por %p192, %p193
    %p196 = scmp.ne.s32.totalorder %s179, %s195
    %p197 = scmp.eq.s32.totalorder %s19, 0
    %p198 = por %p196, %p197
    %p199 = scmp.le.s32.totalorder 1, %s13
    %p200 = scmp.lt.s32.totalorder %s13, 3
    %p201 = pnand %p199, %p200
    %p202 = pneg %p201
    // Predicated region
    $region9: #{double_conv_forward.1} parent=5 // pred_check
      _
    $region10: #{double_conv_forward.1} parent=5 // pred_check_branch
      %204 = sbr.rel (%p201) target = $region12
    $region11: #{double_conv_forward.1} parent=5 // pred_region
      %s205 = ssub.s32 %s13, 1
      // Predicated region
      $region13: #{double_conv_forward.1} parent=11 // pred_check
        %p206 = pneg %p60
      $region14: #{double_conv_forward.1} parent=11 // pred_check_branch
        %208 = sbr.rel (%p206) target = $region16
      $region15: #{double_conv_forward.1} parent=11 // pred_region
        _
      $region16: #{double_conv_forward.1} parent=11 // pred_fallthru
        _
      // Predicated region
      $region17: #{double_conv_forward.1} parent=11 // pred_check
        %p209 = pneg %p81
      $region18: #{double_conv_forward.1} parent=11 // pred_check_branch
        %211 = sbr.rel (%p209) target = $region20
      $region19: #{double_conv_forward.1} parent=11 // pred_region
        _
      $region20: #{double_conv_forward.1} parent=11 // pred_fallthru
        _
      // Predicated region
      $region21: #{double_conv_forward.1} parent=11 // pred_check
        %p212 = pneg %p102
      $region22: #{double_conv_forward.1} parent=11 // pred_check_branch
        %214 = sbr.rel (%p212) target = $region24
      $region23: #{double_conv_forward.1} parent=11 // pred_region
        _
      $region24: #{double_conv_forward.1} parent=11 // pred_fallthru
        _
      // Predicated region
      $region25: #{double_conv_forward.1} parent=11 // pred_check
        %p215 = pneg %p123
      $region26: #{double_conv_forward.1} parent=11 // pred_check_branch
        %217 = sbr.rel (%p215) target = $region28
      $region27: #{double_conv_forward.1} parent=11 // pred_region
        _
      $region28: #{double_conv_forward.1} parent=11 // pred_fallthru
        _
      // Predicated region
      $region29: #{double_conv_forward.1} parent=11 // pred_check
        %p218 = pneg %p144
      $region30: #{double_conv_forward.1} parent=11 // pred_check_branch
        %220 = sbr.rel (%p218) target = $region32
      $region31: #{double_conv_forward.1} parent=11 // pred_region
        _
      $region32: #{double_conv_forward.1} parent=11 // pred_fallthru
        _
      // Predicated region
      $region33: #{double_conv_forward.1} parent=11 // pred_check
        %p221 = pneg %p165
      $region34: #{double_conv_forward.1} parent=11 // pred_check_branch
        %223 = sbr.rel (%p221) target = $region36
      $region35: #{double_conv_forward.1} parent=11 // pred_region
        _
      $region36: #{double_conv_forward.1} parent=11 // pred_fallthru
        _
    $region12: #{double_conv_forward.1} parent=5 // pred_fallthru
      _
    %p224 = scmp.lt.s32.totalorder %s13, 2
    // Predicated region
    $region37: #{double_conv_forward.1} parent=5 // pred_check
      %p225 = pneg %p224
    $region38: #{double_conv_forward.1} parent=5 // pred_check_branch
      %227 = sbr.rel (%p225) target = $region40
    $region39: #{double_conv_forward.1} parent=5 // pred_region
      // Predicated region
      $region41: #{double_conv_forward.1} parent=39 // pred_check
        %p228 = pneg %p33
      $region42: #{double_conv_forward.1} parent=39 // pred_check_branch
        %230 = sbr.rel (%p228) target = $region44
      $region43: #{double_conv_forward.1} parent=39 // pred_region
        %p231 = scmp.lt.s32.totalorder %s13, 1
        %s232 = scalar_select %p231, %s13, 1
        %s233 = smul.addr %s232, 32
        %s234 = smul.addr %s233, 8
        %s235 = scalar_lea.vmem %s0, %s234
      $region44: #{double_conv_forward.1} parent=39 // pred_fallthru
        _
    $region40: #{double_conv_forward.1} parent=5 // pred_fallthru
      _
    %p236 = scmp.le.s32.totalorder 1, %s13
    %p237 = scmp.lt.s32.totalorder %s13, 3
    %p238 = pnand %p236, %p237
    %p239 = pneg %p238
    // Predicated region
    $region45: #{double_conv_forward.1} parent=5 // pred_check
      _
    $region46: #{double_conv_forward.1} parent=5 // pred_check_branch
      %241 = sbr.rel (%p238) target = $region48
    $region47: #{double_conv_forward.1} parent=5 // pred_region
      %s242 = ssub.s32 %s13, 1
      %p243 = scmp.lt.s32.totalorder %s18, 1
      %s244 = scalar_select %p243, %s18, 1
      %s245 = smul.addr %s244, 32
      %s246 = smul.addr %s245, 8
      %s247 = scalar_lea.vmem %s0, %s246
      %p248 = pneg %p39
      %p249 = pneg %p36
      %p250 = pneg %p60
      %p251 = pneg %p57
      %p252 = pneg %p81
      %p253 = pneg %p78
      %p254 = pneg %p102
      %p255 = pneg %p99
      %p256 = pneg %p123
      %p257 = pneg %p120
      %p258 = pneg %p144
      %p259 = pneg %p141
      %p260 = pneg %p165
      %p261 = pneg %p162
      %p262 = pneg %p191
      %p263 = pneg %p188
      %p264 = scmp.lt.s32.totalorder %s18, 1
      %s265 = scalar_select %p264, %s18, 1
      %s266 = smul.addr %s265, 2
      %s267 = smul.addr %s266, 8
      %s268 = scalar_lea.vmem %s7, %s267
      %p269 = scmp.lt.s32.totalorder %s18, 1
      %s270 = scalar_select %p269, %s18, 1
      %s271 = smul.addr %s270, 32
      %s272 = smul.addr %s271, 8
      %s273 = scalar_lea.vmem %s0, %s272
      %p274 = scmp.lt.s32.totalorder %s18, 1
      %s275 = scalar_select %p274, %s18, 1
      %s276 = smul.addr %s275, 2
      %s277 = smul.addr %s276, 8
      %s278 = scalar_lea.vmem %s7, %s277
      %vm279 = vcmask 31744
      %280 = vst.msk [vmem:[#allocation2] sm:$0xff] %vm279, 0.0
      %281 = vst.msk [vmem:[#allocation2 + $0x8] sm:$0xff] %vm279, 0.0
      %vm282 = vcmask 25600
      %283 = vst.msk [vmem:[#allocation2 + $0x10] sm:$0x3] %vm282, 0.0
      %284 = vst.msk [vmem:[#allocation2 + $0x18] sm:$0xff] %vm279, 0.0
      %285 = vst.msk [vmem:[#allocation2 + $0x20] sm:$0xff] %vm279, 0.0
      %286 = vst.msk [vmem:[#allocation2 + $0x28] sm:$0x3] %vm282, 0.0
      %287 = vst.msk [vmem:[#allocation2 + $0x30] sm:$0xff] %vm279, 0.0
      %288 = vst.msk [vmem:[#allocation2 + $0x38] sm:$0xff] %vm279, 0.0
      %289 = vst.msk [vmem:[#allocation2 + $0x40] sm:$0x3] %vm282, 0.0
      %290 = vst.msk [vmem:[#allocation2 + $0x48] sm:$0xff] %vm279, 0.0
      %291 = vst.msk [vmem:[#allocation2 + $0x50] sm:$0xff] %vm279, 0.0
      %292 = vst.msk [vmem:[#allocation2 + $0x58] sm:$0x3] %vm282, 0.0
      %293 = vst.msk [vmem:[#allocation2 + $0x60] sm:$0xff] %vm279, 0.0
      %294 = vst.msk [vmem:[#allocation2 + $0x68] sm:$0xff] %vm279, 0.0
      %295 = vst.msk [vmem:[#allocation2 + $0x70] sm:$0x3] %vm282, 0.0
      %296 = vst.msk [vmem:[#allocation2 + $0x78] sm:$0xff] %vm279, 0.0
      %297 = vst.msk [vmem:[#allocation2 + $0x80] sm:$0xff] %vm279, 0.0
      %298 = vst.msk [vmem:[#allocation2 + $0x88] sm:$0x3] %vm282, 0.0
      %299 = vst.msk [vmem:[#allocation2 + $0x90] sm:$0xff] %vm279, 0.0
      %300 = vst.msk [vmem:[#allocation2 + $0x98] sm:$0xff] %vm279, 0.0
      %301 = vst.msk [vmem:[#allocation2 + $0xa0] sm:$0x3] %vm282, 0.0
      %302 = vst.msk [vmem:[#allocation2 + $0xa8] sm:$0xff] %vm279, 0.0
      %303 = vst.msk [vmem:[#allocation2 + $0xb0] sm:$0xff] %vm279, 0.0
      %304 = vst.msk [vmem:[#allocation2 + $0xb8] sm:$0x3] %vm282, 0.0
      %305 = vst.msk [vmem:[#allocation2 + $0xc0] sm:$0xff] %vm279, 0.0
      %306 = vst.msk [vmem:[#allocation2 + $0xc8] sm:$0xff] %vm279, 0.0
      %307 = vst.msk [vmem:[#allocation2 + $0xd0] sm:$0x3] %vm282, 0.0
      %308 = vst.msk [vmem:[#allocation2 + $0xd8] sm:$0xff] %vm279, 0.0
      %309 = vst.msk [vmem:[#allocation2 + $0xe0] sm:$0xff] %vm279, 0.0
      %310 = vst.msk [vmem:[#allocation2 + $0xe8] sm:$0x3] %vm282, 0.0
      %311 = vst.msk [vmem:[#allocation2 + $0xf0] sm:$0xff] %vm279, 0.0
      %312 = vst.msk [vmem:[#allocation2 + $0xf8] sm:$0xff] %vm279, 0.0
      %313 = vst.msk [vmem:[#allocation2 + $0x100] sm:$0x3] %vm282, 0.0
      %314 = vst.msk [vmem:[#allocation2 + $0x108] sm:$0xff] %vm279, 0.0
      %315 = vst.msk [vmem:[#allocation2 + $0x110] sm:$0xff] %vm279, 0.0
      %316 = vst.msk [vmem:[#allocation2 + $0x118] sm:$0x3] %vm282, 0.0
      %317 = vst.msk [vmem:[#allocation2 + $0x120] sm:$0xff] %vm279, 0.0
      %318 = vst.msk [vmem:[#allocation2 + $0x128] sm:$0xff] %vm279, 0.0
      %319 = vst.msk [vmem:[#allocation2 + $0x130] sm:$0x3] %vm282, 0.0
      %320 = vst.msk [vmem:[#allocation2 + $0x138] sm:$0xff] %vm279, 0.0
      %321 = vst.msk [vmem:[#allocation2 + $0x140] sm:$0xff] %vm279, 0.0
      %322 = vst.msk [vmem:[#allocation2 + $0x148] sm:$0x3] %vm282, 0.0
      %323 = vst.msk [vmem:[#allocation2 + $0x150] sm:$0xff] %vm279, 0.0
      %324 = vst.msk [vmem:[#allocation2 + $0x158] sm:$0xff] %vm279, 0.0
      %325 = vst.msk [vmem:[#allocation2 + $0x160] sm:$0x3] %vm282, 0.0
      %326 = vst.msk [vmem:[#allocation2 + $0x168] sm:$0xff] %vm279, 0.0
      %327 = vst.msk [vmem:[#allocation2 + $0x170] sm:$0xff] %vm279, 0.0
      %328 = vst.msk [vmem:[#allocation2 + $0x178] sm:$0x3] %vm282, 0.0
      %329 = vst.msk [vmem:[#allocation2 + $0x180] sm:$0xff] %vm279, 0.0
      %330 = vst.msk [vmem:[#allocation2 + $0x188] sm:$0xff] %vm279, 0.0
      %331 = vst.msk [vmem:[#allocation2 + $0x190] sm:$0x3] %vm282, 0.0
      %332 = vst.msk [vmem:[#allocation2 + $0x198] sm:$0xff] %vm279, 0.0
      %333 = vst.msk [vmem:[#allocation2 + $0x1a0] sm:$0xff] %vm279, 0.0
      %334 = vst.msk [vmem:[#allocation2 + $0x1a8] sm:$0x3] %vm282, 0.0
      %v335 = vld [vmem:[%s273] sm:$0xff]
      %v336 = vld [vmem:[%s273 + $0x8] sm:$0xff]
      %v337 = vld [vmem:[%s273 + $0x10] sm:$0xff]
      %v338 = vld [vmem:[%s273 + $0x18] sm:$0xff]
      %v339 = vld [vmem:[%s273 + $0x20] sm:$0xff]
      %v340 = vld [vmem:[%s273 + $0x28] sm:$0xff]
      %v341 = vld [vmem:[%s273 + $0x30] sm:$0xff]
      %v342 = vld [vmem:[%s273 + $0x38] sm:$0xff]
      %v343 = vld [vmem:[%s273 + $0x40] sm:$0xff]
      %v344 = vld [vmem:[%s273 + $0x48] sm:$0xff]
      %v345 = vld [vmem:[%s273 + $0x50] sm:$0xff]
      %v346 = vld [vmem:[%s273 + $0x58] sm:$0xff]
      %v347 = vld [vmem:[%s273 + $0x60] sm:$0xff]
      %v348 = vld [vmem:[%s273 + $0x68] sm:$0xff]
      %v349 = vld [vmem:[%s273 + $0x70] sm:$0xff]
      %v350 = vld [vmem:[%s273 + $0x78] sm:$0xff]
      %v351 = vld [vmem:[%s273 + $0x80] sm:$0xff]
      %v352 = vld [vmem:[%s273 + $0x88] sm:$0xff]
      %v353 = vld [vmem:[%s273 + $0x90] sm:$0xff]
      %v354 = vld [vmem:[%s273 + $0x98] sm:$0xff]
      %v355 = vld [vmem:[%s273 + $0xa0] sm:$0xff]
      %v356 = vld [vmem:[%s273 + $0xa8] sm:$0xff]
      %v357 = vld [vmem:[%s273 + $0xb0] sm:$0xff]
      %v358 = vld [vmem:[%s273 + $0xb8] sm:$0xff]
      %v359 = vld [vmem:[%s273 + $0xc0] sm:$0xff]
      %v360 = vld [vmem:[%s273 + $0xc8] sm:$0xff]
      %v361 = vld [vmem:[%s273 + $0xd0] sm:$0xff]
      %v362 = vld [vmem:[%s273 + $0xd8] sm:$0xff]
      %v363 = vld [vmem:[%s273 + $0xe0] sm:$0xff]
      %v364 = vld [vmem:[%s273 + $0xe8] sm:$0xff]
      %v365 = vld [vmem:[%s273 + $0xf0] sm:$0xff]
      %v366 = vld [vmem:[%s273 + $0xf8] sm:$0xff]
      %s367 = scalar_lea.vmem [#allocation2], 24
      %368 = vst.msk [vmem:[%s367 + $0x1] sm:$0xff] %vm279, %v335
      %369 = vst.msk [vmem:[%s367 + $0x9] sm:$0xff] %vm279, %v336
      %370 = vst.msk [vmem:[%s367 + $0x19] sm:$0xff] %vm279, %v337
      %371 = vst.msk [vmem:[%s367 + $0x21] sm:$0xff] %vm279, %v338
      %372 = vst.msk [vmem:[%s367 + $0x31] sm:$0xff] %vm279, %v339
      %373 = vst.msk [vmem:[%s367 + $0x39] sm:$0xff] %vm279, %v340
      %374 = vst.msk [vmem:[%s367 + $0x49] sm:$0xff] %vm279, %v341
      %375 = vst.msk [vmem:[%s367 + $0x51] sm:$0xff] %vm279, %v342
      %376 = vst.msk [vmem:[%s367 + $0x61] sm:$0xff] %vm279, %v343
      %377 = vst.msk [vmem:[%s367 + $0x69] sm:$0xff] %vm279, %v344
      %378 = vst.msk [vmem:[%s367 + $0x79] sm:$0xff] %vm279, %v345
      %379 = vst.msk [vmem:[%s367 + $0x81] sm:$0xff] %vm279, %v346
      %380 = vst.msk [vmem:[%s367 + $0x91] sm:$0xff] %vm279, %v347
      %381 = vst.msk [vmem:[%s367 + $0x99] sm:$0xff] %vm279, %v348
      %382 = vst.msk [vmem:[%s367 + $0xa9] sm:$0xff] %vm279, %v349
      %383 = vst.msk [vmem:[%s367 + $0xb1] sm:$0xff] %vm279, %v350
      %384 = vst.msk [vmem:[%s367 + $0xc1] sm:$0xff] %vm279, %v351
      %385 = vst.msk [vmem:[%s367 + $0xc9] sm:$0xff] %vm279, %v352
      %386 = vst.msk [vmem:[%s367 + $0xd9] sm:$0xff] %vm279, %v353
      %387 = vst.msk [vmem:[%s367 + $0xe1] sm:$0xff] %vm279, %v354
      %388 = vst.msk [vmem:[%s367 + $0xf1] sm:$0xff] %vm279, %v355
      %389 = vst.msk [vmem:[%s367 + $0xf9] sm:$0xff] %vm279, %v356
      %390 = vst.msk [vmem:[%s367 + $0x109] sm:$0xff] %vm279, %v357
      %391 = vst.msk [vmem:[%s367 + $0x111] sm:$0xff] %vm279, %v358
      %392 = vst.msk [vmem:[%s367 + $0x121] sm:$0xff] %vm279, %v359
      %393 = vst.msk [vmem:[%s367 + $0x129] sm:$0xff] %vm279, %v360
      %394 = vst.msk [vmem:[%s367 + $0x139] sm:$0xff] %vm279, %v361
      %395 = vst.msk [vmem:[%s367 + $0x141] sm:$0xff] %vm279, %v362
      %396 = vst.msk [vmem:[%s367 + $0x151] sm:$0xff] %vm279, %v363
      %397 = vst.msk [vmem:[%s367 + $0x159] sm:$0xff] %vm279, %v364
      %398 = vst.msk [vmem:[%s367 + $0x169] sm:$0xff] %vm279, %v365
      %399 = vst.msk [vmem:[%s367 + $0x171] sm:$0xff] %vm279, %v366
      %v400 = vld [vmem:[#allocation2] sm:$0xff]
      %v401 = vld [vmem:[#allocation2 + $0x8] sm:$0xff]
      %v402 = vld [vmem:[#allocation2 + $0x18] sm:$0xff]
      %v403 = vld [vmem:[#allocation2 + $0x20] sm:$0xff]
      %v404 = vld [vmem:[#allocation2 + $0x30] sm:$0xff]
      %v405 = vld [vmem:[#allocation2 + $0x38] sm:$0xff]
      %v406 = vld [vmem:[#allocation2 + $0x48] sm:$0xff]
      %v407 = vld [vmem:[#allocation2 + $0x50] sm:$0xff]
      %v408 = vld [vmem:[#allocation2 + $0x60] sm:$0xff]
      %v409 = vld [vmem:[#allocation2 + $0x68] sm:$0xff]
      %v410 = vld [vmem:[#allocation2 + $0x78] sm:$0xff]
      %v411 = vld [vmem:[#allocation2 + $0x80] sm:$0xff]
      %v412 = vld [vmem:[#allocation2 + $0x90] sm:$0xff]
      %v413 = vld [vmem:[#allocation2 + $0x98] sm:$0xff]
      %v414 = vld [vmem:[#allocation2 + $0xa8] sm:$0xff]
      %v415 = vld [vmem:[#allocation2 + $0xb0] sm:$0xff]
      %v416 = vld [vmem:[#allocation2 + $0xc0] sm:$0xff]
      %v417 = vld [vmem:[#allocation2 + $0xc8] sm:$0xff]
      %v418 = vld [vmem:[#allocation2 + $0xd8] sm:$0xff]
      %v419 = vld [vmem:[#allocation2 + $0xe0] sm:$0xff]
      %v420 = vld [vmem:[#allocation2 + $0xf0] sm:$0xff]
      %v421 = vld [vmem:[#allocation2 + $0xf8] sm:$0xff]
      %v422 = vld [vmem:[#allocation2 + $0x108] sm:$0xff]
      %v423 = vld [vmem:[#allocation2 + $0x110] sm:$0xff]
      %v424 = vld [vmem:[#allocation2 + $0x120] sm:$0xff]
      %v425 = vld [vmem:[#allocation2 + $0x128] sm:$0xff]
      %v426 = vld [vmem:[#allocation2 + $0x138] sm:$0xff]
      %v427 = vld [vmem:[#allocation2 + $0x140] sm:$0xff]
      %v428 = vld [vmem:[#allocation2 + $0x150] sm:$0xff]
      %v429 = vld [vmem:[#allocation2 + $0x158] sm:$0xff]
      %v430 = vld [vmem:[#allocation2 + $0x168] sm:$0xff]
      %v431 = vld [vmem:[#allocation2 + $0x170] sm:$0xff]
      %v432 = vld [vmem:[#allocation2 + $0x1] sm:$0xff]
      %v433 = vld [vmem:[#allocation2 + $0x9] sm:$0xff]
      %v434 = vld [vmem:[#allocation2 + $0x19] sm:$0xff]
      %v435 = vld [vmem:[#allocation2 + $0x21] sm:$0xff]
      %v436 = vld [vmem:[#allocation2 + $0x31] sm:$0xff]
      %v437 = vld [vmem:[#allocation2 + $0x39] sm:$0xff]
      %v438 = vld [vmem:[#allocation2 + $0x49] sm:$0xff]
      %v439 = vld [vmem:[#allocation2 + $0x51] sm:$0xff]
      %v440 = vld [vmem:[#allocation2 + $0x61] sm:$0xff]
      %v441 = vld [vmem:[#allocation2 + $0x69] sm:$0xff]
      %v442 = vld [vmem:[#allocation2 + $0x79] sm:$0xff]
      %v443 = vld [vmem:[#allocation2 + $0x81] sm:$0xff]
      %v444 = vld [vmem:[#allocation2 + $0x91] sm:$0xff]
      %v445 = vld [vmem:[#allocation2 + $0x99] sm:$0xff]
      %v446 = vld [vmem:[#allocation2 + $0xa9] sm:$0xff]
      %v447 = vld [vmem:[#allocation2 + $0xb1] sm:$0xff]
      %v448 = vld [vmem:[#allocation2 + $0xc1] sm:$0xff]
      %v449 = vld [vmem:[#allocation2 + $0xc9] sm:$0xff]
      %v450 = vld [vmem:[#allocation2 + $0xd9] sm:$0xff]
      %v451 = vld [vmem:[#allocation2 + $0xe1] sm:$0xff]
      %v452 = vld [vmem:[#allocation2 + $0xf1] sm:$0xff]
      %v453 = vld [vmem:[#allocation2 + $0xf9] sm:$0xff]
      %v454 = vld [vmem:[#allocation2 + $0x109] sm:$0xff]
      %v455 = vld [vmem:[#allocation2 + $0x111] sm:$0xff]
      %v456 = vld [vmem:[#allocation2 + $0x121] sm:$0xff]
      %v457 = vld [vmem:[#allocation2 + $0x129] sm:$0xff]
      %v458 = vld [vmem:[#allocation2 + $0x139] sm:$0xff]
      %v459 = vld [vmem:[#allocation2 + $0x141] sm:$0xff]
      %v460 = vld [vmem:[#allocation2 + $0x151] sm:$0xff]
      %v461 = vld [vmem:[#allocation2 + $0x159] sm:$0xff]
      %v462 = vld [vmem:[#allocation2 + $0x169] sm:$0xff]
      %v463 = vld [vmem:[#allocation2 + $0x171] sm:$0xff]
      %v464 = vld [vmem:[#allocation2 + $0x2] sm:$0xff]
      %v465 = vld [vmem:[#allocation2 + $0xa] sm:$0xff]
      %v466 = vld [vmem:[#allocation2 + $0x1a] sm:$0xff]
      %v467 = vld [vmem:[#allocation2 + $0x22] sm:$0xff]
      %v468 = vld [vmem:[#allocation2 + $0x32] sm:$0xff]
      %v469 = vld [vmem:[#allocation2 + $0x3a] sm:$0xff]
      %v470 = vld [vmem:[#allocation2 + $0x4a] sm:$0xff]
      %v471 = vld [vmem:[#allocation2 + $0x52] sm:$0xff]
      %v472 = vld [vmem:[#allocation2 + $0x62] sm:$0xff]
      %v473 = vld [vmem:[#allocation2 + $0x6a] sm:$0xff]
      %v474 = vld [vmem:[#allocation2 + $0x7a] sm:$0xff]
      %v475 = vld [vmem:[#allocation2 + $0x82] sm:$0xff]
      %v476 = vld [vmem:[#allocation2 + $0x92] sm:$0xff]
      %v477 = vld [vmem:[#allocation2 + $0x9a] sm:$0xff]
      %v478 = vld [vmem:[#allocation2 + $0xaa] sm:$0xff]
      %v479 = vld [vmem:[#allocation2 + $0xb2] sm:$0xff]
      %v480 = vld [vmem:[#allocation2 + $0xc2] sm:$0xff]
      %v481 = vld [vmem:[#allocation2 + $0xca] sm:$0xff]
      %v482 = vld [vmem:[#allocation2 + $0xda] sm:$0xff]
      %v483 = vld [vmem:[#allocation2 + $0xe2] sm:$0xff]
      %v484 = vld [vmem:[#allocation2 + $0xf2] sm:$0xff]
      %v485 = vld [vmem:[#allocation2 + $0xfa] sm:$0xff]
      %v486 = vld [vmem:[#allocation2 + $0x10a] sm:$0xff]
      %v487 = vld [vmem:[#allocation2 + $0x112] sm:$0xff]
      %v488 = vld [vmem:[#allocation2 + $0x122] sm:$0xff]
      %v489 = vld [vmem:[#allocation2 + $0x12a] sm:$0xff]
      %v490 = vld [vmem:[#allocation2 + $0x13a] sm:$0xff]
      %v491 = vld [vmem:[#allocation2 + $0x142] sm:$0xff]
      %v492 = vld [vmem:[#allocation2 + $0x152] sm:$0xff]
      %v493 = vld [vmem:[#allocation2 + $0x15a] sm:$0xff]
      %v494 = vld [vmem:[#allocation2 + $0x16a] sm:$0xff]
      %v495 = vld [vmem:[#allocation2 + $0x172] sm:$0xff]
      %v496 = vld [vmem:[%s367] sm:$0xff]
      %v497 = vld [vmem:[%s367 + $0x8] sm:$0xff]
      %v498 = vld [vmem:[%s367 + $0x18] sm:$0xff]
      %v499 = vld [vmem:[%s367 + $0x20] sm:$0xff]
      %v500 = vld [vmem:[%s367 + $0x30] sm:$0xff]
      %v501 = vld [vmem:[%s367 + $0x38] sm:$0xff]
      %v502 = vld [vmem:[%s367 + $0x48] sm:$0xff]
      %v503 = vld [vmem:[%s367 + $0x50] sm:$0xff]
      %v504 = vld [vmem:[%s367 + $0x60] sm:$0xff]
      %v505 = vld [vmem:[%s367 + $0x68] sm:$0xff]
      %v506 = vld [vmem:[%s367 + $0x78] sm:$0xff]
      %v507 = vld [vmem:[%s367 + $0x80] sm:$0xff]
      %v508 = vld [vmem:[%s367 + $0x90] sm:$0xff]
      %v509 = vld [vmem:[%s367 + $0x98] sm:$0xff]
      %v510 = vld [vmem:[%s367 + $0xa8] sm:$0xff]
      %v511 = vld [vmem:[%s367 + $0xb0] sm:$0xff]
      %v512 = vld [vmem:[%s367 + $0xc0] sm:$0xff]
      %v513 = vld [vmem:[%s367 + $0xc8] sm:$0xff]
      %v514 = vld [vmem:[%s367 + $0xd8] sm:$0xff]
      %v515 = vld [vmem:[%s367 + $0xe0] sm:$0xff]
      %v516 = vld [vmem:[%s367 + $0xf0] sm:$0xff]
      %v517 = vld [vmem:[%s367 + $0xf8] sm:$0xff]
      %v518 = vld [vmem:[%s367 + $0x108] sm:$0xff]
      %v519 = vld [vmem:[%s367 + $0x110] sm:$0xff]
      %v520 = vld [vmem:[%s367 + $0x120] sm:$0xff]
      %v521 = vld [vmem:[%s367 + $0x128] sm:$0xff]
      %v522 = vld [vmem:[%s367 + $0x138] sm:$0xff]
      %v523 = vld [vmem:[%s367 + $0x140] sm:$0xff]
      %v524 = vld [vmem:[%s367 + $0x150] sm:$0xff]
      %v525 = vld [vmem:[%s367 + $0x158] sm:$0xff]
      %v526 = vld [vmem:[%s367 + $0x168] sm:$0xff]
      %v527 = vld [vmem:[%s367 + $0x170] sm:$0xff]
      %v528 = vld [vmem:[%s367 + $0x1] sm:$0xff]
      %v529 = vld [vmem:[%s367 + $0x9] sm:$0xff]
      %v530 = vld [vmem:[%s367 + $0x19] sm:$0xff]
      %v531 = vld [vmem:[%s367 + $0x21] sm:$0xff]
      %v532 = vld [vmem:[%s367 + $0x31] sm:$0xff]
      %v533 = vld [vmem:[%s367 + $0x39] sm:$0xff]
      %v534 = vld [vmem:[%s367 + $0x49] sm:$0xff]
      %v535 = vld [vmem:[%s367 + $0x51] sm:$0xff]
      %v536 = vld [vmem:[%s367 + $0x61] sm:$0xff]
      %v537 = vld [vmem:[%s367 + $0x69] sm:$0xff]
      %v538 = vld [vmem:[%s367 + $0x79] sm:$0xff]
      %v539 = vld [vmem:[%s367 + $0x81] sm:$0xff]
      %v540 = vld [vmem:[%s367 + $0x91] sm:$0xff]
      %v541 = vld [vmem:[%s367 + $0x99] sm:$0xff]
      %v542 = vld [vmem:[%s367 + $0xa9] sm:$0xff]
      %v543 = vld [vmem:[%s367 + $0xb1] sm:$0xff]
      %v544 = vld [vmem:[%s367 + $0xc1] sm:$0xff]
      %v545 = vld [vmem:[%s367 + $0xc9] sm:$0xff]
      %v546 = vld [vmem:[%s367 + $0xd9] sm:$0xff]
      %v547 = vld [vmem:[%s367 + $0xe1] sm:$0xff]
      %v548 = vld [vmem:[%s367 + $0xf1] sm:$0xff]
      %v549 = vld [vmem:[%s367 + $0xf9] sm:$0xff]
      %v550 = vld [vmem:[%s367 + $0x109] sm:$0xff]
      %v551 = vld [vmem:[%s367 + $0x111] sm:$0xff]
      %v552 = vld [vmem:[%s367 + $0x121] sm:$0xff]
      %v553 = vld [vmem:[%s367 + $0x129] sm:$0xff]
      %v554 = vld [vmem:[%s367 + $0x139] sm:$0xff]
      %v555 = vld [vmem:[%s367 + $0x141] sm:$0xff]
      %v556 = vld [vmem:[%s367 + $0x151] sm:$0xff]
      %v557 = vld [vmem:[%s367 + $0x159] sm:$0xff]
      %v558 = vld [vmem:[%s367 + $0x169] sm:$0xff]
      %v559 = vld [vmem:[%s367 + $0x171] sm:$0xff]
      %v560 = vld [vmem:[%s367 + $0x2] sm:$0xff]
      %v561 = vld [vmem:[%s367 + $0xa] sm:$0xff]
      %v562 = vld [vmem:[%s367 + $0x1a] sm:$0xff]
      %v563 = vld [vmem:[%s367 + $0x22] sm:$0xff]
      %v564 = vld [vmem:[%s367 + $0x32] sm:$0xff]
      %v565 = vld [vmem:[%s367 + $0x3a] sm:$0xff]
      %v566 = vld [vmem:[%s367 + $0x4a] sm:$0xff]
      %v567 = vld [vmem:[%s367 + $0x52] sm:$0xff]
      %v568 = vld [vmem:[%s367 + $0x62] sm:$0xff]
      %v569 = vld [vmem:[%s367 + $0x6a] sm:$0xff]
      %v570 = vld [vmem:[%s367 + $0x7a] sm:$0xff]
      %v571 = vld [vmem:[%s367 + $0x82] sm:$0xff]
      %v572 = vld [vmem:[%s367 + $0x92] sm:$0xff]
      %v573 = vld [vmem:[%s367 + $0x9a] sm:$0xff]
      %v574 = vld [vmem:[%s367 + $0xaa] sm:$0xff]
      %v575 = vld [vmem:[%s367 + $0xb2] sm:$0xff]
      %v576 = vld [vmem:[%s367 + $0xc2] sm:$0xff]
      %v577 = vld [vmem:[%s367 + $0xca] sm:$0xff]
      %v578 = vld [vmem:[%s367 + $0xda] sm:$0xff]
      %v579 = vld [vmem:[%s367 + $0xe2] sm:$0xff]
      %v580 = vld [vmem:[%s367 + $0xf2] sm:$0xff]
      %v581 = vld [vmem:[%s367 + $0xfa] sm:$0xff]
      %v582 = vld [vmem:[%s367 + $0x10a] sm:$0xff]
      %v583 = vld [vmem:[%s367 + $0x112] sm:$0xff]
      %v584 = vld [vmem:[%s367 + $0x122] sm:$0xff]
      %v585 = vld [vmem:[%s367 + $0x12a] sm:$0xff]
      %v586 = vld [vmem:[%s367 + $0x13a] sm:$0xff]
      %v587 = vld [vmem:[%s367 + $0x142] sm:$0xff]
      %v588 = vld [vmem:[%s367 + $0x152] sm:$0xff]
      %v589 = vld [vmem:[%s367 + $0x15a] sm:$0xff]
      %v590 = vld [vmem:[%s367 + $0x16a] sm:$0xff]
      %v591 = vld [vmem:[%s367 + $0x172] sm:$0xff]
      %s592 = scalar_lea.vmem [#allocation2], 48
      %v593 = vld [vmem:[%s592] sm:$0xff]
      %v594 = vld [vmem:[%s592 + $0x8] sm:$0xff]
      %v595 = vld [vmem:[%s592 + $0x18] sm:$0xff]
      %v596 = vld [vmem:[%s592 + $0x20] sm:$0xff]
      %v597 = vld [vmem:[%s592 + $0x30] sm:$0xff]
      %v598 = vld [vmem:[%s592 + $0x38] sm:$0xff]
      %v599 = vld [vmem:[%s592 + $0x48] sm:$0xff]
      %v600 = vld [vmem:[%s592 + $0x50] sm:$0xff]
      %v601 = vld [vmem:[%s592 + $0x60] sm:$0xff]
      %v602 = vld [vmem:[%s592 + $0x68] sm:$0xff]
      %v603 = vld [vmem:[%s592 + $0x78] sm:$0xff]
      %v604 = vld [vmem:[%s592 + $0x80] sm:$0xff]
      %v605 = vld [vmem:[%s592 + $0x90] sm:$0xff]
      %v606 = vld [vmem:[%s592 + $0x98] sm:$0xff]
      %v607 = vld [vmem:[%s592 + $0xa8] sm:$0xff]
      %v608 = vld [vmem:[%s592 + $0xb0] sm:$0xff]
      %v609 = vld [vmem:[%s592 + $0xc0] sm:$0xff]
      %v610 = vld [vmem:[%s592 + $0xc8] sm:$0xff]
      %v611 = vld [vmem:[%s592 + $0xd8] sm:$0xff]
      %v612 = vld [vmem:[%s592 + $0xe0] sm:$0xff]
      %v613 = vld [vmem:[%s592 + $0xf0] sm:$0xff]
      %v614 = vld [vmem:[%s592 + $0xf8] sm:$0xff]
      %v615 = vld [vmem:[%s592 + $0x108] sm:$0xff]
      %v616 = vld [vmem:[%s592 + $0x110] sm:$0xff]
      %v617 = vld [vmem:[%s592 + $0x120] sm:$0xff]
      %v618 = vld [vmem:[%s592 + $0x128] sm:$0xff]
      %v619 = vld [vmem:[%s592 + $0x138] sm:$0xff]
      %v620 = vld [vmem:[%s592 + $0x140] sm:$0xff]
      %v621 = vld [vmem:[%s592 + $0x150] sm:$0xff]
      %v622 = vld [vmem:[%s592 + $0x158] sm:$0xff]
      %v623 = vld [vmem:[%s592 + $0x168] sm:$0xff]
      %v624 = vld [vmem:[%s592 + $0x170] sm:$0xff]
      %v625 = vld [vmem:[%s592 + $0x1] sm:$0xff]
      %v626 = vld [vmem:[%s592 + $0x9] sm:$0xff]
      %v627 = vld [vmem:[%s592 + $0x19] sm:$0xff]
      %v628 = vld [vmem:[%s592 + $0x21] sm:$0xff]
      %v629 = vld [vmem:[%s592 + $0x31] sm:$0xff]
      %v630 = vld [vmem:[%s592 + $0x39] sm:$0xff]
      %v631 = vld [vmem:[%s592 + $0x49] sm:$0xff]
      %v632 = vld [vmem:[%s592 + $0x51] sm:$0xff]
      %v633 = vld [vmem:[%s592 + $0x61] sm:$0xff]
      %v634 = vld [vmem:[%s592 + $0x69] sm:$0xff]
      %v635 = vld [vmem:[%s592 + $0x79] sm:$0xff]
      %v636 = vld [vmem:[%s592 + $0x81] sm:$0xff]
      %v637 = vld [vmem:[%s592 + $0x91] sm:$0xff]
      %v638 = vld [vmem:[%s592 + $0x99] sm:$0xff]
      %v639 = vld [vmem:[%s592 + $0xa9] sm:$0xff]
      %v640 = vld [vmem:[%s592 + $0xb1] sm:$0xff]
      %v641 = vld [vmem:[%s592 + $0xc1] sm:$0xff]
      %v642 = vld [vmem:[%s592 + $0xc9] sm:$0xff]
      %v643 = vld [vmem:[%s592 + $0xd9] sm:$0xff]
      %v644 = vld [vmem:[%s592 + $0xe1] sm:$0xff]
      %v645 = vld [vmem:[%s592 + $0xf1] sm:$0xff]
      %v646 = vld [vmem:[%s592 + $0xf9] sm:$0xff]
      %v647 = vld [vmem:[%s592 + $0x109] sm:$0xff]
      %v648 = vld [vmem:[%s592 + $0x111] sm:$0xff]
      %v649 = vld [vmem:[%s592 + $0x121] sm:$0xff]
      %v650 = vld [vmem:[%s592 + $0x129] sm:$0xff]
      %v651 = vld [vmem:[%s592 + $0x139] sm:$0xff]
      %v652 = vld [vmem:[%s592 + $0x141] sm:$0xff]
      %v653 = vld [vmem:[%s592 + $0x151] sm:$0xff]
      %v654 = vld [vmem:[%s592 + $0x159] sm:$0xff]
      %v655 = vld [vmem:[%s592 + $0x169] sm:$0xff]
      %v656 = vld [vmem:[%s592 + $0x171] sm:$0xff]
      %v657 = vld [vmem:[%s592 + $0x2] sm:$0xff]
      %v658 = vld [vmem:[%s592 + $0xa] sm:$0xff]
      %v659 = vld [vmem:[%s592 + $0x1a] sm:$0xff]
      %v660 = vld [vmem:[%s592 + $0x22] sm:$0xff]
      %v661 = vld [vmem:[%s592 + $0x32] sm:$0xff]
      %v662 = vld [vmem:[%s592 + $0x3a] sm:$0xff]
      %v663 = vld [vmem:[%s592 + $0x4a] sm:$0xff]
      %v664 = vld [vmem:[%s592 + $0x52] sm:$0xff]
      %v665 = vld [vmem:[%s592 + $0x62] sm:$0xff]
      %v666 = vld [vmem:[%s592 + $0x6a] sm:$0xff]
      %v667 = vld [vmem:[%s592 + $0x7a] sm:$0xff]
      %v668 = vld [vmem:[%s592 + $0x82] sm:$0xff]
      %v669 = vld [vmem:[%s592 + $0x92] sm:$0xff]
      %v670 = vld [vmem:[%s592 + $0x9a] sm:$0xff]
      %v671 = vld [vmem:[%s592 + $0xaa] sm:$0xff]
      %v672 = vld [vmem:[%s592 + $0xb2] sm:$0xff]
      %v673 = vld [vmem:[%s592 + $0xc2] sm:$0xff]
      %v674 = vld [vmem:[%s592 + $0xca] sm:$0xff]
      %v675 = vld [vmem:[%s592 + $0xda] sm:$0xff]
      %v676 = vld [vmem:[%s592 + $0xe2] sm:$0xff]
      %v677 = vld [vmem:[%s592 + $0xf2] sm:$0xff]
      %v678 = vld [vmem:[%s592 + $0xfa] sm:$0xff]
      %v679 = vld [vmem:[%s592 + $0x10a] sm:$0xff]
      %v680 = vld [vmem:[%s592 + $0x112] sm:$0xff]
      %v681 = vld [vmem:[%s592 + $0x122] sm:$0xff]
      %v682 = vld [vmem:[%s592 + $0x12a] sm:$0xff]
      %v683 = vld [vmem:[%s592 + $0x13a] sm:$0xff]
      %v684 = vld [vmem:[%s592 + $0x142] sm:$0xff]
      %v685 = vld [vmem:[%s592 + $0x152] sm:$0xff]
      %v686 = vld [vmem:[%s592 + $0x15a] sm:$0xff]
      %v687 = vld [vmem:[%s592 + $0x16a] sm:$0xff]
      %v688 = vld [vmem:[%s592 + $0x172] sm:$0xff]
      %721 = vrot.lane.b32.xlu0 %v432, 4
      %v722 = vpop.permute.xlu0 %721
      %723 = vrot.lane.b32.xlu0 %v433, 4
      %v724 = vpop.permute.xlu0 %723
      %725 = vrot.lane.b32.xlu0 %v434, 4
      %v726 = vpop.permute.xlu0 %725
      %727 = vrot.lane.b32.xlu0 %v435, 4
      %v728 = vpop.permute.xlu0 %727
      %729 = vrot.lane.b32.xlu0 %v436, 4
      %v730 = vpop.permute.xlu0 %729
      %731 = vrot.lane.b32.xlu0 %v437, 4
      %v732 = vpop.permute.xlu0 %731
      %733 = vrot.lane.b32.xlu0 %v438, 4
      %v734 = vpop.permute.xlu0 %733
      %735 = vrot.lane.b32.xlu0 %v439, 4
      %v736 = vpop.permute.xlu0 %735
      %737 = vrot.lane.b32.xlu0 %v440, 4
      %v738 = vpop.permute.xlu0 %737
      %739 = vrot.lane.b32.xlu0 %v441, 4
      %v740 = vpop.permute.xlu0 %739
      %741 = vrot.lane.b32.xlu0 %v442, 4
      %v742 = vpop.permute.xlu0 %741
      %743 = vrot.lane.b32.xlu0 %v443, 4
      %v744 = vpop.permute.xlu0 %743
      %745 = vrot.lane.b32.xlu0 %v444, 4
      %v746 = vpop.permute.xlu0 %745
      %747 = vrot.lane.b32.xlu0 %v445, 4
      %v748 = vpop.permute.xlu0 %747
      %749 = vrot.lane.b32.xlu0 %v446, 4
      %v750 = vpop.permute.xlu0 %749
      %751 = vrot.lane.b32.xlu0 %v447, 4
      %v752 = vpop.permute.xlu0 %751
      %753 = vrot.lane.b32.xlu0 %v448, 4
      %v754 = vpop.permute.xlu0 %753
      %755 = vrot.lane.b32.xlu0 %v449, 4
      %v756 = vpop.permute.xlu0 %755
      %757 = vrot.lane.b32.xlu0 %v450, 4
      %v758 = vpop.permute.xlu0 %757
      %759 = vrot.lane.b32.xlu0 %v451, 4
      %v760 = vpop.permute.xlu0 %759
      %761 = vrot.lane.b32.xlu0 %v452, 4
      %v762 = vpop.permute.xlu0 %761
      %763 = vrot.lane.b32.xlu0 %v453, 4
      %v764 = vpop.permute.xlu0 %763
      %765 = vrot.lane.b32.xlu0 %v454, 4
      %v766 = vpop.permute.xlu0 %765
      %767 = vrot.lane.b32.xlu0 %v455, 4
      %v768 = vpop.permute.xlu0 %767
      %769 = vrot.lane.b32.xlu0 %v456, 4
      %v770 = vpop.permute.xlu0 %769
      %771 = vrot.lane.b32.xlu0 %v457, 4
      %v772 = vpop.permute.xlu0 %771
      %773 = vrot.lane.b32.xlu0 %v458, 4
      %v774 = vpop.permute.xlu0 %773
      %775 = vrot.lane.b32.xlu0 %v459, 4
      %v776 = vpop.permute.xlu0 %775
      %777 = vrot.lane.b32.xlu0 %v460, 4
      %v778 = vpop.permute.xlu0 %777
      %779 = vrot.lane.b32.xlu0 %v461, 4
      %v780 = vpop.permute.xlu0 %779
      %781 = vrot.lane.b32.xlu0 %v462, 4
      %v782 = vpop.permute.xlu0 %781
      %783 = vrot.lane.b32.xlu0 %v463, 4
      %v784 = vpop.permute.xlu0 %783
      %849 = vrot.lane.b32.xlu0 %v464, 8
      %v850 = vpop.permute.xlu0 %849
      %851 = vrot.lane.b32.xlu0 %v465, 8
      %v852 = vpop.permute.xlu0 %851
      %853 = vrot.lane.b32.xlu0 %v466, 8
      %v854 = vpop.permute.xlu0 %853
      %855 = vrot.lane.b32.xlu0 %v467, 8
      %v856 = vpop.permute.xlu0 %855
      %857 = vrot.lane.b32.xlu0 %v468, 8
      %v858 = vpop.permute.xlu0 %857
      %859 = vrot.lane.b32.xlu0 %v469, 8
      %v860 = vpop.permute.xlu0 %859
      %861 = vrot.lane.b32.xlu0 %v470, 8
      %v862 = vpop.permute.xlu0 %861
      %863 = vrot.lane.b32.xlu0 %v471, 8
      %v864 = vpop.permute.xlu0 %863
      %865 = vrot.lane.b32.xlu0 %v472, 8
      %v866 = vpop.permute.xlu0 %865
      %867 = vrot.lane.b32.xlu0 %v473, 8
      %v868 = vpop.permute.xlu0 %867
      %869 = vrot.lane.b32.xlu0 %v474, 8
      %v870 = vpop.permute.xlu0 %869
      %871 = vrot.lane.b32.xlu0 %v475, 8
      %v872 = vpop.permute.xlu0 %871
      %873 = vrot.lane.b32.xlu0 %v476, 8
      %v874 = vpop.permute.xlu0 %873
      %875 = vrot.lane.b32.xlu0 %v477, 8
      %v876 = vpop.permute.xlu0 %875
      %877 = vrot.lane.b32.xlu0 %v478, 8
      %v878 = vpop.permute.xlu0 %877
      %879 = vrot.lane.b32.xlu0 %v479, 8
      %v880 = vpop.permute.xlu0 %879
      %881 = vrot.lane.b32.xlu0 %v480, 8
      %v882 = vpop.permute.xlu0 %881
      %883 = vrot.lane.b32.xlu0 %v481, 8
      %v884 = vpop.permute.xlu0 %883
      %885 = vrot.lane.b32.xlu0 %v482, 8
      %v886 = vpop.permute.xlu0 %885
      %887 = vrot.lane.b32.xlu0 %v483, 8
      %v888 = vpop.permute.xlu0 %887
      %889 = vrot.lane.b32.xlu0 %v484, 8
      %v890 = vpop.permute.xlu0 %889
      %891 = vrot.lane.b32.xlu0 %v485, 8
      %v892 = vpop.permute.xlu0 %891
      %893 = vrot.lane.b32.xlu0 %v486, 8
      %v894 = vpop.permute.xlu0 %893
      %895 = vrot.lane.b32.xlu0 %v487, 8
      %v896 = vpop.permute.xlu0 %895
      %897 = vrot.lane.b32.xlu0 %v488, 8
      %v898 = vpop.permute.xlu0 %897
      %899 = vrot.lane.b32.xlu0 %v489, 8
      %v900 = vpop.permute.xlu0 %899
      %901 = vrot.lane.b32.xlu0 %v490, 8
      %v902 = vpop.permute.xlu0 %901
      %903 = vrot.lane.b32.xlu0 %v491, 8
      %v904 = vpop.permute.xlu0 %903
      %905 = vrot.lane.b32.xlu0 %v492, 8
      %v906 = vpop.permute.xlu0 %905
      %907 = vrot.lane.b32.xlu0 %v493, 8
      %v908 = vpop.permute.xlu0 %907
      %909 = vrot.lane.b32.xlu0 %v494, 8
      %v910 = vpop.permute.xlu0 %909
      %911 = vrot.lane.b32.xlu0 %v495, 8
      %v912 = vpop.permute.xlu0 %911
      %977 = vrot.lane.b32.xlu0 %v496, 12
      %v978 = vpop.permute.xlu0 %977
      %979 = vrot.lane.b32.xlu0 %v497, 12
      %v980 = vpop.permute.xlu0 %979
      %981 = vrot.lane.b32.xlu0 %v498, 12
      %v982 = vpop.permute.xlu0 %981
      %983 = vrot.lane.b32.xlu0 %v499, 12
      %v984 = vpop.permute.xlu0 %983
      %985 = vrot.lane.b32.xlu0 %v500, 12
      %v986 = vpop.permute.xlu0 %985
      %987 = vrot.lane.b32.xlu0 %v501, 12
      %v988 = vpop.permute.xlu0 %987
      %989 = vrot.lane.b32.xlu0 %v502, 12
      %v990 = vpop.permute.xlu0 %989
      %991 = vrot.lane.b32.xlu0 %v503, 12
      %v992 = vpop.permute.xlu0 %991
      %993 = vrot.lane.b32.xlu0 %v504, 12
      %v994 = vpop.permute.xlu0 %993
      %995 = vrot.lane.b32.xlu0 %v505, 12
      %v996 = vpop.permute.xlu0 %995
      %997 = vrot.lane.b32.xlu0 %v506, 12
      %v998 = vpop.permute.xlu0 %997
      %999 = vrot.lane.b32.xlu0 %v507, 12
      %v1000 = vpop.permute.xlu0 %999
      %1001 = vrot.lane.b32.xlu0 %v508, 12
      %v1002 = vpop.permute.xlu0 %1001
      %1003 = vrot.lane.b32.xlu0 %v509, 12
      %v1004 = vpop.permute.xlu0 %1003
      %1005 = vrot.lane.b32.xlu0 %v510, 12
      %v1006 = vpop.permute.xlu0 %1005
      %1007 = vrot.lane.b32.xlu0 %v511, 12
      %v1008 = vpop.permute.xlu0 %1007
      %1009 = vrot.lane.b32.xlu0 %v512, 12
      %v1010 = vpop.permute.xlu0 %1009
      %1011 = vrot.lane.b32.xlu0 %v513, 12
      %v1012 = vpop.permute.xlu0 %1011
      %1013 = vrot.lane.b32.xlu0 %v514, 12
      %v1014 = vpop.permute.xlu0 %1013
      %1015 = vrot.lane.b32.xlu0 %v515, 12
      %v1016 = vpop.permute.xlu0 %1015
      %1017 = vrot.lane.b32.xlu0 %v516, 12
      %v1018 = vpop.permute.xlu0 %1017
      %1019 = vrot.lane.b32.xlu0 %v517, 12
      %v1020 = vpop.permute.xlu0 %1019
      %1021 = vrot.lane.b32.xlu0 %v518, 12
      %v1022 = vpop.permute.xlu0 %1021
      %1023 = vrot.lane.b32.xlu0 %v519, 12
      %v1024 = vpop.permute.xlu0 %1023
      %1025 = vrot.lane.b32.xlu0 %v520, 12
      %v1026 = vpop.permute.xlu0 %1025
      %1027 = vrot.lane.b32.xlu0 %v521, 12
      %v1028 = vpop.permute.xlu0 %1027
      %1029 = vrot.lane.b32.xlu0 %v522, 12
      %v1030 = vpop.permute.xlu0 %1029
      %1031 = vrot.lane.b32.xlu0 %v523, 12
      %v1032 = vpop.permute.xlu0 %1031
      %1033 = vrot.lane.b32.xlu0 %v524, 12
      %v1034 = vpop.permute.xlu0 %1033
      %1035 = vrot.lane.b32.xlu0 %v525, 12
      %v1036 = vpop.permute.xlu0 %1035
      %1037 = vrot.lane.b32.xlu0 %v526, 12
      %v1038 = vpop.permute.xlu0 %1037
      %1039 = vrot.lane.b32.xlu0 %v527, 12
      %v1040 = vpop.permute.xlu0 %1039
      %1105 = vrot.lane.b32.xlu0 %v528, 16
      %v1106 = vpop.permute.xlu0 %1105
      %1107 = vrot.lane.b32.xlu0 %v529, 16
      %v1108 = vpop.permute.xlu0 %1107
      %1109 = vrot.lane.b32.xlu0 %v530, 16
      %v1110 = vpop.permute.xlu0 %1109
      %1111 = vrot.lane.b32.xlu0 %v531, 16
      %v1112 = vpop.permute.xlu0 %1111
      %1113 = vrot.lane.b32.xlu0 %v532, 16
      %v1114 = vpop.permute.xlu0 %1113
      %1115 = vrot.lane.b32.xlu0 %v533, 16
      %v1116 = vpop.permute.xlu0 %1115
      %1117 = vrot.lane.b32.xlu0 %v534, 16
      %v1118 = vpop.permute.xlu0 %1117
      %1119 = vrot.lane.b32.xlu0 %v535, 16
      %v1120 = vpop.permute.xlu0 %1119
      %1121 = vrot.lane.b32.xlu0 %v536, 16
      %v1122 = vpop.permute.xlu0 %1121
      %1123 = vrot.lane.b32.xlu0 %v537, 16
      %v1124 = vpop.permute.xlu0 %1123
      %1125 = vrot.lane.b32.xlu0 %v538, 16
      %v1126 = vpop.permute.xlu0 %1125
      %1127 = vrot.lane.b32.xlu0 %v539, 16
      %v1128 = vpop.permute.xlu0 %1127
      %1129 = vrot.lane.b32.xlu0 %v540, 16
      %v1130 = vpop.permute.xlu0 %1129
      %1131 = vrot.lane.b32.xlu0 %v541, 16
      %v1132 = vpop.permute.xlu0 %1131
      %1133 = vrot.lane.b32.xlu0 %v542, 16
      %v1134 = vpop.permute.xlu0 %1133
      %1135 = vrot.lane.b32.xlu0 %v543, 16
      %v1136 = vpop.permute.xlu0 %1135
      %1137 = vrot.lane.b32.xlu0 %v544, 16
      %v1138 = vpop.permute.xlu0 %1137
      %1139 = vrot.lane.b32.xlu0 %v545, 16
      %v1140 = vpop.permute.xlu0 %1139
      %1141 = vrot.lane.b32.xlu0 %v546, 16
      %v1142 = vpop.permute.xlu0 %1141
      %1143 = vrot.lane.b32.xlu0 %v547, 16
      %v1144 = vpop.permute.xlu0 %1143
      %1145 = vrot.lane.b32.xlu0 %v548, 16
      %v1146 = vpop.permute.xlu0 %1145
      %1147 = vrot.lane.b32.xlu0 %v549, 16
      %v1148 = vpop.permute.xlu0 %1147
      %1149 = vrot.lane.b32.xlu0 %v550, 16
      %v1150 = vpop.permute.xlu0 %1149
      %1151 = vrot.lane.b32.xlu0 %v551, 16
      %v1152 = vpop.permute.xlu0 %1151
      %1153 = vrot.lane.b32.xlu0 %v552, 16
      %v1154 = vpop.permute.xlu0 %1153
      %1155 = vrot.lane.b32.xlu0 %v553, 16
      %v1156 = vpop.permute.xlu0 %1155
      %1157 = vrot.lane.b32.xlu0 %v554, 16
      %v1158 = vpop.permute.xlu0 %1157
      %1159 = vrot.lane.b32.xlu0 %v555, 16
      %v1160 = vpop.permute.xlu0 %1159
      %1161 = vrot.lane.b32.xlu0 %v556, 16
      %v1162 = vpop.permute.xlu0 %1161
      %1163 = vrot.lane.b32.xlu0 %v557, 16
      %v1164 = vpop.permute.xlu0 %1163
      %1165 = vrot.lane.b32.xlu0 %v558, 16
      %v1166 = vpop.permute.xlu0 %1165
      %1167 = vrot.lane.b32.xlu0 %v559, 16
      %v1168 = vpop.permute.xlu0 %1167
      %1233 = vrot.lane.b32.xlu0 %v560, 20
      %v1234 = vpop.permute.xlu0 %1233
      %1235 = vrot.lane.b32.xlu0 %v561, 20
      %v1236 = vpop.permute.xlu0 %1235
      %1237 = vrot.lane.b32.xlu0 %v562, 20
      %v1238 = vpop.permute.xlu0 %1237
      %1239 = vrot.lane.b32.xlu0 %v563, 20
      %v1240 = vpop.permute.xlu0 %1239
      %1241 = vrot.lane.b32.xlu0 %v564, 20
      %v1242 = vpop.permute.xlu0 %1241
      %1243 = vrot.lane.b32.xlu0 %v565, 20
      %v1244 = vpop.permute.xlu0 %1243
      %1245 = vrot.lane.b32.xlu0 %v566, 20
      %v1246 = vpop.permute.xlu0 %1245
      %1247 = vrot.lane.b32.xlu0 %v567, 20
      %v1248 = vpop.permute.xlu0 %1247
      %1249 = vrot.lane.b32.xlu0 %v568, 20
      %v1250 = vpop.permute.xlu0 %1249
      %1251 = vrot.lane.b32.xlu0 %v569, 20
      %v1252 = vpop.permute.xlu0 %1251
      %1253 = vrot.lane.b32.xlu0 %v570, 20
      %v1254 = vpop.permute.xlu0 %1253
      %1255 = vrot.lane.b32.xlu0 %v571, 20
      %v1256 = vpop.permute.xlu0 %1255
      %1257 = vrot.lane.b32.xlu0 %v572, 20
      %v1258 = vpop.permute.xlu0 %1257
      %1259 = vrot.lane.b32.xlu0 %v573, 20
      %v1260 = vpop.permute.xlu0 %1259
      %1261 = vrot.lane.b32.xlu0 %v574, 20
      %v1262 = vpop.permute.xlu0 %1261
      %1263 = vrot.lane.b32.xlu0 %v575, 20
      %v1264 = vpop.permute.xlu0 %1263
      %1265 = vrot.lane.b32.xlu0 %v576, 20
      %v1266 = vpop.permute.xlu0 %1265
      %1267 = vrot.lane.b32.xlu0 %v577, 20
      %v1268 = vpop.permute.xlu0 %1267
      %1269 = vrot.lane.b32.xlu0 %v578, 20
      %v1270 = vpop.permute.xlu0 %1269
      %1271 = vrot.lane.b32.xlu0 %v579, 20
      %v1272 = vpop.permute.xlu0 %1271
      %1273 = vrot.lane.b32.xlu0 %v580, 20
      %v1274 = vpop.permute.xlu0 %1273
      %1275 = vrot.lane.b32.xlu0 %v581, 20
      %v1276 = vpop.permute.xlu0 %1275
      %1277 = vrot.lane.b32.xlu0 %v582, 20
      %v1278 = vpop.permute.xlu0 %1277
      %1279 = vrot.lane.b32.xlu0 %v583, 20
      %v1280 = vpop.permute.xlu0 %1279
      %1281 = vrot.lane.b32.xlu0 %v584, 20
      %v1282 = vpop.permute.xlu0 %1281
      %1283 = vrot.lane.b32.xlu0 %v585, 20
      %v1284 = vpop.permute.xlu0 %1283
      %1285 = vrot.lane.b32.xlu0 %v586, 20
      %v1286 = vpop.permute.xlu0 %1285
      %1287 = vrot.lane.b32.xlu0 %v587, 20
      %v1288 = vpop.permute.xlu0 %1287
      %1289 = vrot.lane.b32.xlu0 %v588, 20
      %v1290 = vpop.permute.xlu0 %1289
      %1291 = vrot.lane.b32.xlu0 %v589, 20
      %v1292 = vpop.permute.xlu0 %1291
      %1293 = vrot.lane.b32.xlu0 %v590, 20
      %v1294 = vpop.permute.xlu0 %1293
      %1295 = vrot.lane.b32.xlu0 %v591, 20
      %v1296 = vpop.permute.xlu0 %1295
      %1361 = vrot.lane.b32.xlu0 %v593, 24
      %v1362 = vpop.permute.xlu0 %1361
      %1363 = vrot.lane.b32.xlu0 %v594, 24
      %v1364 = vpop.permute.xlu0 %1363
      %1365 = vrot.lane.b32.xlu0 %v595, 24
      %v1366 = vpop.permute.xlu0 %1365
      %1367 = vrot.lane.b32.xlu0 %v596, 24
      %v1368 = vpop.permute.xlu0 %1367
      %1369 = vrot.lane.b32.xlu0 %v597, 24
      %v1370 = vpop.permute.xlu0 %1369
      %1371 = vrot.lane.b32.xlu0 %v598, 24
      %v1372 = vpop.permute.xlu0 %1371
      %1373 = vrot.lane.b32.xlu0 %v599, 24
      %v1374 = vpop.permute.xlu0 %1373
      %1375 = vrot.lane.b32.xlu0 %v600, 24
      %v1376 = vpop.permute.xlu0 %1375
      %1377 = vrot.lane.b32.xlu0 %v601, 24
      %v1378 = vpop.permute.xlu0 %1377
      %1379 = vrot.lane.b32.xlu0 %v602, 24
      %v1380 = vpop.permute.xlu0 %1379
      %1381 = vrot.lane.b32.xlu0 %v603, 24
      %v1382 = vpop.permute.xlu0 %1381
      %1383 = vrot.lane.b32.xlu0 %v604, 24
      %v1384 = vpop.permute.xlu0 %1383
      %1385 = vrot.lane.b32.xlu0 %v605, 24
      %v1386 = vpop.permute.xlu0 %1385
      %1387 = vrot.lane.b32.xlu0 %v606, 24
      %v1388 = vpop.permute.xlu0 %1387
      %1389 = vrot.lane.b32.xlu0 %v607, 24
      %v1390 = vpop.permute.xlu0 %1389
      %1391 = vrot.lane.b32.xlu0 %v608, 24
      %v1392 = vpop.permute.xlu0 %1391
      %1393 = vrot.lane.b32.xlu0 %v609, 24
      %v1394 = vpop.permute.xlu0 %1393
      %1395 = vrot.lane.b32.xlu0 %v610, 24
      %v1396 = vpop.permute.xlu0 %1395
      %1397 = vrot.lane.b32.xlu0 %v611, 24
      %v1398 = vpop.permute.xlu0 %1397
      %1399 = vrot.lane.b32.xlu0 %v612, 24
      %v1400 = vpop.permute.xlu0 %1399
      %1401 = vrot.lane.b32.xlu0 %v613, 24
      %v1402 = vpop.permute.xlu0 %1401
      %1403 = vrot.lane.b32.xlu0 %v614, 24
      %v1404 = vpop.permute.xlu0 %1403
      %1405 = vrot.lane.b32.xlu0 %v615, 24
      %v1406 = vpop.permute.xlu0 %1405
      %1407 = vrot.lane.b32.xlu0 %v616, 24
      %v1408 = vpop.permute.xlu0 %1407
      %1409 = vrot.lane.b32.xlu0 %v617, 24
      %v1410 = vpop.permute.xlu0 %1409
      %1411 = vrot.lane.b32.xlu0 %v618, 24
      %v1412 = vpop.permute.xlu0 %1411
      %1413 = vrot.lane.b32.xlu0 %v619, 24
      %v1414 = vpop.permute.xlu0 %1413
      %1415 = vrot.lane.b32.xlu0 %v620, 24
      %v1416 = vpop.permute.xlu0 %1415
      %1417 = vrot.lane.b32.xlu0 %v621, 24
      %v1418 = vpop.permute.xlu0 %1417
      %1419 = vrot.lane.b32.xlu0 %v622, 24
      %v1420 = vpop.permute.xlu0 %1419
      %1421 = vrot.lane.b32.xlu0 %v623, 24
      %v1422 = vpop.permute.xlu0 %1421
      %1423 = vrot.lane.b32.xlu0 %v624, 24
      %v1424 = vpop.permute.xlu0 %1423
      %1489 = vrot.lane.b32.xlu0 %v625, 28
      %v1490 = vpop.permute.xlu0 %1489
      %1491 = vrot.lane.b32.xlu0 %v626, 28
      %v1492 = vpop.permute.xlu0 %1491
      %1493 = vrot.lane.b32.xlu0 %v627, 28
      %v1494 = vpop.permute.xlu0 %1493
      %1495 = vrot.lane.b32.xlu0 %v628, 28
      %v1496 = vpop.permute.xlu0 %1495
      %1497 = vrot.lane.b32.xlu0 %v629, 28
      %v1498 = vpop.permute.xlu0 %1497
      %1499 = vrot.lane.b32.xlu0 %v630, 28
      %v1500 = vpop.permute.xlu0 %1499
      %1501 = vrot.lane.b32.xlu0 %v631, 28
      %v1502 = vpop.permute.xlu0 %1501
      %1503 = vrot.lane.b32.xlu0 %v632, 28
      %v1504 = vpop.permute.xlu0 %1503
      %1505 = vrot.lane.b32.xlu0 %v633, 28
      %v1506 = vpop.permute.xlu0 %1505
      %1507 = vrot.lane.b32.xlu0 %v634, 28
      %v1508 = vpop.permute.xlu0 %1507
      %1509 = vrot.lane.b32.xlu0 %v635, 28
      %v1510 = vpop.permute.xlu0 %1509
      %1511 = vrot.lane.b32.xlu0 %v636, 28
      %v1512 = vpop.permute.xlu0 %1511
      %1513 = vrot.lane.b32.xlu0 %v637, 28
      %v1514 = vpop.permute.xlu0 %1513
      %1515 = vrot.lane.b32.xlu0 %v638, 28
      %v1516 = vpop.permute.xlu0 %1515
      %1517 = vrot.lane.b32.xlu0 %v639, 28
      %v1518 = vpop.permute.xlu0 %1517
      %1519 = vrot.lane.b32.xlu0 %v640, 28
      %v1520 = vpop.permute.xlu0 %1519
      %1521 = vrot.lane.b32.xlu0 %v641, 28
      %v1522 = vpop.permute.xlu0 %1521
      %1523 = vrot.lane.b32.xlu0 %v642, 28
      %v1524 = vpop.permute.xlu0 %1523
      %1525 = vrot.lane.b32.xlu0 %v643, 28
      %v1526 = vpop.permute.xlu0 %1525
      %1527 = vrot.lane.b32.xlu0 %v644, 28
      %v1528 = vpop.permute.xlu0 %1527
      %1529 = vrot.lane.b32.xlu0 %v645, 28
      %v1530 = vpop.permute.xlu0 %1529
      %1531 = vrot.lane.b32.xlu0 %v646, 28
      %v1532 = vpop.permute.xlu0 %1531
      %1533 = vrot.lane.b32.xlu0 %v647, 28
      %v1534 = vpop.permute.xlu0 %1533
      %1535 = vrot.lane.b32.xlu0 %v648, 28
      %v1536 = vpop.permute.xlu0 %1535
      %1537 = vrot.lane.b32.xlu0 %v649, 28
      %v1538 = vpop.permute.xlu0 %1537
      %1539 = vrot.lane.b32.xlu0 %v650, 28
      %v1540 = vpop.permute.xlu0 %1539
      %1541 = vrot.lane.b32.xlu0 %v651, 28
      %v1542 = vpop.permute.xlu0 %1541
      %1543 = vrot.lane.b32.xlu0 %v652, 28
      %v1544 = vpop.permute.xlu0 %1543
      %1545 = vrot.lane.b32.xlu0 %v653, 28
      %v1546 = vpop.permute.xlu0 %1545
      %1547 = vrot.lane.b32.xlu0 %v654, 28
      %v1548 = vpop.permute.xlu0 %1547
      %1549 = vrot.lane.b32.xlu0 %v655, 28
      %v1550 = vpop.permute.xlu0 %1549
      %1551 = vrot.lane.b32.xlu0 %v656, 28
      %v1552 = vpop.permute.xlu0 %1551
      %1617 = vrot.lane.b32.xlu0 %v657, 32
      %v1618 = vpop.permute.xlu0 %1617
      %1619 = vrot.lane.b32.xlu0 %v658, 32
      %v1620 = vpop.permute.xlu0 %1619
      %1621 = vrot.lane.b32.xlu0 %v659, 32
      %v1622 = vpop.permute.xlu0 %1621
      %1623 = vrot.lane.b32.xlu0 %v660, 32
      %v1624 = vpop.permute.xlu0 %1623
      %1625 = vrot.lane.b32.xlu0 %v661, 32
      %v1626 = vpop.permute.xlu0 %1625
      %1627 = vrot.lane.b32.xlu0 %v662, 32
      %v1628 = vpop.permute.xlu0 %1627
      %1629 = vrot.lane.b32.xlu0 %v663, 32
      %v1630 = vpop.permute.xlu0 %1629
      %1631 = vrot.lane.b32.xlu0 %v664, 32
      %v1632 = vpop.permute.xlu0 %1631
      %1633 = vrot.lane.b32.xlu0 %v665, 32
      %v1634 = vpop.permute.xlu0 %1633
      %1635 = vrot.lane.b32.xlu0 %v666, 32
      %v1636 = vpop.permute.xlu0 %1635
      %1637 = vrot.lane.b32.xlu0 %v667, 32
      %v1638 = vpop.permute.xlu0 %1637
      %1639 = vrot.lane.b32.xlu0 %v668, 32
      %v1640 = vpop.permute.xlu0 %1639
      %1641 = vrot.lane.b32.xlu0 %v669, 32
      %v1642 = vpop.permute.xlu0 %1641
      %1643 = vrot.lane.b32.xlu0 %v670, 32
      %v1644 = vpop.permute.xlu0 %1643
      %1645 = vrot.lane.b32.xlu0 %v671, 32
      %v1646 = vpop.permute.xlu0 %1645
      %1647 = vrot.lane.b32.xlu0 %v672, 32
      %v1648 = vpop.permute.xlu0 %1647
      %1649 = vrot.lane.b32.xlu0 %v673, 32
      %v1650 = vpop.permute.xlu0 %1649
      %1651 = vrot.lane.b32.xlu0 %v674, 32
      %v1652 = vpop.permute.xlu0 %1651
      %1653 = vrot.lane.b32.xlu0 %v675, 32
      %v1654 = vpop.permute.xlu0 %1653
      %1655 = vrot.lane.b32.xlu0 %v676, 32
      %v1656 = vpop.permute.xlu0 %1655
      %1657 = vrot.lane.b32.xlu0 %v677, 32
      %v1658 = vpop.permute.xlu0 %1657
      %1659 = vrot.lane.b32.xlu0 %v678, 32
      %v1660 = vpop.permute.xlu0 %1659
      %1661 = vrot.lane.b32.xlu0 %v679, 32
      %v1662 = vpop.permute.xlu0 %1661
      %1663 = vrot.lane.b32.xlu0 %v680, 32
      %v1664 = vpop.permute.xlu0 %1663
      %1665 = vrot.lane.b32.xlu0 %v681, 32
      %v1666 = vpop.permute.xlu0 %1665
      %1667 = vrot.lane.b32.xlu0 %v682, 32
      %v1668 = vpop.permute.xlu0 %1667
      %1669 = vrot.lane.b32.xlu0 %v683, 32
      %v1670 = vpop.permute.xlu0 %1669
      %1671 = vrot.lane.b32.xlu0 %v684, 32
      %v1672 = vpop.permute.xlu0 %1671
      %1673 = vrot.lane.b32.xlu0 %v685, 32
      %v1674 = vpop.permute.xlu0 %1673
      %1675 = vrot.lane.b32.xlu0 %v686, 32
      %v1676 = vpop.permute.xlu0 %1675
      %1677 = vrot.lane.b32.xlu0 %v687, 32
      %v1678 = vpop.permute.xlu0 %1677
      %1679 = vrot.lane.b32.xlu0 %v688, 32
      %v1680 = vpop.permute.xlu0 %1679
      %v1713 = vsel %vm279, %v400, %v722
      %v1714 = vsel %vm279, %v401, %v724
      %v1715 = vsel %vm279, %v402, %v726
      %v1716 = vsel %vm279, %v403, %v728
      %v1717 = vsel %vm279, %v404, %v730
      %v1718 = vsel %vm279, %v405, %v732
      %v1719 = vsel %vm279, %v406, %v734
      %v1720 = vsel %vm279, %v407, %v736
      %v1721 = vsel %vm279, %v408, %v738
      %v1722 = vsel %vm279, %v409, %v740
      %v1723 = vsel %vm279, %v410, %v742
      %v1724 = vsel %vm279, %v411, %v744
      %v1725 = vsel %vm279, %v412, %v746
      %v1726 = vsel %vm279, %v413, %v748
      %v1727 = vsel %vm279, %v414, %v750
      %v1728 = vsel %vm279, %v415, %v752
      %v1729 = vsel %vm279, %v416, %v754
      %v1730 = vsel %vm279, %v417, %v756
      %v1731 = vsel %vm279, %v418, %v758
      %v1732 = vsel %vm279, %v419, %v760
      %v1733 = vsel %vm279, %v420, %v762
      %v1734 = vsel %vm279, %v421, %v764
      %v1735 = vsel %vm279, %v422, %v766
      %v1736 = vsel %vm279, %v423, %v768
      %v1737 = vsel %vm279, %v424, %v770
      %v1738 = vsel %vm279, %v425, %v772
      %v1739 = vsel %vm279, %v426, %v774
      %v1740 = vsel %vm279, %v427, %v776
      %v1741 = vsel %vm279, %v428, %v778
      %v1742 = vsel %vm279, %v429, %v780
      %v1743 = vsel %vm279, %v430, %v782
      %v1744 = vsel %vm279, %v431, %v784
      %vm1745 = vcmask 64512
      %v1746 = vsel %vm1745, %v1713, %v850
      %v1747 = vsel %vm1745, %v1714, %v852
      %v1748 = vsel %vm1745, %v1715, %v854
      %v1749 = vsel %vm1745, %v1716, %v856
      %v1750 = vsel %vm1745, %v1717, %v858
      %v1751 = vsel %vm1745, %v1718, %v860
      %v1752 = vsel %vm1745, %v1719, %v862
      %v1753 = vsel %vm1745, %v1720, %v864
      %v1754 = vsel %vm1745, %v1721, %v866
      %v1755 = vsel %vm1745, %v1722, %v868
      %v1756 = vsel %vm1745, %v1723, %v870
      %v1757 = vsel %vm1745, %v1724, %v872
      %v1758 = vsel %vm1745, %v1725, %v874
      %v1759 = vsel %vm1745, %v1726, %v876
      %v1760 = vsel %vm1745, %v1727, %v878
      %v1761 = vsel %vm1745, %v1728, %v880
      %v1762 = vsel %vm1745, %v1729, %v882
      %v1763 = vsel %vm1745, %v1730, %v884
      %v1764 = vsel %vm1745, %v1731, %v886
      %v1765 = vsel %vm1745, %v1732, %v888
      %v1766 = vsel %vm1745, %v1733, %v890
      %v1767 = vsel %vm1745, %v1734, %v892
      %v1768 = vsel %vm1745, %v1735, %v894
      %v1769 = vsel %vm1745, %v1736, %v896
      %v1770 = vsel %vm1745, %v1737, %v898
      %v1771 = vsel %vm1745, %v1738, %v900
      %v1772 = vsel %vm1745, %v1739, %v902
      %v1773 = vsel %vm1745, %v1740, %v904
      %v1774 = vsel %vm1745, %v1741, %v906
      %v1775 = vsel %vm1745, %v1742, %v908
      %v1776 = vsel %vm1745, %v1743, %v910
      %v1777 = vsel %vm1745, %v1744, %v912
      %vm1778 = vcmask 97280
      %v1779 = vsel %vm1778, %v1746, %v978
      %v1780 = vsel %vm1778, %v1747, %v980
      %v1781 = vsel %vm1778, %v1748, %v982
      %v1782 = vsel %vm1778, %v1749, %v984
      %v1783 = vsel %vm1778, %v1750, %v986
      %v1784 = vsel %vm1778, %v1751, %v988
      %v1785 = vsel %vm1778, %v1752, %v990
      %v1786 = vsel %vm1778, %v1753, %v992
      %v1787 = vsel %vm1778, %v1754, %v994
      %v1788 = vsel %vm1778, %v1755, %v996
      %v1789 = vsel %vm1778, %v1756, %v998
      %v1790 = vsel %vm1778, %v1757, %v1000
      %v1791 = vsel %vm1778, %v1758, %v1002
      %v1792 = vsel %vm1778, %v1759, %v1004
      %v1793 = vsel %vm1778, %v1760, %v1006
      %v1794 = vsel %vm1778, %v1761, %v1008
      %v1795 = vsel %vm1778, %v1762, %v1010
      %v1796 = vsel %vm1778, %v1763, %v1012
      %v1797 = vsel %vm1778, %v1764, %v1014
      %v1798 = vsel %vm1778, %v1765, %v1016
      %v1799 = vsel %vm1778, %v1766, %v1018
      %v1800 = vsel %vm1778, %v1767, %v1020
      %v1801 = vsel %vm1778, %v1768, %v1022
      %v1802 = vsel %vm1778, %v1769, %v1024
      %v1803 = vsel %vm1778, %v1770, %v1026
      %v1804 = vsel %vm1778, %v1771, %v1028
      %v1805 = vsel %vm1778, %v1772, %v1030
      %v1806 = vsel %vm1778, %v1773, %v1032
      %v1807 = vsel %vm1778, %v1774, %v1034
      %v1808 = vsel %vm1778, %v1775, %v1036
      %v1809 = vsel %vm1778, %v1776, %v1038
      %v1810 = vsel %vm1778, %v1777, %v1040
      %vm1811 = vcmask 130048
      %v1812 = vsel %vm1811, %v1779, %v1106
      %v1813 = vsel %vm1811, %v1780, %v1108
      %v1814 = vsel %vm1811, %v1781, %v1110
      %v1815 = vsel %vm1811, %v1782, %v1112
      %v1816 = vsel %vm1811, %v1783, %v1114
      %v1817 = vsel %vm1811, %v1784, %v1116
      %v1818 = vsel %vm1811, %v1785, %v1118
      %v1819 = vsel %vm1811, %v1786, %v1120
      %v1820 = vsel %vm1811, %v1787, %v1122
      %v1821 = vsel %vm1811, %v1788, %v1124
      %v1822 = vsel %vm1811, %v1789, %v1126
      %v1823 = vsel %vm1811, %v1790, %v1128
      %v1824 = vsel %vm1811, %v1791, %v1130
      %v1825 = vsel %vm1811, %v1792, %v1132
      %v1826 = vsel %vm1811, %v1793, %v1134
      %v1827 = vsel %vm1811, %v1794, %v1136
      %v1828 = vsel %vm1811, %v1795, %v1138
      %v1829 = vsel %vm1811, %v1796, %v1140
      %v1830 = vsel %vm1811, %v1797, %v1142
      %v1831 = vsel %vm1811, %v1798, %v1144
      %v1832 = vsel %vm1811, %v1799, %v1146
      %v1833 = vsel %vm1811, %v1800, %v1148
      %v1834 = vsel %vm1811, %v1801, %v1150
      %v1835 = vsel %vm1811, %v1802, %v1152
      %v1836 = vsel %vm1811, %v1803, %v1154
      %v1837 = vsel %vm1811, %v1804, %v1156
      %v1838 = vsel %vm1811, %v1805, %v1158
      %v1839 = vsel %vm1811, %v1806, %v1160
      %v1840 = vsel %vm1811, %v1807, %v1162
      %v1841 = vsel %vm1811, %v1808, %v1164
      %v1842 = vsel %vm1811, %v1809, %v1166
      %v1843 = vsel %vm1811, %v1810, %v1168
      %vm1844 = vcmask 162816
      %v1845 = vsel %vm1844, %v1812, %v1234
      %v1846 = vsel %vm1844, %v1813, %v1236
      %v1847 = vsel %vm1844, %v1814, %v1238
      %v1848 = vsel %vm1844, %v1815, %v1240
      %v1849 = vsel %vm1844, %v1816, %v1242
      %v1850 = vsel %vm1844, %v1817, %v1244
      %v1851 = vsel %vm1844, %v1818, %v1246
      %v1852 = vsel %vm1844, %v1819, %v1248
      %v1853 = vsel %vm1844, %v1820, %v1250
      %v1854 = vsel %vm1844, %v1821, %v1252
      %v1855 = vsel %vm1844, %v1822, %v1254
      %v1856 = vsel %vm1844, %v1823, %v1256
      %v1857 = vsel %vm1844, %v1824, %v1258
      %v1858 = vsel %vm1844, %v1825, %v1260
      %v1859 = vsel %vm1844, %v1826, %v1262
      %v1860 = vsel %vm1844, %v1827, %v1264
      %v1861 = vsel %vm1844, %v1828, %v1266
      %v1862 = vsel %vm1844, %v1829, %v1268
      %v1863 = vsel %vm1844, %v1830, %v1270
      %v1864 = vsel %vm1844, %v1831, %v1272
      %v1865 = vsel %vm1844, %v1832, %v1274
      %v1866 = vsel %vm1844, %v1833, %v1276
      %v1867 = vsel %vm1844, %v1834, %v1278
      %v1868 = vsel %vm1844, %v1835, %v1280
      %v1869 = vsel %vm1844, %v1836, %v1282
      %v1870 = vsel %vm1844, %v1837, %v1284
      %v1871 = vsel %vm1844, %v1838, %v1286
      %v1872 = vsel %vm1844, %v1839, %v1288
      %v1873 = vsel %vm1844, %v1840, %v1290
      %v1874 = vsel %vm1844, %v1841, %v1292
      %v1875 = vsel %vm1844, %v1842, %v1294
      %v1876 = vsel %vm1844, %v1843, %v1296
      %vm1877 = vcmask 195584
      %v1878 = vsel %vm1877, %v1845, %v1362
      %v1879 = vsel %vm1877, %v1846, %v1364
      %v1880 = vsel %vm1877, %v1847, %v1366
      %v1881 = vsel %vm1877, %v1848, %v1368
      %v1882 = vsel %vm1877, %v1849, %v1370
      %v1883 = vsel %vm1877, %v1850, %v1372
      %v1884 = vsel %vm1877, %v1851, %v1374
      %v1885 = vsel %vm1877, %v1852, %v1376
      %v1886 = vsel %vm1877, %v1853, %v1378
      %v1887 = vsel %vm1877, %v1854, %v1380
      %v1888 = vsel %vm1877, %v1855, %v1382
      %v1889 = vsel %vm1877, %v1856, %v1384
      %v1890 = vsel %vm1877, %v1857, %v1386
      %v1891 = vsel %vm1877, %v1858, %v1388
      %v1892 = vsel %vm1877, %v1859, %v1390
      %v1893 = vsel %vm1877, %v1860, %v1392
      %v1894 = vsel %vm1877, %v1861, %v1394
      %v1895 = vsel %vm1877, %v1862, %v1396
      %v1896 = vsel %vm1877, %v1863, %v1398
      %v1897 = vsel %vm1877, %v1864, %v1400
      %v1898 = vsel %vm1877, %v1865, %v1402
      %v1899 = vsel %vm1877, %v1866, %v1404
      %v1900 = vsel %vm1877, %v1867, %v1406
      %v1901 = vsel %vm1877, %v1868, %v1408
      %v1902 = vsel %vm1877, %v1869, %v1410
      %v1903 = vsel %vm1877, %v1870, %v1412
      %v1904 = vsel %vm1877, %v1871, %v1414
      %v1905 = vsel %vm1877, %v1872, %v1416
      %v1906 = vsel %vm1877, %v1873, %v1418
      %v1907 = vsel %vm1877, %v1874, %v1420
      %v1908 = vsel %vm1877, %v1875, %v1422
      %v1909 = vsel %vm1877, %v1876, %v1424
      %vm1910 = vcmask 228352
      %v1911 = vsel %vm1910, %v1878, %v1490
      %v1912 = vsel %vm1910, %v1879, %v1492
      %v1913 = vsel %vm1910, %v1880, %v1494
      %v1914 = vsel %vm1910, %v1881, %v1496
      %v1915 = vsel %vm1910, %v1882, %v1498
      %v1916 = vsel %vm1910, %v1883, %v1500
      %v1917 = vsel %vm1910, %v1884, %v1502
      %v1918 = vsel %vm1910, %v1885, %v1504
      %v1919 = vsel %vm1910, %v1886, %v1506
      %v1920 = vsel %vm1910, %v1887, %v1508
      %v1921 = vsel %vm1910, %v1888, %v1510
      %v1922 = vsel %vm1910, %v1889, %v1512
      %v1923 = vsel %vm1910, %v1890, %v1514
      %v1924 = vsel %vm1910, %v1891, %v1516
      %v1925 = vsel %vm1910, %v1892, %v1518
      %v1926 = vsel %vm1910, %v1893, %v1520
      %v1927 = vsel %vm1910, %v1894, %v1522
      %v1928 = vsel %vm1910, %v1895, %v1524
      %v1929 = vsel %vm1910, %v1896, %v1526
      %v1930 = vsel %vm1910, %v1897, %v1528
      %v1931 = vsel %vm1910, %v1898, %v1530
      %v1932 = vsel %vm1910, %v1899, %v1532
      %v1933 = vsel %vm1910, %v1900, %v1534
      %v1934 = vsel %vm1910, %v1901, %v1536
      %v1935 = vsel %vm1910, %v1902, %v1538
      %v1936 = vsel %vm1910, %v1903, %v1540
      %v1937 = vsel %vm1910, %v1904, %v1542
      %v1938 = vsel %vm1910, %v1905, %v1544
      %v1939 = vsel %vm1910, %v1906, %v1546
      %v1940 = vsel %vm1910, %v1907, %v1548
      %v1941 = vsel %vm1910, %v1908, %v1550
      %v1942 = vsel %vm1910, %v1909, %v1552
      %vm1943 = vcmask 261120
      %v1944 = vsel %vm1943, %v1911, %v1618
      %v1945 = vsel %vm1943, %v1912, %v1620
      %v1946 = vsel %vm1943, %v1913, %v1622
      %v1947 = vsel %vm1943, %v1914, %v1624
      %v1948 = vsel %vm1943, %v1915, %v1626
      %v1949 = vsel %vm1943, %v1916, %v1628
      %v1950 = vsel %vm1943, %v1917, %v1630
      %v1951 = vsel %vm1943, %v1918, %v1632
      %v1952 = vsel %vm1943, %v1919, %v1634
      %v1953 = vsel %vm1943, %v1920, %v1636
      %v1954 = vsel %vm1943, %v1921, %v1638
      %v1955 = vsel %vm1943, %v1922, %v1640
      %v1956 = vsel %vm1943, %v1923, %v1642
      %v1957 = vsel %vm1943, %v1924, %v1644
      %v1958 = vsel %vm1943, %v1925, %v1646
      %v1959 = vsel %vm1943, %v1926, %v1648
      %v1960 = vsel %vm1943, %v1927, %v1650
      %v1961 = vsel %vm1943, %v1928, %v1652
      %v1962 = vsel %vm1943, %v1929, %v1654
      %v1963 = vsel %vm1943, %v1930, %v1656
      %v1964 = vsel %vm1943, %v1931, %v1658
      %v1965 = vsel %vm1943, %v1932, %v1660
      %v1966 = vsel %vm1943, %v1933, %v1662
      %v1967 = vsel %vm1943, %v1934, %v1664
      %v1968 = vsel %vm1943, %v1935, %v1666
      %v1969 = vsel %vm1943, %v1936, %v1668
      %v1970 = vsel %vm1943, %v1937, %v1670
      %v1971 = vsel %vm1943, %v1938, %v1672
      %v1972 = vsel %vm1943, %v1939, %v1674
      %v1973 = vsel %vm1943, %v1940, %v1676
      %v1974 = vsel %vm1943, %v1941, %v1678
      %v1975 = vsel %vm1943, %v1942, %v1680
      %v1976 = vld [vmem:[%s1] sm:$0xff]
      %v1977 = vld [vmem:[%s1 + $0x8] sm:$0xff]
      %v1978 = vld [vmem:[%s1 + $0x10] sm:$0xff]
      %v1979 = vld [vmem:[%s1 + $0x18] sm:$0xff]
      %v1980 = vld [vmem:[%s1 + $0x20] sm:$0xf]
      %vm1981 = vcmask 293888
      %v1983 = vsel %vm1981, %v1944, 0
      %v1986 = vsel %vm1981, %v1945, 0
      %v1989 = vsel %vm1981, %v1946, 0
      %v1992 = vsel %vm1981, %v1947, 0
      %v1995 = vsel %vm1981, %v1948, 0
      %v1998 = vsel %vm1981, %v1949, 0
      %v2001 = vsel %vm1981, %v1950, 0
      %v2004 = vsel %vm1981, %v1951, 0
      %v2007 = vsel %vm1981, %v1952, 0
      %v2010 = vsel %vm1981, %v1953, 0
      %v2013 = vsel %vm1981, %v1954, 0
      %v2016 = vsel %vm1981, %v1955, 0
      %v2019 = vsel %vm1981, %v1956, 0
      %v2022 = vsel %vm1981, %v1957, 0
      %v2025 = vsel %vm1981, %v1958, 0
      %v2028 = vsel %vm1981, %v1959, 0
      %v2031 = vsel %vm1981, %v1960, 0
      %v2034 = vsel %vm1981, %v1961, 0
      %v2037 = vsel %vm1981, %v1962, 0
      %v2040 = vsel %vm1981, %v1963, 0
      %v2043 = vsel %vm1981, %v1964, 0
      %v2046 = vsel %vm1981, %v1965, 0
      %v2049 = vsel %vm1981, %v1966, 0
      %v2052 = vsel %vm1981, %v1967, 0
      %v2055 = vsel %vm1981, %v1968, 0
      %v2058 = vsel %vm1981, %v1969, 0
      %v2061 = vsel %vm1981, %v1970, 0
      %v2064 = vsel %vm1981, %v1971, 0
      %v2067 = vsel %vm1981, %v1972, 0
      %v2070 = vsel %vm1981, %v1973, 0
      %v2073 = vsel %vm1981, %v1974, 0
      %v2076 = vsel %vm1981, %v1975, 0
      %vm2078 = vcmask 1043456
      %v2080 = vsel %vm2078, %v1980, 0
      %2082 = vmatprep.subr.mxu0 0.0
      %2083 = vmatpush1.msra.mxu0 %v1976
      %2084 = vmatprep.subr.mxu0 0.0
      %2085 = vmatpush1.msra.mxu0 %v1977
      %2086 = vmatprep.subr.mxu0 0.0
      %2087 = vmatpush1.msra.mxu0 %v1978
      %2088 = vmatprep.subr.mxu0 0.0
      %2089 = vmatpush1.msra.mxu0 %v1979
      %2090 = vmatprep.subr.mxu0 0.0
      %2091 = vmatpush1.msra.mxu0 %v2080
      %2092 = vmatprep.subr.mxu0 0.0
      %2093 = vmatpush1.msra.mxu0 0.0
      %2094 = vmatprep.subr.mxu0 0.0
      %2095 = vmatpush1.msra.mxu0 0.0
      %2096 = vmatprep.subr.mxu0 0.0
      %2097 = vmatpush1.msra.mxu0 0.0
      %2098 = vmatprep.subr.mxu0 0.0
      %2099 = vmatpush1.msra.mxu0 0.0
      %2100 = vmatprep.subr.mxu0 0.0
      %2101 = vmatpush1.msra.mxu0 0.0
      %2102 = vmatprep.subr.mxu0 0.0
      %2103 = vmatpush1.msra.mxu0 0.0
      %2104 = vmatprep.subr.mxu0 0.0
      %2105 = vmatpush1.msra.mxu0 0.0
      %2106 = vmatprep.subr.mxu0 0.0
      %2107 = vmatpush1.msra.mxu0 0.0
      %2108 = vmatprep.subr.mxu0 0.0
      %2109 = vmatpush1.msra.mxu0 0.0
      %2110 = vmatprep.subr.mxu0 0.0
      %2111 = vmatpush1.msra.mxu0 0.0
      %2112 = vmatprep.subr.mxu0 0.0
      %2113 = vmatpush1.msra.mxu0 0.0
      %2114 = vmatprep.subr.mxu0 0.0
      %2115 = vmatpush1.msra.mxu0 0.0
      %2116 = vmatprep.subr.mxu0 0.0
      %2117 = vmatpush1.msra.mxu0 0.0
      %2118 = vmatprep.subr.mxu0 0.0
      %2119 = vmatpush1.msra.mxu0 0.0
      %2120 = vmatprep.subr.mxu0 0.0
      %2121 = vmatpush1.msra.mxu0 0.0
      %2122 = vmatprep.subr.mxu0 0.0
      %2123 = vmatpush1.msra.mxu0 0.0
      %2124 = vmatprep.subr.mxu0 0.0
      %2125 = vmatpush1.msra.mxu0 0.0
      %2126 = vmatprep.subr.mxu0 0.0
      %2127 = vmatpush1.msra.mxu0 0.0
      %2128 = vmatprep.subr.mxu0 0.0
      %2129 = vmatpush1.msra.mxu0 0.0
      %2130 = vmatprep.subr.mxu0 0.0
      %2131 = vmatpush1.msra.mxu0 0.0
      %2132 = vmatprep.subr.mxu0 0.0
      %2133 = vmatpush1.msra.mxu0 0.0
      %2134 = vmatprep.subr.mxu0 0.0
      %2135 = vmatpush1.msra.mxu0 0.0
      %2136 = vmatprep.subr.mxu0 0.0
      %2137 = vmatpush1.msra.mxu0 0.0
      %2138 = vmatprep.subr.mxu0 0.0
      %2139 = vmatpush1.msra.mxu0 0.0
      %2140 = vmatprep.subr.mxu0 0.0
      %2141 = vmatpush1.msra.mxu0 0.0
      %2142 = vmatprep.subr.mxu0 0.0
      %2143 = vmatpush1.msra.mxu0 0.0
      %2144 = vmatprep.subr.mxu0 0.0
      %2145 = vmatpush1.msra.mxu0 0.0
      %2146 = vmatprep.mubr.f32.mxu0 0.0
      %2147 = vmatmul.mubr.f32.gmra.mrb[0].mxu0 %v1983
      %v2148 = vpop.f32.mrb[0].mxu0
      %v2149 = vadd.f32 0.0, %v2148
      %v2150 = vpop.f32.mrb[0].mxu0
      %2151 = vmatprep.mubr.f32.mxu0 0.0
      %2152 = vmatmul.mubr.f32.gmra.mrb[0].mxu0 %v1986
      %v2153 = vpop.f32.mrb[0].mxu0
      %v2154 = vadd.f32 0.0, %v2153
      %v2155 = vpop.f32.mrb[0].mxu0
      %2156 = vmatprep.mubr.f32.mxu0 0.0
      %2157 = vmatmul.mubr.f32.gmra.mrb[0].mxu0 %v1989
      %v2158 = vpop.f32.mrb[0].mxu0
      %v2159 = vadd.f32 0.0, %v2158
      %v2160 = vpop.f32.mrb[0].mxu0
      %2161 = vmatprep.mubr.f32.mxu0 0.0
      %2162 = vmatmul.mubr.f32.gmra.mrb[0].mxu0 %v1992
      %v2163 = vpop.f32.mrb[0].mxu0
      %v2164 = vadd.f32 0.0, %v2163
      %v2165 = vpop.f32.mrb[0].mxu0
      %2166 = vmatprep.mubr.f32.mxu0 0.0
      %2167 = vmatmul.mubr.f32.gmra.mrb[0].mxu0 %v1995
      %v2168 = vpop.f32.mrb[0].mxu0
      %v2169 = vadd.f32 0.0, %v2168
      %v2170 = vpop.f32.mrb[0].mxu0
      %2171 = vmatprep.mubr.f32.mxu0 0.0
      %2172 = vmatmul.mubr.f32.gmra.mrb[0].mxu0 %v1998
      %v2173 = vpop.f32.mrb[0].mxu0
      %v2174 = vadd.f32 0.0, %v2173
      %v2175 = vpop.f32.mrb[0].mxu0
      %2176 = vmatprep.mubr.f32.mxu0 0.0
      %2177 = vmatmul.mubr.f32.gmra.mrb[0].mxu0 %v2001
      %v2178 = vpop.f32.mrb[0].mxu0
      %v2179 = vadd.f32 0.0, %v2178
      %v2180 = vpop.f32.mrb[0].mxu0
      %2181 = vmatprep.mubr.f32.mxu0 0.0
      %2182 = vmatmul.mubr.f32.gmra.mrb[0].mxu0 %v2004
      %v2183 = vpop.f32.mrb[0].mxu0
      %v2184 = vadd.f32 0.0, %v2183
      %v2185 = vpop.f32.mrb[0].mxu0
      %2186 = vmatprep.mubr.f32.mxu0 0.0
      %2187 = vmatmul.mubr.f32.gmra.mrb[0].mxu0 %v2007
      %v2188 = vpop.f32.mrb[0].mxu0
      %v2189 = vadd.f32 0.0, %v2188
      %v2190 = vpop.f32.mrb[0].mxu0
      %2191 = vmatprep.mubr.f32.mxu0 0.0
      %2192 = vmatmul.mubr.f32.gmra.mrb[0].mxu0 %v2010
      %v2193 = vpop.f32.mrb[0].mxu0
      %v2194 = vadd.f32 0.0, %v2193
      %v2195 = vpop.f32.mrb[0].mxu0
      %2196 = vmatprep.mubr.f32.mxu0 0.0
      %2197 = vmatmul.mubr.f32.gmra.mrb[0].mxu0 %v2013
      %v2198 = vpop.f32.mrb[0].mxu0
      %v2199 = vadd.f32 0.0, %v2198
      %v2200 = vpop.f32.mrb[0].mxu0
      %2201 = vmatprep.mubr.f32.mxu0 0.0
      %2202 = vmatmul.mubr.f32.gmra.mrb[0].mxu0 %v2016
      %v2203 = vpop.f32.mrb[0].mxu0
      %v2204 = vadd.f32 0.0, %v2203
      %v2205 = vpop.f32.mrb[0].mxu0
      %2206 = vmatprep.mubr.f32.mxu0 0.0
      %2207 = vmatmul.mubr.f32.gmra.mrb[0].mxu0 %v2019
      %v2208 = vpop.f32.mrb[0].mxu0
      %v2209 = vadd.f32 0.0, %v2208
      %v2210 = vpop.f32.mrb[0].mxu0
      %2211 = vmatprep.mubr.f32.mxu0 0.0
      %2212 = vmatmul.mubr.f32.gmra.mrb[0].mxu0 %v2022
      %v2213 = vpop.f32.mrb[0].mxu0
      %v2214 = vadd.f32 0.0, %v2213
      %v2215 = vpop.f32.mrb[0].mxu0
      %2216 = vmatprep.mubr.f32.mxu0 0.0
      %2217 = vmatmul.mubr.f32.gmra.mrb[0].mxu0 %v2025
      %v2218 = vpop.f32.mrb[0].mxu0
      %v2219 = vadd.f32 0.0, %v2218
      %v2220 = vpop.f32.mrb[0].mxu0
      %2221 = vmatprep.mubr.f32.mxu0 0.0
      %2222 = vmatmul.mubr.f32.gmra.mrb[0].mxu0 %v2028
      %v2223 = vpop.f32.mrb[0].mxu0
      %v2224 = vadd.f32 0.0, %v2223
      %v2225 = vpop.f32.mrb[0].mxu0
      %2226 = vmatprep.mubr.f32.mxu0 0.0
      %2227 = vmatmul.mubr.f32.gmra.mrb[0].mxu0 %v2031
      %v2228 = vpop.f32.mrb[0].mxu0
      %v2229 = vadd.f32 0.0, %v2228
      %v2230 = vpop.f32.mrb[0].mxu0
      %2231 = vmatprep.mubr.f32.mxu0 0.0
      %2232 = vmatmul.mubr.f32.gmra.mrb[0].mxu0 %v2034
      %v2233 = vpop.f32.mrb[0].mxu0
      %v2234 = vadd.f32 0.0, %v2233
      %v2235 = vpop.f32.mrb[0].mxu0
      %2236 = vmatprep.mubr.f32.mxu0 0.0
      %2237 = vmatmul.mubr.f32.gmra.mrb[0].mxu0 %v2037
      %v2238 = vpop.f32.mrb[0].mxu0
      %v2239 = vadd.f32 0.0, %v2238
      %v2240 = vpop.f32.mrb[0].mxu0
      %2241 = vmatprep.mubr.f32.mxu0 0.0
      %2242 = vmatmul.mubr.f32.gmra.mrb[0].mxu0 %v2040
      %v2243 = vpop.f32.mrb[0].mxu0
      %v2244 = vadd.f32 0.0, %v2243
      %v2245 = vpop.f32.mrb[0].mxu0
      %2246 = vmatprep.mubr.f32.mxu0 0.0
      %2247 = vmatmul.mubr.f32.gmra.mrb[0].mxu0 %v2043
      %v2248 = vpop.f32.mrb[0].mxu0
      %v2249 = vadd.f32 0.0, %v2248
      %v2250 = vpop.f32.mrb[0].mxu0
      %2251 = vmatprep.mubr.f32.mxu0 0.0
      %2252 = vmatmul.mubr.f32.gmra.mrb[0].mxu0 %v2046
      %v2253 = vpop.f32.mrb[0].mxu0
      %v2254 = vadd.f32 0.0, %v2253
      %v2255 = vpop.f32.mrb[0].mxu0
      %2256 = vmatprep.mubr.f32.mxu0 0.0
      %2257 = vmatmul.mubr.f32.gmra.mrb[0].mxu0 %v2049
      %v2258 = vpop.f32.mrb[0].mxu0
      %v2259 = vadd.f32 0.0, %v2258
      %v2260 = vpop.f32.mrb[0].mxu0
      %2261 = vmatprep.mubr.f32.mxu0 0.0
      %2262 = vmatmul.mubr.f32.gmra.mrb[0].mxu0 %v2052
      %v2263 = vpop.f32.mrb[0].mxu0
      %v2264 = vadd.f32 0.0, %v2263
      %v2265 = vpop.f32.mrb[0].mxu0
      %2266 = vmatprep.mubr.f32.mxu0 0.0
      %2267 = vmatmul.mubr.f32.gmra.mrb[0].mxu0 %v2055
      %v2268 = vpop.f32.mrb[0].mxu0
      %v2269 = vadd.f32 0.0, %v2268
      %v2270 = vpop.f32.mrb[0].mxu0
      %2271 = vmatprep.mubr.f32.mxu0 0.0
      %2272 = vmatmul.mubr.f32.gmra.mrb[0].mxu0 %v2058
      %v2273 = vpop.f32.mrb[0].mxu0
      %v2274 = vadd.f32 0.0, %v2273
      %v2275 = vpop.f32.mrb[0].mxu0
      %2276 = vmatprep.mubr.f32.mxu0 0.0
      %2277 = vmatmul.mubr.f32.gmra.mrb[0].mxu0 %v2061
      %v2278 = vpop.f32.mrb[0].mxu0
      %v2279 = vadd.f32 0.0, %v2278
      %v2280 = vpop.f32.mrb[0].mxu0
      %2281 = vmatprep.mubr.f32.mxu0 0.0
      %2282 = vmatmul.mubr.f32.gmra.mrb[0].mxu0 %v2064
      %v2283 = vpop.f32.mrb[0].mxu0
      %v2284 = vadd.f32 0.0, %v2283
      %v2285 = vpop.f32.mrb[0].mxu0
      %2286 = vmatprep.mubr.f32.mxu0 0.0
      %2287 = vmatmul.mubr.f32.gmra.mrb[0].mxu0 %v2067
      %v2288 = vpop.f32.mrb[0].mxu0
      %v2289 = vadd.f32 0.0, %v2288
      %v2290 = vpop.f32.mrb[0].mxu0
      %2291 = vmatprep.mubr.f32.mxu0 0.0
      %2292 = vmatmul.mubr.f32.gmra.mrb[0].mxu0 %v2070
      %v2293 = vpop.f32.mrb[0].mxu0
      %v2294 = vadd.f32 0.0, %v2293
      %v2295 = vpop.f32.mrb[0].mxu0
      %2296 = vmatprep.mubr.f32.mxu0 0.0
      %2297 = vmatmul.mubr.f32.gmra.mrb[0].mxu0 %v2073
      %v2298 = vpop.f32.mrb[0].mxu0
      %v2299 = vadd.f32 0.0, %v2298
      %v2300 = vpop.f32.mrb[0].mxu0
      %2301 = vmatprep.mubr.f32.mxu0 0.0
      %2302 = vmatmul.mubr.f32.gmra.mrb[0].mxu0 %v2076
      %v2303 = vpop.f32.mrb[0].mxu0
      %v2304 = vadd.f32 0.0, %v2303
      %v2305 = vpop.f32.mrb[0].mxu0
      %2306 = vdwg.mxu0
      %v2307 = vld [vmem:[%s2] sm:$0x1]
      %v2309 = vlaneseq
      %v2310 = vshrl.u32 %v2309, 7
      %v2311 = vsub.s32 0, %v2310
      %v2312 = vrot.slane %v2307, %v2311
      %v2314 = vmul.f32 %v2149, %v2312
      %v2315 = vmul.f32 %v2154, %v2312
      %v2316 = vmul.f32 %v2159, %v2312
      %v2317 = vmul.f32 %v2164, %v2312
      %v2318 = vmul.f32 %v2169, %v2312
      %v2319 = vmul.f32 %v2174, %v2312
      %v2320 = vmul.f32 %v2179, %v2312
      %v2321 = vmul.f32 %v2184, %v2312
      %v2322 = vmul.f32 %v2189, %v2312
      %v2323 = vmul.f32 %v2194, %v2312
      %v2324 = vmul.f32 %v2199, %v2312
      %v2325 = vmul.f32 %v2204, %v2312
      %v2326 = vmul.f32 %v2209, %v2312
      %v2327 = vmul.f32 %v2214, %v2312
      %v2328 = vmul.f32 %v2219, %v2312
      %v2329 = vmul.f32 %v2224, %v2312
      %v2330 = vmul.f32 %v2229, %v2312
      %v2331 = vmul.f32 %v2234, %v2312
      %v2332 = vmul.f32 %v2239, %v2312
      %v2333 = vmul.f32 %v2244, %v2312
      %v2334 = vmul.f32 %v2249, %v2312
      %v2335 = vmul.f32 %v2254, %v2312
      %v2336 = vmul.f32 %v2259, %v2312
      %v2337 = vmul.f32 %v2264, %v2312
      %v2338 = vmul.f32 %v2269, %v2312
      %v2339 = vmul.f32 %v2274, %v2312
      %v2340 = vmul.f32 %v2279, %v2312
      %v2341 = vmul.f32 %v2284, %v2312
      %v2342 = vmul.f32 %v2289, %v2312
      %v2343 = vmul.f32 %v2294, %v2312
      %v2344 = vmul.f32 %v2299, %v2312
      %v2345 = vmul.f32 %v2304, %v2312
      %v2346 = vld [vmem:[%s3] sm:$0x1]
      %v2348 = vlaneseq
      %v2349 = vshrl.u32 %v2348, 7
      %v2350 = vsub.s32 0, %v2349
      %v2351 = vrot.slane %v2346, %v2350
      %v2353 = vadd.f32 %v2314, %v2351
      %v2354 = vadd.f32 %v2315, %v2351
      %v2355 = vadd.f32 %v2316, %v2351
      %v2356 = vadd.f32 %v2317, %v2351
      %v2357 = vadd.f32 %v2318, %v2351
      %v2358 = vadd.f32 %v2319, %v2351
      %v2359 = vadd.f32 %v2320, %v2351
      %v2360 = vadd.f32 %v2321, %v2351
      %v2361 = vadd.f32 %v2322, %v2351
      %v2362 = vadd.f32 %v2323, %v2351
      %v2363 = vadd.f32 %v2324, %v2351
      %v2364 = vadd.f32 %v2325, %v2351
      %v2365 = vadd.f32 %v2326, %v2351
      %v2366 = vadd.f32 %v2327, %v2351
      %v2367 = vadd.f32 %v2328, %v2351
      %v2368 = vadd.f32 %v2329, %v2351
      %v2369 = vadd.f32 %v2330, %v2351
      %v2370 = vadd.f32 %v2331, %v2351
      %v2371 = vadd.f32 %v2332, %v2351
      %v2372 = vadd.f32 %v2333, %v2351
      %v2373 = vadd.f32 %v2334, %v2351
      %v2374 = vadd.f32 %v2335, %v2351
      %v2375 = vadd.f32 %v2336, %v2351
      %v2376 = vadd.f32 %v2337, %v2351
      %v2377 = vadd.f32 %v2338, %v2351
      %v2378 = vadd.f32 %v2339, %v2351
      %v2379 = vadd.f32 %v2340, %v2351
      %v2380 = vadd.f32 %v2341, %v2351
      %v2381 = vadd.f32 %v2342, %v2351
      %v2382 = vadd.f32 %v2343, %v2351
      %v2383 = vadd.f32 %v2344, %v2351
      %v2384 = vadd.f32 %v2345, %v2351
      %v2385 = vmax.f32 %v2353, 0.0
      %v2386 = vmax.f32 %v2354, 0.0
      %v2387 = vmax.f32 %v2355, 0.0
      %v2388 = vmax.f32 %v2356, 0.0
      %v2389 = vmax.f32 %v2357, 0.0
      %v2390 = vmax.f32 %v2358, 0.0
      %v2391 = vmax.f32 %v2359, 0.0
      %v2392 = vmax.f32 %v2360, 0.0
      %v2393 = vmax.f32 %v2361, 0.0
      %v2394 = vmax.f32 %v2362, 0.0
      %v2395 = vmax.f32 %v2363, 0.0
      %v2396 = vmax.f32 %v2364, 0.0
      %v2397 = vmax.f32 %v2365, 0.0
      %v2398 = vmax.f32 %v2366, 0.0
      %v2399 = vmax.f32 %v2367, 0.0
      %v2400 = vmax.f32 %v2368, 0.0
      %v2401 = vmax.f32 %v2369, 0.0
      %v2402 = vmax.f32 %v2370, 0.0
      %v2403 = vmax.f32 %v2371, 0.0
      %v2404 = vmax.f32 %v2372, 0.0
      %v2405 = vmax.f32 %v2373, 0.0
      %v2406 = vmax.f32 %v2374, 0.0
      %v2407 = vmax.f32 %v2375, 0.0
      %v2408 = vmax.f32 %v2376, 0.0
      %v2409 = vmax.f32 %v2377, 0.0
      %v2410 = vmax.f32 %v2378, 0.0
      %v2411 = vmax.f32 %v2379, 0.0
      %v2412 = vmax.f32 %v2380, 0.0
      %v2413 = vmax.f32 %v2381, 0.0
      %v2414 = vmax.f32 %v2382, 0.0
      %v2415 = vmax.f32 %v2383, 0.0
      %v2416 = vmax.f32 %v2384, 0.0
      %2417 = vst.msk [vmem:[#allocation3] sm:$0xff] %vm1745, 0.0
      %2418 = vst.msk [vmem:[#allocation3 + $0x8] sm:$0xff] %vm1745, 0.0
      %vm2419 = vcmask 58368
      %2420 = vst.msk [vmem:[#allocation3 + $0x10] sm:$0x3] %vm2419, 0.0
      %2421 = vst.msk [vmem:[#allocation3 + $0x18] sm:$0xff] %vm1745, 0.0
      %2422 = vst.msk [vmem:[#allocation3 + $0x20] sm:$0xff] %vm1745, 0.0
      %2423 = vst.msk [vmem:[#allocation3 + $0x28] sm:$0x3] %vm2419, 0.0
      %2424 = vst.msk [vmem:[#allocation3 + $0x30] sm:$0xff] %vm1745, 0.0
      %2425 = vst.msk [vmem:[#allocation3 + $0x38] sm:$0xff] %vm1745, 0.0
      %2426 = vst.msk [vmem:[#allocation3 + $0x40] sm:$0x3] %vm2419, 0.0
      %2427 = vst.msk [vmem:[#allocation3 + $0x48] sm:$0xff] %vm1745, 0.0
      %2428 = vst.msk [vmem:[#allocation3 + $0x50] sm:$0xff] %vm1745, 0.0
      %2429 = vst.msk [vmem:[#allocation3 + $0x58] sm:$0x3] %vm2419, 0.0
      %2430 = vst.msk [vmem:[#allocation3 + $0x60] sm:$0xff] %vm1745, 0.0
      %2431 = vst.msk [vmem:[#allocation3 + $0x68] sm:$0xff] %vm1745, 0.0
      %2432 = vst.msk [vmem:[#allocation3 + $0x70] sm:$0x3] %vm2419, 0.0
      %2433 = vst.msk [vmem:[#allocation3 + $0x78] sm:$0xff] %vm1745, 0.0
      %2434 = vst.msk [vmem:[#allocation3 + $0x80] sm:$0xff] %vm1745, 0.0
      %2435 = vst.msk [vmem:[#allocation3 + $0x88] sm:$0x3] %vm2419, 0.0
      %2436 = vst.msk [vmem:[#allocation3 + $0x90] sm:$0xff] %vm1745, 0.0
      %2437 = vst.msk [vmem:[#allocation3 + $0x98] sm:$0xff] %vm1745, 0.0
      %2438 = vst.msk [vmem:[#allocation3 + $0xa0] sm:$0x3] %vm2419, 0.0
      %2439 = vst.msk [vmem:[#allocation3 + $0xa8] sm:$0xff] %vm1745, 0.0
      %2440 = vst.msk [vmem:[#allocation3 + $0xb0] sm:$0xff] %vm1745, 0.0
      %2441 = vst.msk [vmem:[#allocation3 + $0xb8] sm:$0x3] %vm2419, 0.0
      %2442 = vst.msk [vmem:[#allocation3 + $0xc0] sm:$0xff] %vm1745, 0.0
      %2443 = vst.msk [vmem:[#allocation3 + $0xc8] sm:$0xff] %vm1745, 0.0
      %2444 = vst.msk [vmem:[#allocation3 + $0xd0] sm:$0x3] %vm2419, 0.0
      %2445 = vst.msk [vmem:[#allocation3 + $0xd8] sm:$0xff] %vm1745, 0.0
      %2446 = vst.msk [vmem:[#allocation3 + $0xe0] sm:$0xff] %vm1745, 0.0
      %2447 = vst.msk [vmem:[#allocation3 + $0xe8] sm:$0x3] %vm2419, 0.0
      %2448 = vst.msk [vmem:[#allocation3 + $0xf0] sm:$0xff] %vm1745, 0.0
      %2449 = vst.msk [vmem:[#allocation3 + $0xf8] sm:$0xff] %vm1745, 0.0
      %2450 = vst.msk [vmem:[#allocation3 + $0x100] sm:$0x3] %vm2419, 0.0
      %2451 = vst.msk [vmem:[#allocation3 + $0x108] sm:$0xff] %vm1745, 0.0
      %2452 = vst.msk [vmem:[#allocation3 + $0x110] sm:$0xff] %vm1745, 0.0
      %2453 = vst.msk [vmem:[#allocation3 + $0x118] sm:$0x3] %vm2419, 0.0
      %2454 = vst.msk [vmem:[#allocation3 + $0x120] sm:$0xff] %vm1745, 0.0
      %2455 = vst.msk [vmem:[#allocation3 + $0x128] sm:$0xff] %vm1745, 0.0
      %2456 = vst.msk [vmem:[#allocation3 + $0x130] sm:$0x3] %vm2419, 0.0
      %2457 = vst.msk [vmem:[#allocation3 + $0x138] sm:$0xff] %vm1745, 0.0
      %2458 = vst.msk [vmem:[#allocation3 + $0x140] sm:$0xff] %vm1745, 0.0
      %2459 = vst.msk [vmem:[#allocation3 + $0x148] sm:$0x3] %vm2419, 0.0
      %2460 = vst.msk [vmem:[#allocation3 + $0x150] sm:$0xff] %vm1745, 0.0
      %2461 = vst.msk [vmem:[#allocation3 + $0x158] sm:$0xff] %vm1745, 0.0
      %2462 = vst.msk [vmem:[#allocation3 + $0x160] sm:$0x3] %vm2419, 0.0
      %2463 = vst.msk [vmem:[#allocation3 + $0x168] sm:$0xff] %vm1745, 0.0
      %2464 = vst.msk [vmem:[#allocation3 + $0x170] sm:$0xff] %vm1745, 0.0
      %2465 = vst.msk [vmem:[#allocation3 + $0x178] sm:$0x3] %vm2419, 0.0
      %2466 = vst.msk [vmem:[#allocation3 + $0x180] sm:$0xff] %vm1745, 0.0
      %2467 = vst.msk [vmem:[#allocation3 + $0x188] sm:$0xff] %vm1745, 0.0
      %2468 = vst.msk [vmem:[#allocation3 + $0x190] sm:$0x3] %vm2419, 0.0
      %2469 = vst.msk [vmem:[#allocation3 + $0x198] sm:$0xff] %vm1745, 0.0
      %2470 = vst.msk [vmem:[#allocation3 + $0x1a0] sm:$0xff] %vm1745, 0.0
      %2471 = vst.msk [vmem:[#allocation3 + $0x1a8] sm:$0x3] %vm2419, 0.0
      %s2472 = scalar_lea.vmem [#allocation3], 24
      %2473 = vst.msk [vmem:[%s2472 + $0x1] sm:$0xff] %vm1745, %v2385
      %2474 = vst.msk [vmem:[%s2472 + $0x9] sm:$0xff] %vm1745, %v2386
      %2475 = vst.msk [vmem:[%s2472 + $0x19] sm:$0xff] %vm1745, %v2387
      %2476 = vst.msk [vmem:[%s2472 + $0x21] sm:$0xff] %vm1745, %v2388
      %2477 = vst.msk [vmem:[%s2472 + $0x31] sm:$0xff] %vm1745, %v2389
      %2478 = vst.msk [vmem:[%s2472 + $0x39] sm:$0xff] %vm1745, %v2390
      %2479 = vst.msk [vmem:[%s2472 + $0x49] sm:$0xff] %vm1745, %v2391
      %2480 = vst.msk [vmem:[%s2472 + $0x51] sm:$0xff] %vm1745, %v2392
      %2481 = vst.msk [vmem:[%s2472 + $0x61] sm:$0xff] %vm1745, %v2393
      %2482 = vst.msk [vmem:[%s2472 + $0x69] sm:$0xff] %vm1745, %v2394
      %2483 = vst.msk [vmem:[%s2472 + $0x79] sm:$0xff] %vm1745, %v2395
      %2484 = vst.msk [vmem:[%s2472 + $0x81] sm:$0xff] %vm1745, %v2396
      %2485 = vst.msk [vmem:[%s2472 + $0x91] sm:$0xff] %vm1745, %v2397
      %2486 = vst.msk [vmem:[%s2472 + $0x99] sm:$0xff] %vm1745, %v2398
      %2487 = vst.msk [vmem:[%s2472 + $0xa9] sm:$0xff] %vm1745, %v2399
      %2488 = vst.msk [vmem:[%s2472 + $0xb1] sm:$0xff] %vm1745, %v2400
      %2489 = vst.msk [vmem:[%s2472 + $0xc1] sm:$0xff] %vm1745, %v2401
      %2490 = vst.msk [vmem:[%s2472 + $0xc9] sm:$0xff] %vm1745, %v2402
      %2491 = vst.msk [vmem:[%s2472 + $0xd9] sm:$0xff] %vm1745, %v2403
      %2492 = vst.msk [vmem:[%s2472 + $0xe1] sm:$0xff] %vm1745, %v2404
      %2493 = vst.msk [vmem:[%s2472 + $0xf1] sm:$0xff] %vm1745, %v2405
      %2494 = vst.msk [vmem:[%s2472 + $0xf9] sm:$0xff] %vm1745, %v2406
      %2495 = vst.msk [vmem:[%s2472 + $0x109] sm:$0xff] %vm1745, %v2407
      %2496 = vst.msk [vmem:[%s2472 + $0x111] sm:$0xff] %vm1745, %v2408
      %2497 = vst.msk [vmem:[%s2472 + $0x121] sm:$0xff] %vm1745, %v2409
      %2498 = vst.msk [vmem:[%s2472 + $0x129] sm:$0xff] %vm1745, %v2410
      %2499 = vst.msk [vmem:[%s2472 + $0x139] sm:$0xff] %vm1745, %v2411
      %2500 = vst.msk [vmem:[%s2472 + $0x141] sm:$0xff] %vm1745, %v2412
      %2501 = vst.msk [vmem:[%s2472 + $0x151] sm:$0xff] %vm1745, %v2413
      %2502 = vst.msk [vmem:[%s2472 + $0x159] sm:$0xff] %vm1745, %v2414
      %2503 = vst.msk [vmem:[%s2472 + $0x169] sm:$0xff] %vm1745, %v2415
      %2504 = vst.msk [vmem:[%s2472 + $0x171] sm:$0xff] %vm1745, %v2416
      %v2505 = vld [vmem:[#allocation3] sm:$0xff]
      %v2506 = vld [vmem:[#allocation3 + $0x8] sm:$0xff]
      %v2507 = vld [vmem:[#allocation3 + $0x18] sm:$0xff]
      %v2508 = vld [vmem:[#allocation3 + $0x20] sm:$0xff]
      %v2509 = vld [vmem:[#allocation3 + $0x30] sm:$0xff]
      %v2510 = vld [vmem:[#allocation3 + $0x38] sm:$0xff]
      %v2511 = vld [vmem:[#allocation3 + $0x48] sm:$0xff]
      %v2512 = vld [vmem:[#allocation3 + $0x50] sm:$0xff]
      %v2513 = vld [vmem:[#allocation3 + $0x60] sm:$0xff]
      %v2514 = vld [vmem:[#allocation3 + $0x68] sm:$0xff]
      %v2515 = vld [vmem:[#allocation3 + $0x78] sm:$0xff]
      %v2516 = vld [vmem:[#allocation3 + $0x80] sm:$0xff]
      %v2517 = vld [vmem:[#allocation3 + $0x90] sm:$0xff]
      %v2518 = vld [vmem:[#allocation3 + $0x98] sm:$0xff]
      %v2519 = vld [vmem:[#allocation3 + $0xa8] sm:$0xff]
      %v2520 = vld [vmem:[#allocation3 + $0xb0] sm:$0xff]
      %v2521 = vld [vmem:[#allocation3 + $0xc0] sm:$0xff]
      %v2522 = vld [vmem:[#allocation3 + $0xc8] sm:$0xff]
      %v2523 = vld [vmem:[#allocation3 + $0xd8] sm:$0xff]
      %v2524 = vld [vmem:[#allocation3 + $0xe0] sm:$0xff]
      %v2525 = vld [vmem:[#allocation3 + $0xf0] sm:$0xff]
      %v2526 = vld [vmem:[#allocation3 + $0xf8] sm:$0xff]
      %v2527 = vld [vmem:[#allocation3 + $0x108] sm:$0xff]
      %v2528 = vld [vmem:[#allocation3 + $0x110] sm:$0xff]
      %v2529 = vld [vmem:[#allocation3 + $0x120] sm:$0xff]
      %v2530 = vld [vmem:[#allocation3 + $0x128] sm:$0xff]
      %v2531 = vld [vmem:[#allocation3 + $0x138] sm:$0xff]
      %v2532 = vld [vmem:[#allocation3 + $0x140] sm:$0xff]
      %v2533 = vld [vmem:[#allocation3 + $0x150] sm:$0xff]
      %v2534 = vld [vmem:[#allocation3 + $0x158] sm:$0xff]
      %v2535 = vld [vmem:[#allocation3 + $0x168] sm:$0xff]
      %v2536 = vld [vmem:[#allocation3 + $0x170] sm:$0xff]
      %v2537 = vld [vmem:[#allocation3 + $0x1] sm:$0xff]
      %v2538 = vld [vmem:[#allocation3 + $0x9] sm:$0xff]
      %v2539 = vld [vmem:[#allocation3 + $0x19] sm:$0xff]
      %v2540 = vld [vmem:[#allocation3 + $0x21] sm:$0xff]
      %v2541 = vld [vmem:[#allocation3 + $0x31] sm:$0xff]
      %v2542 = vld [vmem:[#allocation3 + $0x39] sm:$0xff]
      %v2543 = vld [vmem:[#allocation3 + $0x49] sm:$0xff]
      %v2544 = vld [vmem:[#allocation3 + $0x51] sm:$0xff]
      %v2545 = vld [vmem:[#allocation3 + $0x61] sm:$0xff]
      %v2546 = vld [vmem:[#allocation3 + $0x69] sm:$0xff]
      %v2547 = vld [vmem:[#allocation3 + $0x79] sm:$0xff]
      %v2548 = vld [vmem:[#allocation3 + $0x81] sm:$0xff]
      %v2549 = vld [vmem:[#allocation3 + $0x91] sm:$0xff]
      %v2550 = vld [vmem:[#allocation3 + $0x99] sm:$0xff]
      %v2551 = vld [vmem:[#allocation3 + $0xa9] sm:$0xff]
      %v2552 = vld [vmem:[#allocation3 + $0xb1] sm:$0xff]
      %v2553 = vld [vmem:[#allocation3 + $0xc1] sm:$0xff]
      %v2554 = vld [vmem:[#allocation3 + $0xc9] sm:$0xff]
      %v2555 = vld [vmem:[#allocation3 + $0xd9] sm:$0xff]
      %v2556 = vld [vmem:[#allocation3 + $0xe1] sm:$0xff]
      %v2557 = vld [vmem:[#allocation3 + $0xf1] sm:$0xff]
      %v2558 = vld [vmem:[#allocation3 + $0xf9] sm:$0xff]
      %v2559 = vld [vmem:[#allocation3 + $0x109] sm:$0xff]
      %v2560 = vld [vmem:[#allocation3 + $0x111] sm:$0xff]
      %v2561 = vld [vmem:[#allocation3 + $0x121] sm:$0xff]
      %v2562 = vld [vmem:[#allocation3 + $0x129] sm:$0xff]
      %v2563 = vld [vmem:[#allocation3 + $0x139] sm:$0xff]
      %v2564 = vld [vmem:[#allocation3 + $0x141] sm:$0xff]
      %v2565 = vld [vmem:[#allocation3 + $0x151] sm:$0xff]
      %v2566 = vld [vmem:[#allocation3 + $0x159] sm:$0xff]
      %v2567 = vld [vmem:[#allocation3 + $0x169] sm:$0xff]
      %v2568 = vld [vmem:[#allocation3 + $0x171] sm:$0xff]
      %v2569 = vld [vmem:[#allocation3 + $0x2] sm:$0xff]
      %v2570 = vld [vmem:[#allocation3 + $0xa] sm:$0xff]
      %v2571 = vld [vmem:[#allocation3 + $0x1a] sm:$0xff]
      %v2572 = vld [vmem:[#allocation3 + $0x22] sm:$0xff]
      %v2573 = vld [vmem:[#allocation3 + $0x32] sm:$0xff]
      %v2574 = vld [vmem:[#allocation3 + $0x3a] sm:$0xff]
      %v2575 = vld [vmem:[#allocation3 + $0x4a] sm:$0xff]
      %v2576 = vld [vmem:[#allocation3 + $0x52] sm:$0xff]
      %v2577 = vld [vmem:[#allocation3 + $0x62] sm:$0xff]
      %v2578 = vld [vmem:[#allocation3 + $0x6a] sm:$0xff]
      %v2579 = vld [vmem:[#allocation3 + $0x7a] sm:$0xff]
      %v2580 = vld [vmem:[#allocation3 + $0x82] sm:$0xff]
      %v2581 = vld [vmem:[#allocation3 + $0x92] sm:$0xff]
      %v2582 = vld [vmem:[#allocation3 + $0x9a] sm:$0xff]
      %v2583 = vld [vmem:[#allocation3 + $0xaa] sm:$0xff]
      %v2584 = vld [vmem:[#allocation3 + $0xb2] sm:$0xff]
      %v2585 = vld [vmem:[#allocation3 + $0xc2] sm:$0xff]
      %v2586 = vld [vmem:[#allocation3 + $0xca] sm:$0xff]
      %v2587 = vld [vmem:[#allocation3 + $0xda] sm:$0xff]
      %v2588 = vld [vmem:[#allocation3 + $0xe2] sm:$0xff]
      %v2589 = vld [vmem:[#allocation3 + $0xf2] sm:$0xff]
      %v2590 = vld [vmem:[#allocation3 + $0xfa] sm:$0xff]
      %v2591 = vld [vmem:[#allocation3 + $0x10a] sm:$0xff]
      %v2592 = vld [vmem:[#allocation3 + $0x112] sm:$0xff]
      %v2593 = vld [vmem:[#allocation3 + $0x122] sm:$0xff]
      %v2594 = vld [vmem:[#allocation3 + $0x12a] sm:$0xff]
      %v2595 = vld [vmem:[#allocation3 + $0x13a] sm:$0xff]
      %v2596 = vld [vmem:[#allocation3 + $0x142] sm:$0xff]
      %v2597 = vld [vmem:[#allocation3 + $0x152] sm:$0xff]
      %v2598 = vld [vmem:[#allocation3 + $0x15a] sm:$0xff]
      %v2599 = vld [vmem:[#allocation3 + $0x16a] sm:$0xff]
      %v2600 = vld [vmem:[#allocation3 + $0x172] sm:$0xff]
      %v2601 = vld [vmem:[%s2472] sm:$0xff]
      %v2602 = vld [vmem:[%s2472 + $0x8] sm:$0xff]
      %v2603 = vld [vmem:[%s2472 + $0x18] sm:$0xff]
      %v2604 = vld [vmem:[%s2472 + $0x20] sm:$0xff]
      %v2605 = vld [vmem:[%s2472 + $0x30] sm:$0xff]
      %v2606 = vld [vmem:[%s2472 + $0x38] sm:$0xff]
      %v2607 = vld [vmem:[%s2472 + $0x48] sm:$0xff]
      %v2608 = vld [vmem:[%s2472 + $0x50] sm:$0xff]
      %v2609 = vld [vmem:[%s2472 + $0x60] sm:$0xff]
      %v2610 = vld [vmem:[%s2472 + $0x68] sm:$0xff]
      %v2611 = vld [vmem:[%s2472 + $0x78] sm:$0xff]
      %v2612 = vld [vmem:[%s2472 + $0x80] sm:$0xff]
      %v2613 = vld [vmem:[%s2472 + $0x90] sm:$0xff]
      %v2614 = vld [vmem:[%s2472 + $0x98] sm:$0xff]
      %v2615 = vld [vmem:[%s2472 + $0xa8] sm:$0xff]
      %v2616 = vld [vmem:[%s2472 + $0xb0] sm:$0xff]
      %v2617 = vld [vmem:[%s2472 + $0xc0] sm:$0xff]
      %v2618 = vld [vmem:[%s2472 + $0xc8] sm:$0xff]
      %v2619 = vld [vmem:[%s2472 + $0xd8] sm:$0xff]
      %v2620 = vld [vmem:[%s2472 + $0xe0] sm:$0xff]
      %v2621 = vld [vmem:[%s2472 + $0xf0] sm:$0xff]
      %v2622 = vld [vmem:[%s2472 + $0xf8] sm:$0xff]
      %v2623 = vld [vmem:[%s2472 + $0x108] sm:$0xff]
      %v2624 = vld [vmem:[%s2472 + $0x110] sm:$0xff]
      %v2625 = vld [vmem:[%s2472 + $0x120] sm:$0xff]
      %v2626 = vld [vmem:[%s2472 + $0x128] sm:$0xff]
      %v2627 = vld [vmem:[%s2472 + $0x138] sm:$0xff]
      %v2628 = vld [vmem:[%s2472 + $0x140] sm:$0xff]
      %v2629 = vld [vmem:[%s2472 + $0x150] sm:$0xff]
      %v2630 = vld [vmem:[%s2472 + $0x158] sm:$0xff]
      %v2631 = vld [vmem:[%s2472 + $0x168] sm:$0xff]
      %v2632 = vld [vmem:[%s2472 + $0x170] sm:$0xff]
      %v2633 = vld [vmem:[%s2472 + $0x1] sm:$0xff]
      %v2634 = vld [vmem:[%s2472 + $0x9] sm:$0xff]
      %v2635 = vld [vmem:[%s2472 + $0x19] sm:$0xff]
      %v2636 = vld [vmem:[%s2472 + $0x21] sm:$0xff]
      %v2637 = vld [vmem:[%s2472 + $0x31] sm:$0xff]
      %v2638 = vld [vmem:[%s2472 + $0x39] sm:$0xff]
      %v2639 = vld [vmem:[%s2472 + $0x49] sm:$0xff]
      %v2640 = vld [vmem:[%s2472 + $0x51] sm:$0xff]
      %v2641 = vld [vmem:[%s2472 + $0x61] sm:$0xff]
      %v2642 = vld [vmem:[%s2472 + $0x69] sm:$0xff]
      %v2643 = vld [vmem:[%s2472 + $0x79] sm:$0xff]
      %v2644 = vld [vmem:[%s2472 + $0x81] sm:$0xff]
      %v2645 = vld [vmem:[%s2472 + $0x91] sm:$0xff]
      %v2646 = vld [vmem:[%s2472 + $0x99] sm:$0xff]
      %v2647 = vld [vmem:[%s2472 + $0xa9] sm:$0xff]
      %v2648 = vld [vmem:[%s2472 + $0xb1] sm:$0xff]
      %v2649 = vld [vmem:[%s2472 + $0xc1] sm:$0xff]
      %v2650 = vld [vmem:[%s2472 + $0xc9] sm:$0xff]
      %v2651 = vld [vmem:[%s2472 + $0xd9] sm:$0xff]
      %v2652 = vld [vmem:[%s2472 + $0xe1] sm:$0xff]
      %v2653 = vld [vmem:[%s2472 + $0xf1] sm:$0xff]
      %v2654 = vld [vmem:[%s2472 + $0xf9] sm:$0xff]
      %v2655 = vld [vmem:[%s2472 + $0x109] sm:$0xff]
      %v2656 = vld [vmem:[%s2472 + $0x111] sm:$0xff]
      %v2657 = vld [vmem:[%s2472 + $0x121] sm:$0xff]
      %v2658 = vld [vmem:[%s2472 + $0x129] sm:$0xff]
      %v2659 = vld [vmem:[%s2472 + $0x139] sm:$0xff]
      %v2660 = vld [vmem:[%s2472 + $0x141] sm:$0xff]
      %v2661 = vld [vmem:[%s2472 + $0x151] sm:$0xff]
      %v2662 = vld [vmem:[%s2472 + $0x159] sm:$0xff]
      %v2663 = vld [vmem:[%s2472 + $0x169] sm:$0xff]
      %v2664 = vld [vmem:[%s2472 + $0x171] sm:$0xff]
      %v2665 = vld [vmem:[%s2472 + $0x2] sm:$0xff]
      %v2666 = vld [vmem:[%s2472 + $0xa] sm:$0xff]
      %v2667 = vld [vmem:[%s2472 + $0x1a] sm:$0xff]
      %v2668 = vld [vmem:[%s2472 + $0x22] sm:$0xff]
      %v2669 = vld [vmem:[%s2472 + $0x32] sm:$0xff]
      %v2670 = vld [vmem:[%s2472 + $0x3a] sm:$0xff]
      %v2671 = vld [vmem:[%s2472 + $0x4a] sm:$0xff]
      %v2672 = vld [vmem:[%s2472 + $0x52] sm:$0xff]
      %v2673 = vld [vmem:[%s2472 + $0x62] sm:$0xff]
      %v2674 = vld [vmem:[%s2472 + $0x6a] sm:$0xff]
      %v2675 = vld [vmem:[%s2472 + $0x7a] sm:$0xff]
      %v2676 = vld [vmem:[%s2472 + $0x82] sm:$0xff]
      %v2677 = vld [vmem:[%s2472 + $0x92] sm:$0xff]
      %v2678 = vld [vmem:[%s2472 + $0x9a] sm:$0xff]
      %v2679 = vld [vmem:[%s2472 + $0xaa] sm:$0xff]
      %v2680 = vld [vmem:[%s2472 + $0xb2] sm:$0xff]
      %v2681 = vld [vmem:[%s2472 + $0xc2] sm:$0xff]
      %v2682 = vld [vmem:[%s2472 + $0xca] sm:$0xff]
      %v2683 = vld [vmem:[%s2472 + $0xda] sm:$0xff]
      %v2684 = vld [vmem:[%s2472 + $0xe2] sm:$0xff]
      %v2685 = vld [vmem:[%s2472 + $0xf2] sm:$0xff]
      %v2686 = vld [vmem:[%s2472 + $0xfa] sm:$0xff]
      %v2687 = vld [vmem:[%s2472 + $0x10a] sm:$0xff]
      %v2688 = vld [vmem:[%s2472 + $0x112] sm:$0xff]
      %v2689 = vld [vmem:[%s2472 + $0x122] sm:$0xff]
      %v2690 = vld [vmem:[%s2472 + $0x12a] sm:$0xff]
      %v2691 = vld [vmem:[%s2472 + $0x13a] sm:$0xff]
      %v2692 = vld [vmem:[%s2472 + $0x142] sm:$0xff]
      %v2693 = vld [vmem:[%s2472 + $0x152] sm:$0xff]
      %v2694 = vld [vmem:[%s2472 + $0x15a] sm:$0xff]
      %v2695 = vld [vmem:[%s2472 + $0x16a] sm:$0xff]
      %v2696 = vld [vmem:[%s2472 + $0x172] sm:$0xff]
      %s2697 = scalar_lea.vmem [#allocation3], 48
      %v2698 = vld [vmem:[%s2697] sm:$0xff]
      %v2699 = vld [vmem:[%s2697 + $0x8] sm:$0xff]
      %v2700 = vld [vmem:[%s2697 + $0x18] sm:$0xff]
      %v2701 = vld [vmem:[%s2697 + $0x20] sm:$0xff]
      %v2702 = vld [vmem:[%s2697 + $0x30] sm:$0xff]
      %v2703 = vld [vmem:[%s2697 + $0x38] sm:$0xff]
      %v2704 = vld [vmem:[%s2697 + $0x48] sm:$0xff]
      %v2705 = vld [vmem:[%s2697 + $0x50] sm:$0xff]
      %v2706 = vld [vmem:[%s2697 + $0x60] sm:$0xff]
      %v2707 = vld [vmem:[%s2697 + $0x68] sm:$0xff]
      %v2708 = vld [vmem:[%s2697 + $0x78] sm:$0xff]
      %v2709 = vld [vmem:[%s2697 + $0x80] sm:$0xff]
      %v2710 = vld [vmem:[%s2697 + $0x90] sm:$0xff]
      %v2711 = vld [vmem:[%s2697 + $0x98] sm:$0xff]
      %v2712 = vld [vmem:[%s2697 + $0xa8] sm:$0xff]
      %v2713 = vld [vmem:[%s2697 + $0xb0] sm:$0xff]
      %v2714 = vld [vmem:[%s2697 + $0xc0] sm:$0xff]
      %v2715 = vld [vmem:[%s2697 + $0xc8] sm:$0xff]
      %v2716 = vld [vmem:[%s2697 + $0xd8] sm:$0xff]
      %v2717 = vld [vmem:[%s2697 + $0xe0] sm:$0xff]
      %v2718 = vld [vmem:[%s2697 + $0xf0] sm:$0xff]
      %v2719 = vld [vmem:[%s2697 + $0xf8] sm:$0xff]
      %v2720 = vld [vmem:[%s2697 + $0x108] sm:$0xff]
      %v2721 = vld [vmem:[%s2697 + $0x110] sm:$0xff]
      %v2722 = vld [vmem:[%s2697 + $0x120] sm:$0xff]
      %v2723 = vld [vmem:[%s2697 + $0x128] sm:$0xff]
      %v2724 = vld [vmem:[%s2697 + $0x138] sm:$0xff]
      %v2725 = vld [vmem:[%s2697 + $0x140] sm:$0xff]
      %v2726 = vld [vmem:[%s2697 + $0x150] sm:$0xff]
      %v2727 = vld [vmem:[%s2697 + $0x158] sm:$0xff]
      %v2728 = vld [vmem:[%s2697 + $0x168] sm:$0xff]
      %v2729 = vld [vmem:[%s2697 + $0x170] sm:$0xff]
      %v2730 = vld [vmem:[%s2697 + $0x1] sm:$0xff]
      %v2731 = vld [vmem:[%s2697 + $0x9] sm:$0xff]
      %v2732 = vld [vmem:[%s2697 + $0x19] sm:$0xff]
      %v2733 = vld [vmem:[%s2697 + $0x21] sm:$0xff]
      %v2734 = vld [vmem:[%s2697 + $0x31] sm:$0xff]
      %v2735 = vld [vmem:[%s2697 + $0x39] sm:$0xff]
      %v2736 = vld [vmem:[%s2697 + $0x49] sm:$0xff]
      %v2737 = vld [vmem:[%s2697 + $0x51] sm:$0xff]
      %v2738 = vld [vmem:[%s2697 + $0x61] sm:$0xff]
      %v2739 = vld [vmem:[%s2697 + $0x69] sm:$0xff]
      %v2740 = vld [vmem:[%s2697 + $0x79] sm:$0xff]
      %v2741 = vld [vmem:[%s2697 + $0x81] sm:$0xff]
      %v2742 = vld [vmem:[%s2697 + $0x91] sm:$0xff]
      %v2743 = vld [vmem:[%s2697 + $0x99] sm:$0xff]
      %v2744 = vld [vmem:[%s2697 + $0xa9] sm:$0xff]
      %v2745 = vld [vmem:[%s2697 + $0xb1] sm:$0xff]
      %v2746 = vld [vmem:[%s2697 + $0xc1] sm:$0xff]
      %v2747 = vld [vmem:[%s2697 + $0xc9] sm:$0xff]
      %v2748 = vld [vmem:[%s2697 + $0xd9] sm:$0xff]
      %v2749 = vld [vmem:[%s2697 + $0xe1] sm:$0xff]
      %v2750 = vld [vmem:[%s2697 + $0xf1] sm:$0xff]
      %v2751 = vld [vmem:[%s2697 + $0xf9] sm:$0xff]
      %v2752 = vld [vmem:[%s2697 + $0x109] sm:$0xff]
      %v2753 = vld [vmem:[%s2697 + $0x111] sm:$0xff]
      %v2754 = vld [vmem:[%s2697 + $0x121] sm:$0xff]
      %v2755 = vld [vmem:[%s2697 + $0x129] sm:$0xff]
      %v2756 = vld [vmem:[%s2697 + $0x139] sm:$0xff]
      %v2757 = vld [vmem:[%s2697 + $0x141] sm:$0xff]
      %v2758 = vld [vmem:[%s2697 + $0x151] sm:$0xff]
      %v2759 = vld [vmem:[%s2697 + $0x159] sm:$0xff]
      %v2760 = vld [vmem:[%s2697 + $0x169] sm:$0xff]
      %v2761 = vld [vmem:[%s2697 + $0x171] sm:$0xff]
      %v2762 = vld [vmem:[%s2697 + $0x2] sm:$0xff]
      %v2763 = vld [vmem:[%s2697 + $0xa] sm:$0xff]
      %v2764 = vld [vmem:[%s2697 + $0x1a] sm:$0xff]
      %v2765 = vld [vmem:[%s2697 + $0x22] sm:$0xff]
      %v2766 = vld [vmem:[%s2697 + $0x32] sm:$0xff]
      %v2767 = vld [vmem:[%s2697 + $0x3a] sm:$0xff]
      %v2768 = vld [vmem:[%s2697 + $0x4a] sm:$0xff]
      %v2769 = vld [vmem:[%s2697 + $0x52] sm:$0xff]
      %v2770 = vld [vmem:[%s2697 + $0x62] sm:$0xff]
      %v2771 = vld [vmem:[%s2697 + $0x6a] sm:$0xff]
      %v2772 = vld [vmem:[%s2697 + $0x7a] sm:$0xff]
      %v2773 = vld [vmem:[%s2697 + $0x82] sm:$0xff]
      %v2774 = vld [vmem:[%s2697 + $0x92] sm:$0xff]
      %v2775 = vld [vmem:[%s2697 + $0x9a] sm:$0xff]
      %v2776 = vld [vmem:[%s2697 + $0xaa] sm:$0xff]
      %v2777 = vld [vmem:[%s2697 + $0xb2] sm:$0xff]
      %v2778 = vld [vmem:[%s2697 + $0xc2] sm:$0xff]
      %v2779 = vld [vmem:[%s2697 + $0xca] sm:$0xff]
      %v2780 = vld [vmem:[%s2697 + $0xda] sm:$0xff]
      %v2781 = vld [vmem:[%s2697 + $0xe2] sm:$0xff]
      %v2782 = vld [vmem:[%s2697 + $0xf2] sm:$0xff]
      %v2783 = vld [vmem:[%s2697 + $0xfa] sm:$0xff]
      %v2784 = vld [vmem:[%s2697 + $0x10a] sm:$0xff]
      %v2785 = vld [vmem:[%s2697 + $0x112] sm:$0xff]
      %v2786 = vld [vmem:[%s2697 + $0x122] sm:$0xff]
      %v2787 = vld [vmem:[%s2697 + $0x12a] sm:$0xff]
      %v2788 = vld [vmem:[%s2697 + $0x13a] sm:$0xff]
      %v2789 = vld [vmem:[%s2697 + $0x142] sm:$0xff]
      %v2790 = vld [vmem:[%s2697 + $0x152] sm:$0xff]
      %v2791 = vld [vmem:[%s2697 + $0x15a] sm:$0xff]
      %v2792 = vld [vmem:[%s2697 + $0x16a] sm:$0xff]
      %v2793 = vld [vmem:[%s2697 + $0x172] sm:$0xff]
      %2826 = vrot.lane.b32.xlu0 %v2537, 8
      %v2827 = vpop.permute.xlu0 %2826
      %2828 = vrot.lane.b32.xlu0 %v2538, 8
      %v2829 = vpop.permute.xlu0 %2828
      %2830 = vrot.lane.b32.xlu0 %v2539, 8
      %v2831 = vpop.permute.xlu0 %2830
      %2832 = vrot.lane.b32.xlu0 %v2540, 8
      %v2833 = vpop.permute.xlu0 %2832
      %2834 = vrot.lane.b32.xlu0 %v2541, 8
      %v2835 = vpop.permute.xlu0 %2834
      %2836 = vrot.lane.b32.xlu0 %v2542, 8
      %v2837 = vpop.permute.xlu0 %2836
      %2838 = vrot.lane.b32.xlu0 %v2543, 8
      %v2839 = vpop.permute.xlu0 %2838
      %2840 = vrot.lane.b32.xlu0 %v2544, 8
      %v2841 = vpop.permute.xlu0 %2840
      %2842 = vrot.lane.b32.xlu0 %v2545, 8
      %v2843 = vpop.permute.xlu0 %2842
      %2844 = vrot.lane.b32.xlu0 %v2546, 8
      %v2845 = vpop.permute.xlu0 %2844
      %2846 = vrot.lane.b32.xlu0 %v2547, 8
      %v2847 = vpop.permute.xlu0 %2846
      %2848 = vrot.lane.b32.xlu0 %v2548, 8
      %v2849 = vpop.permute.xlu0 %2848
      %2850 = vrot.lane.b32.xlu0 %v2549, 8
      %v2851 = vpop.permute.xlu0 %2850
      %2852 = vrot.lane.b32.xlu0 %v2550, 8
      %v2853 = vpop.permute.xlu0 %2852
      %2854 = vrot.lane.b32.xlu0 %v2551, 8
      %v2855 = vpop.permute.xlu0 %2854
      %2856 = vrot.lane.b32.xlu0 %v2552, 8
      %v2857 = vpop.permute.xlu0 %2856
      %2858 = vrot.lane.b32.xlu0 %v2553, 8
      %v2859 = vpop.permute.xlu0 %2858
      %2860 = vrot.lane.b32.xlu0 %v2554, 8
      %v2861 = vpop.permute.xlu0 %2860
      %2862 = vrot.lane.b32.xlu0 %v2555, 8
      %v2863 = vpop.permute.xlu0 %2862
      %2864 = vrot.lane.b32.xlu0 %v2556, 8
      %v2865 = vpop.permute.xlu0 %2864
      %2866 = vrot.lane.b32.xlu0 %v2557, 8
      %v2867 = vpop.permute.xlu0 %2866
      %2868 = vrot.lane.b32.xlu0 %v2558, 8
      %v2869 = vpop.permute.xlu0 %2868
      %2870 = vrot.lane.b32.xlu0 %v2559, 8
      %v2871 = vpop.permute.xlu0 %2870
      %2872 = vrot.lane.b32.xlu0 %v2560, 8
      %v2873 = vpop.permute.xlu0 %2872
      %2874 = vrot.lane.b32.xlu0 %v2561, 8
      %v2875 = vpop.permute.xlu0 %2874
      %2876 = vrot.lane.b32.xlu0 %v2562, 8
      %v2877 = vpop.permute.xlu0 %2876
      %2878 = vrot.lane.b32.xlu0 %v2563, 8
      %v2879 = vpop.permute.xlu0 %2878
      %2880 = vrot.lane.b32.xlu0 %v2564, 8
      %v2881 = vpop.permute.xlu0 %2880
      %2882 = vrot.lane.b32.xlu0 %v2565, 8
      %v2883 = vpop.permute.xlu0 %2882
      %2884 = vrot.lane.b32.xlu0 %v2566, 8
      %v2885 = vpop.permute.xlu0 %2884
      %2886 = vrot.lane.b32.xlu0 %v2567, 8
      %v2887 = vpop.permute.xlu0 %2886
      %2888 = vrot.lane.b32.xlu0 %v2568, 8
      %v2889 = vpop.permute.xlu0 %2888
      %2954 = vrot.lane.b32.xlu0 %v2569, 16
      %v2955 = vpop.permute.xlu0 %2954
      %2956 = vrot.lane.b32.xlu0 %v2570, 16
      %v2957 = vpop.permute.xlu0 %2956
      %2958 = vrot.lane.b32.xlu0 %v2571, 16
      %v2959 = vpop.permute.xlu0 %2958
      %2960 = vrot.lane.b32.xlu0 %v2572, 16
      %v2961 = vpop.permute.xlu0 %2960
      %2962 = vrot.lane.b32.xlu0 %v2573, 16
      %v2963 = vpop.permute.xlu0 %2962
      %2964 = vrot.lane.b32.xlu0 %v2574, 16
      %v2965 = vpop.permute.xlu0 %2964
      %2966 = vrot.lane.b32.xlu0 %v2575, 16
      %v2967 = vpop.permute.xlu0 %2966
      %2968 = vrot.lane.b32.xlu0 %v2576, 16
      %v2969 = vpop.permute.xlu0 %2968
      %2970 = vrot.lane.b32.xlu0 %v2577, 16
      %v2971 = vpop.permute.xlu0 %2970
      %2972 = vrot.lane.b32.xlu0 %v2578, 16
      %v2973 = vpop.permute.xlu0 %2972
      %2974 = vrot.lane.b32.xlu0 %v2579, 16
      %v2975 = vpop.permute.xlu0 %2974
      %2976 = vrot.lane.b32.xlu0 %v2580, 16
      %v2977 = vpop.permute.xlu0 %2976
      %2978 = vrot.lane.b32.xlu0 %v2581, 16
      %v2979 = vpop.permute.xlu0 %2978
      %2980 = vrot.lane.b32.xlu0 %v2582, 16
      %v2981 = vpop.permute.xlu0 %2980
      %2982 = vrot.lane.b32.xlu0 %v2583, 16
      %v2983 = vpop.permute.xlu0 %2982
      %2984 = vrot.lane.b32.xlu0 %v2584, 16
      %v2985 = vpop.permute.xlu0 %2984
      %2986 = vrot.lane.b32.xlu0 %v2585, 16
      %v2987 = vpop.permute.xlu0 %2986
      %2988 = vrot.lane.b32.xlu0 %v2586, 16
      %v2989 = vpop.permute.xlu0 %2988
      %2990 = vrot.lane.b32.xlu0 %v2587, 16
      %v2991 = vpop.permute.xlu0 %2990
      %2992 = vrot.lane.b32.xlu0 %v2588, 16
      %v2993 = vpop.permute.xlu0 %2992
      %2994 = vrot.lane.b32.xlu0 %v2589, 16
      %v2995 = vpop.permute.xlu0 %2994
      %2996 = vrot.lane.b32.xlu0 %v2590, 16
      %v2997 = vpop.permute.xlu0 %2996
      %2998 = vrot.lane.b32.xlu0 %v2591, 16
      %v2999 = vpop.permute.xlu0 %2998
      %3000 = vrot.lane.b32.xlu0 %v2592, 16
      %v3001 = vpop.permute.xlu0 %3000
      %3002 = vrot.lane.b32.xlu0 %v2593, 16
      %v3003 = vpop.permute.xlu0 %3002
      %3004 = vrot.lane.b32.xlu0 %v2594, 16
      %v3005 = vpop.permute.xlu0 %3004
      %3006 = vrot.lane.b32.xlu0 %v2595, 16
      %v3007 = vpop.permute.xlu0 %3006
      %3008 = vrot.lane.b32.xlu0 %v2596, 16
      %v3009 = vpop.permute.xlu0 %3008
      %3010 = vrot.lane.b32.xlu0 %v2597, 16
      %v3011 = vpop.permute.xlu0 %3010
      %3012 = vrot.lane.b32.xlu0 %v2598, 16
      %v3013 = vpop.permute.xlu0 %3012
      %3014 = vrot.lane.b32.xlu0 %v2599, 16
      %v3015 = vpop.permute.xlu0 %3014
      %3016 = vrot.lane.b32.xlu0 %v2600, 16
      %v3017 = vpop.permute.xlu0 %3016
      %3082 = vrot.lane.b32.xlu0 %v2601, 24
      %v3083 = vpop.permute.xlu0 %3082
      %3084 = vrot.lane.b32.xlu0 %v2602, 24
      %v3085 = vpop.permute.xlu0 %3084
      %3086 = vrot.lane.b32.xlu0 %v2603, 24
      %v3087 = vpop.permute.xlu0 %3086
      %3088 = vrot.lane.b32.xlu0 %v2604, 24
      %v3089 = vpop.permute.xlu0 %3088
      %3090 = vrot.lane.b32.xlu0 %v2605, 24
      %v3091 = vpop.permute.xlu0 %3090
      %3092 = vrot.lane.b32.xlu0 %v2606, 24
      %v3093 = vpop.permute.xlu0 %3092
      %3094 = vrot.lane.b32.xlu0 %v2607, 24
      %v3095 = vpop.permute.xlu0 %3094
      %3096 = vrot.lane.b32.xlu0 %v2608, 24
      %v3097 = vpop.permute.xlu0 %3096
      %3098 = vrot.lane.b32.xlu0 %v2609, 24
      %v3099 = vpop.permute.xlu0 %3098
      %3100 = vrot.lane.b32.xlu0 %v2610, 24
      %v3101 = vpop.permute.xlu0 %3100
      %3102 = vrot.lane.b32.xlu0 %v2611, 24
      %v3103 = vpop.permute.xlu0 %3102
      %3104 = vrot.lane.b32.xlu0 %v2612, 24
      %v3105 = vpop.permute.xlu0 %3104
      %3106 = vrot.lane.b32.xlu0 %v2613, 24
      %v3107 = vpop.permute.xlu0 %3106
      %3108 = vrot.lane.b32.xlu0 %v2614, 24
      %v3109 = vpop.permute.xlu0 %3108
      %3110 = vrot.lane.b32.xlu0 %v2615, 24
      %v3111 = vpop.permute.xlu0 %3110
      %3112 = vrot.lane.b32.xlu0 %v2616, 24
      %v3113 = vpop.permute.xlu0 %3112
      %3114 = vrot.lane.b32.xlu0 %v2617, 24
      %v3115 = vpop.permute.xlu0 %3114
      %3116 = vrot.lane.b32.xlu0 %v2618, 24
      %v3117 = vpop.permute.xlu0 %3116
      %3118 = vrot.lane.b32.xlu0 %v2619, 24
      %v3119 = vpop.permute.xlu0 %3118
      %3120 = vrot.lane.b32.xlu0 %v2620, 24
      %v3121 = vpop.permute.xlu0 %3120
      %3122 = vrot.lane.b32.xlu0 %v2621, 24
      %v3123 = vpop.permute.xlu0 %3122
      %3124 = vrot.lane.b32.xlu0 %v2622, 24
      %v3125 = vpop.permute.xlu0 %3124
      %3126 = vrot.lane.b32.xlu0 %v2623, 24
      %v3127 = vpop.permute.xlu0 %3126
      %3128 = vrot.lane.b32.xlu0 %v2624, 24
      %v3129 = vpop.permute.xlu0 %3128
      %3130 = vrot.lane.b32.xlu0 %v2625, 24
      %v3131 = vpop.permute.xlu0 %3130
      %3132 = vrot.lane.b32.xlu0 %v2626, 24
      %v3133 = vpop.permute.xlu0 %3132
      %3134 = vrot.lane.b32.xlu0 %v2627, 24
      %v3135 = vpop.permute.xlu0 %3134
      %3136 = vrot.lane.b32.xlu0 %v2628, 24
      %v3137 = vpop.permute.xlu0 %3136
      %3138 = vrot.lane.b32.xlu0 %v2629, 24
      %v3139 = vpop.permute.xlu0 %3138
      %3140 = vrot.lane.b32.xlu0 %v2630, 24
      %v3141 = vpop.permute.xlu0 %3140
      %3142 = vrot.lane.b32.xlu0 %v2631, 24
      %v3143 = vpop.permute.xlu0 %3142
      %3144 = vrot.lane.b32.xlu0 %v2632, 24
      %v3145 = vpop.permute.xlu0 %3144
      %3210 = vrot.lane.b32.xlu0 %v2633, 32
      %v3211 = vpop.permute.xlu0 %3210
      %3212 = vrot.lane.b32.xlu0 %v2634, 32
      %v3213 = vpop.permute.xlu0 %3212
      %3214 = vrot.lane.b32.xlu0 %v2635, 32
      %v3215 = vpop.permute.xlu0 %3214
      %3216 = vrot.lane.b32.xlu0 %v2636, 32
      %v3217 = vpop.permute.xlu0 %3216
      %3218 = vrot.lane.b32.xlu0 %v2637, 32
      %v3219 = vpop.permute.xlu0 %3218
      %3220 = vrot.lane.b32.xlu0 %v2638, 32
      %v3221 = vpop.permute.xlu0 %3220
      %3222 = vrot.lane.b32.xlu0 %v2639, 32
      %v3223 = vpop.permute.xlu0 %3222
      %3224 = vrot.lane.b32.xlu0 %v2640, 32
      %v3225 = vpop.permute.xlu0 %3224
      %3226 = vrot.lane.b32.xlu0 %v2641, 32
      %v3227 = vpop.permute.xlu0 %3226
      %3228 = vrot.lane.b32.xlu0 %v2642, 32
      %v3229 = vpop.permute.xlu0 %3228
      %3230 = vrot.lane.b32.xlu0 %v2643, 32
      %v3231 = vpop.permute.xlu0 %3230
      %3232 = vrot.lane.b32.xlu0 %v2644, 32
      %v3233 = vpop.permute.xlu0 %3232
      %3234 = vrot.lane.b32.xlu0 %v2645, 32
      %v3235 = vpop.permute.xlu0 %3234
      %3236 = vrot.lane.b32.xlu0 %v2646, 32
      %v3237 = vpop.permute.xlu0 %3236
      %3238 = vrot.lane.b32.xlu0 %v2647, 32
      %v3239 = vpop.permute.xlu0 %3238
      %3240 = vrot.lane.b32.xlu0 %v2648, 32
      %v3241 = vpop.permute.xlu0 %3240
      %3242 = vrot.lane.b32.xlu0 %v2649, 32
      %v3243 = vpop.permute.xlu0 %3242
      %3244 = vrot.lane.b32.xlu0 %v2650, 32
      %v3245 = vpop.permute.xlu0 %3244
      %3246 = vrot.lane.b32.xlu0 %v2651, 32
      %v3247 = vpop.permute.xlu0 %3246
      %3248 = vrot.lane.b32.xlu0 %v2652, 32
      %v3249 = vpop.permute.xlu0 %3248
      %3250 = vrot.lane.b32.xlu0 %v2653, 32
      %v3251 = vpop.permute.xlu0 %3250
      %3252 = vrot.lane.b32.xlu0 %v2654, 32
      %v3253 = vpop.permute.xlu0 %3252
      %3254 = vrot.lane.b32.xlu0 %v2655, 32
      %v3255 = vpop.permute.xlu0 %3254
      %3256 = vrot.lane.b32.xlu0 %v2656, 32
      %v3257 = vpop.permute.xlu0 %3256
      %3258 = vrot.lane.b32.xlu0 %v2657, 32
      %v3259 = vpop.permute.xlu0 %3258
      %3260 = vrot.lane.b32.xlu0 %v2658, 32
      %v3261 = vpop.permute.xlu0 %3260
      %3262 = vrot.lane.b32.xlu0 %v2659, 32
      %v3263 = vpop.permute.xlu0 %3262
      %3264 = vrot.lane.b32.xlu0 %v2660, 32
      %v3265 = vpop.permute.xlu0 %3264
      %3266 = vrot.lane.b32.xlu0 %v2661, 32
      %v3267 = vpop.permute.xlu0 %3266
      %3268 = vrot.lane.b32.xlu0 %v2662, 32
      %v3269 = vpop.permute.xlu0 %3268
      %3270 = vrot.lane.b32.xlu0 %v2663, 32
      %v3271 = vpop.permute.xlu0 %3270
      %3272 = vrot.lane.b32.xlu0 %v2664, 32
      %v3273 = vpop.permute.xlu0 %3272
      %3338 = vrot.lane.b32.xlu0 %v2665, 40
      %v3339 = vpop.permute.xlu0 %3338
      %3340 = vrot.lane.b32.xlu0 %v2666, 40
      %v3341 = vpop.permute.xlu0 %3340
      %3342 = vrot.lane.b32.xlu0 %v2667, 40
      %v3343 = vpop.permute.xlu0 %3342
      %3344 = vrot.lane.b32.xlu0 %v2668, 40
      %v3345 = vpop.permute.xlu0 %3344
      %3346 = vrot.lane.b32.xlu0 %v2669, 40
      %v3347 = vpop.permute.xlu0 %3346
      %3348 = vrot.lane.b32.xlu0 %v2670, 40
      %v3349 = vpop.permute.xlu0 %3348
      %3350 = vrot.lane.b32.xlu0 %v2671, 40
      %v3351 = vpop.permute.xlu0 %3350
      %3352 = vrot.lane.b32.xlu0 %v2672, 40
      %v3353 = vpop.permute.xlu0 %3352
      %3354 = vrot.lane.b32.xlu0 %v2673, 40
      %v3355 = vpop.permute.xlu0 %3354
      %3356 = vrot.lane.b32.xlu0 %v2674, 40
      %v3357 = vpop.permute.xlu0 %3356
      %3358 = vrot.lane.b32.xlu0 %v2675, 40
      %v3359 = vpop.permute.xlu0 %3358
      %3360 = vrot.lane.b32.xlu0 %v2676, 40
      %v3361 = vpop.permute.xlu0 %3360
      %3362 = vrot.lane.b32.xlu0 %v2677, 40
      %v3363 = vpop.permute.xlu0 %3362
      %3364 = vrot.lane.b32.xlu0 %v2678, 40
      %v3365 = vpop.permute.xlu0 %3364
      %3366 = vrot.lane.b32.xlu0 %v2679, 40
      %v3367 = vpop.permute.xlu0 %3366
      %3368 = vrot.lane.b32.xlu0 %v2680, 40
      %v3369 = vpop.permute.xlu0 %3368
      %3370 = vrot.lane.b32.xlu0 %v2681, 40
      %v3371 = vpop.permute.xlu0 %3370
      %3372 = vrot.lane.b32.xlu0 %v2682, 40
      %v3373 = vpop.permute.xlu0 %3372
      %3374 = vrot.lane.b32.xlu0 %v2683, 40
      %v3375 = vpop.permute.xlu0 %3374
      %3376 = vrot.lane.b32.xlu0 %v2684, 40
      %v3377 = vpop.permute.xlu0 %3376
      %3378 = vrot.lane.b32.xlu0 %v2685, 40
      %v3379 = vpop.permute.xlu0 %3378
      %3380 = vrot.lane.b32.xlu0 %v2686, 40
      %v3381 = vpop.permute.xlu0 %3380
      %3382 = vrot.lane.b32.xlu0 %v2687, 40
      %v3383 = vpop.permute.xlu0 %3382
      %3384 = vrot.lane.b32.xlu0 %v2688, 40
      %v3385 = vpop.permute.xlu0 %3384
      %3386 = vrot.lane.b32.xlu0 %v2689, 40
      %v3387 = vpop.permute.xlu0 %3386
      %3388 = vrot.lane.b32.xlu0 %v2690, 40
      %v3389 = vpop.permute.xlu0 %3388
      %3390 = vrot.lane.b32.xlu0 %v2691, 40
      %v3391 = vpop.permute.xlu0 %3390
      %3392 = vrot.lane.b32.xlu0 %v2692, 40
      %v3393 = vpop.permute.xlu0 %3392
      %3394 = vrot.lane.b32.xlu0 %v2693, 40
      %v3395 = vpop.permute.xlu0 %3394
      %3396 = vrot.lane.b32.xlu0 %v2694, 40
      %v3397 = vpop.permute.xlu0 %3396
      %3398 = vrot.lane.b32.xlu0 %v2695, 40
      %v3399 = vpop.permute.xlu0 %3398
      %3400 = vrot.lane.b32.xlu0 %v2696, 40
      %v3401 = vpop.permute.xlu0 %3400
      %3466 = vrot.lane.b32.xlu0 %v2698, 48
      %v3467 = vpop.permute.xlu0 %3466
      %3468 = vrot.lane.b32.xlu0 %v2699, 48
      %v3469 = vpop.permute.xlu0 %3468
      %3470 = vrot.lane.b32.xlu0 %v2700, 48
      %v3471 = vpop.permute.xlu0 %3470
      %3472 = vrot.lane.b32.xlu0 %v2701, 48
      %v3473 = vpop.permute.xlu0 %3472
      %3474 = vrot.lane.b32.xlu0 %v2702, 48
      %v3475 = vpop.permute.xlu0 %3474
      %3476 = vrot.lane.b32.xlu0 %v2703, 48
      %v3477 = vpop.permute.xlu0 %3476
      %3478 = vrot.lane.b32.xlu0 %v2704, 48
      %v3479 = vpop.permute.xlu0 %3478
      %3480 = vrot.lane.b32.xlu0 %v2705, 48
      %v3481 = vpop.permute.xlu0 %3480
      %3482 = vrot.lane.b32.xlu0 %v2706, 48
      %v3483 = vpop.permute.xlu0 %3482
      %3484 = vrot.lane.b32.xlu0 %v2707, 48
      %v3485 = vpop.permute.xlu0 %3484
      %3486 = vrot.lane.b32.xlu0 %v2708, 48
      %v3487 = vpop.permute.xlu0 %3486
      %3488 = vrot.lane.b32.xlu0 %v2709, 48
      %v3489 = vpop.permute.xlu0 %3488
      %3490 = vrot.lane.b32.xlu0 %v2710, 48
      %v3491 = vpop.permute.xlu0 %3490
      %3492 = vrot.lane.b32.xlu0 %v2711, 48
      %v3493 = vpop.permute.xlu0 %3492
      %3494 = vrot.lane.b32.xlu0 %v2712, 48
      %v3495 = vpop.permute.xlu0 %3494
      %3496 = vrot.lane.b32.xlu0 %v2713, 48
      %v3497 = vpop.permute.xlu0 %3496
      %3498 = vrot.lane.b32.xlu0 %v2714, 48
      %v3499 = vpop.permute.xlu0 %3498
      %3500 = vrot.lane.b32.xlu0 %v2715, 48
      %v3501 = vpop.permute.xlu0 %3500
      %3502 = vrot.lane.b32.xlu0 %v2716, 48
      %v3503 = vpop.permute.xlu0 %3502
      %3504 = vrot.lane.b32.xlu0 %v2717, 48
      %v3505 = vpop.permute.xlu0 %3504
      %3506 = vrot.lane.b32.xlu0 %v2718, 48
      %v3507 = vpop.permute.xlu0 %3506
      %3508 = vrot.lane.b32.xlu0 %v2719, 48
      %v3509 = vpop.permute.xlu0 %3508
      %3510 = vrot.lane.b32.xlu0 %v2720, 48
      %v3511 = vpop.permute.xlu0 %3510
      %3512 = vrot.lane.b32.xlu0 %v2721, 48
      %v3513 = vpop.permute.xlu0 %3512
      %3514 = vrot.lane.b32.xlu0 %v2722, 48
      %v3515 = vpop.permute.xlu0 %3514
      %3516 = vrot.lane.b32.xlu0 %v2723, 48
      %v3517 = vpop.permute.xlu0 %3516
      %3518 = vrot.lane.b32.xlu0 %v2724, 48
      %v3519 = vpop.permute.xlu0 %3518
      %3520 = vrot.lane.b32.xlu0 %v2725, 48
      %v3521 = vpop.permute.xlu0 %3520
      %3522 = vrot.lane.b32.xlu0 %v2726, 48
      %v3523 = vpop.permute.xlu0 %3522
      %3524 = vrot.lane.b32.xlu0 %v2727, 48
      %v3525 = vpop.permute.xlu0 %3524
      %3526 = vrot.lane.b32.xlu0 %v2728, 48
      %v3527 = vpop.permute.xlu0 %3526
      %3528 = vrot.lane.b32.xlu0 %v2729, 48
      %v3529 = vpop.permute.xlu0 %3528
      %3594 = vrot.lane.b32.xlu0 %v2730, 56
      %v3595 = vpop.permute.xlu0 %3594
      %3596 = vrot.lane.b32.xlu0 %v2731, 56
      %v3597 = vpop.permute.xlu0 %3596
      %3598 = vrot.lane.b32.xlu0 %v2732, 56
      %v3599 = vpop.permute.xlu0 %3598
      %3600 = vrot.lane.b32.xlu0 %v2733, 56
      %v3601 = vpop.permute.xlu0 %3600
      %3602 = vrot.lane.b32.xlu0 %v2734, 56
      %v3603 = vpop.permute.xlu0 %3602
      %3604 = vrot.lane.b32.xlu0 %v2735, 56
      %v3605 = vpop.permute.xlu0 %3604
      %3606 = vrot.lane.b32.xlu0 %v2736, 56
      %v3607 = vpop.permute.xlu0 %3606
      %3608 = vrot.lane.b32.xlu0 %v2737, 56
      %v3609 = vpop.permute.xlu0 %3608
      %3610 = vrot.lane.b32.xlu0 %v2738, 56
      %v3611 = vpop.permute.xlu0 %3610
      %3612 = vrot.lane.b32.xlu0 %v2739, 56
      %v3613 = vpop.permute.xlu0 %3612
      %3614 = vrot.lane.b32.xlu0 %v2740, 56
      %v3615 = vpop.permute.xlu0 %3614
      %3616 = vrot.lane.b32.xlu0 %v2741, 56
      %v3617 = vpop.permute.xlu0 %3616
      %3618 = vrot.lane.b32.xlu0 %v2742, 56
      %v3619 = vpop.permute.xlu0 %3618
      %3620 = vrot.lane.b32.xlu0 %v2743, 56
      %v3621 = vpop.permute.xlu0 %3620
      %3622 = vrot.lane.b32.xlu0 %v2744, 56
      %v3623 = vpop.permute.xlu0 %3622
      %3624 = vrot.lane.b32.xlu0 %v2745, 56
      %v3625 = vpop.permute.xlu0 %3624
      %3626 = vrot.lane.b32.xlu0 %v2746, 56
      %v3627 = vpop.permute.xlu0 %3626
      %3628 = vrot.lane.b32.xlu0 %v2747, 56
      %v3629 = vpop.permute.xlu0 %3628
      %3630 = vrot.lane.b32.xlu0 %v2748, 56
      %v3631 = vpop.permute.xlu0 %3630
      %3632 = vrot.lane.b32.xlu0 %v2749, 56
      %v3633 = vpop.permute.xlu0 %3632
      %3634 = vrot.lane.b32.xlu0 %v2750, 56
      %v3635 = vpop.permute.xlu0 %3634
      %3636 = vrot.lane.b32.xlu0 %v2751, 56
      %v3637 = vpop.permute.xlu0 %3636
      %3638 = vrot.lane.b32.xlu0 %v2752, 56
      %v3639 = vpop.permute.xlu0 %3638
      %3640 = vrot.lane.b32.xlu0 %v2753, 56
      %v3641 = vpop.permute.xlu0 %3640
      %3642 = vrot.lane.b32.xlu0 %v2754, 56
      %v3643 = vpop.permute.xlu0 %3642
      %3644 = vrot.lane.b32.xlu0 %v2755, 56
      %v3645 = vpop.permute.xlu0 %3644
      %3646 = vrot.lane.b32.xlu0 %v2756, 56
      %v3647 = vpop.permute.xlu0 %3646
      %3648 = vrot.lane.b32.xlu0 %v2757, 56
      %v3649 = vpop.permute.xlu0 %3648
      %3650 = vrot.lane.b32.xlu0 %v2758, 56
      %v3651 = vpop.permute.xlu0 %3650
      %3652 = vrot.lane.b32.xlu0 %v2759, 56
      %v3653 = vpop.permute.xlu0 %3652
      %3654 = vrot.lane.b32.xlu0 %v2760, 56
      %v3655 = vpop.permute.xlu0 %3654
      %3656 = vrot.lane.b32.xlu0 %v2761, 56
      %v3657 = vpop.permute.xlu0 %3656
      %3722 = vrot.lane.b32.xlu0 %v2762, 64
      %v3723 = vpop.permute.xlu0 %3722
      %3724 = vrot.lane.b32.xlu0 %v2763, 64
      %v3725 = vpop.permute.xlu0 %3724
      %3726 = vrot.lane.b32.xlu0 %v2764, 64
      %v3727 = vpop.permute.xlu0 %3726
      %3728 = vrot.lane.b32.xlu0 %v2765, 64
      %v3729 = vpop.permute.xlu0 %3728
      %3730 = vrot.lane.b32.xlu0 %v2766, 64
      %v3731 = vpop.permute.xlu0 %3730
      %3732 = vrot.lane.b32.xlu0 %v2767, 64
      %v3733 = vpop.permute.xlu0 %3732
      %3734 = vrot.lane.b32.xlu0 %v2768, 64
      %v3735 = vpop.permute.xlu0 %3734
      %3736 = vrot.lane.b32.xlu0 %v2769, 64
      %v3737 = vpop.permute.xlu0 %3736
      %3738 = vrot.lane.b32.xlu0 %v2770, 64
      %v3739 = vpop.permute.xlu0 %3738
      %3740 = vrot.lane.b32.xlu0 %v2771, 64
      %v3741 = vpop.permute.xlu0 %3740
      %3742 = vrot.lane.b32.xlu0 %v2772, 64
      %v3743 = vpop.permute.xlu0 %3742
      %3744 = vrot.lane.b32.xlu0 %v2773, 64
      %v3745 = vpop.permute.xlu0 %3744
      %3746 = vrot.lane.b32.xlu0 %v2774, 64
      %v3747 = vpop.permute.xlu0 %3746
      %3748 = vrot.lane.b32.xlu0 %v2775, 64
      %v3749 = vpop.permute.xlu0 %3748
      %3750 = vrot.lane.b32.xlu0 %v2776, 64
      %v3751 = vpop.permute.xlu0 %3750
      %3752 = vrot.lane.b32.xlu0 %v2777, 64
      %v3753 = vpop.permute.xlu0 %3752
      %3754 = vrot.lane.b32.xlu0 %v2778, 64
      %v3755 = vpop.permute.xlu0 %3754
      %3756 = vrot.lane.b32.xlu0 %v2779, 64
      %v3757 = vpop.permute.xlu0 %3756
      %3758 = vrot.lane.b32.xlu0 %v2780, 64
      %v3759 = vpop.permute.xlu0 %3758
      %3760 = vrot.lane.b32.xlu0 %v2781, 64
      %v3761 = vpop.permute.xlu0 %3760
      %3762 = vrot.lane.b32.xlu0 %v2782, 64
      %v3763 = vpop.permute.xlu0 %3762
      %3764 = vrot.lane.b32.xlu0 %v2783, 64
      %v3765 = vpop.permute.xlu0 %3764
      %3766 = vrot.lane.b32.xlu0 %v2784, 64
      %v3767 = vpop.permute.xlu0 %3766
      %3768 = vrot.lane.b32.xlu0 %v2785, 64
      %v3769 = vpop.permute.xlu0 %3768
      %3770 = vrot.lane.b32.xlu0 %v2786, 64
      %v3771 = vpop.permute.xlu0 %3770
      %3772 = vrot.lane.b32.xlu0 %v2787, 64
      %v3773 = vpop.permute.xlu0 %3772
      %3774 = vrot.lane.b32.xlu0 %v2788, 64
      %v3775 = vpop.permute.xlu0 %3774
      %3776 = vrot.lane.b32.xlu0 %v2789, 64
      %v3777 = vpop.permute.xlu0 %3776
      %3778 = vrot.lane.b32.xlu0 %v2790, 64
      %v3779 = vpop.permute.xlu0 %3778
      %3780 = vrot.lane.b32.xlu0 %v2791, 64
      %v3781 = vpop.permute.xlu0 %3780
      %3782 = vrot.lane.b32.xlu0 %v2792, 64
      %v3783 = vpop.permute.xlu0 %3782
      %3784 = vrot.lane.b32.xlu0 %v2793, 64
      %v3785 = vpop.permute.xlu0 %3784
      %v3818 = vsel %vm1745, %v2505, %v2827
      %v3819 = vsel %vm1745, %v2506, %v2829
      %v3820 = vsel %vm1745, %v2507, %v2831
      %v3821 = vsel %vm1745, %v2508, %v2833
      %v3822 = vsel %vm1745, %v2509, %v2835
      %v3823 = vsel %vm1745, %v2510, %v2837
      %v3824 = vsel %vm1745, %v2511, %v2839
      %v3825 = vsel %vm1745, %v2512, %v2841
      %v3826 = vsel %vm1745, %v2513, %v2843
      %v3827 = vsel %vm1745, %v2514, %v2845
      %v3828 = vsel %vm1745, %v2515, %v2847
      %v3829 = vsel %vm1745, %v2516, %v2849
      %v3830 = vsel %vm1745, %v2517, %v2851
      %v3831 = vsel %vm1745, %v2518, %v2853
      %v3832 = vsel %vm1745, %v2519, %v2855
      %v3833 = vsel %vm1745, %v2520, %v2857
      %v3834 = vsel %vm1745, %v2521, %v2859
      %v3835 = vsel %vm1745, %v2522, %v2861
      %v3836 = vsel %vm1745, %v2523, %v2863
      %v3837 = vsel %vm1745, %v2524, %v2865
      %v3838 = vsel %vm1745, %v2525, %v2867
      %v3839 = vsel %vm1745, %v2526, %v2869
      %v3840 = vsel %vm1745, %v2527, %v2871
      %v3841 = vsel %vm1745, %v2528, %v2873
      %v3842 = vsel %vm1745, %v2529, %v2875
      %v3843 = vsel %vm1745, %v2530, %v2877
      %v3844 = vsel %vm1745, %v2531, %v2879
      %v3845 = vsel %vm1745, %v2532, %v2881
      %v3846 = vsel %vm1745, %v2533, %v2883
      %v3847 = vsel %vm1745, %v2534, %v2885
      %v3848 = vsel %vm1745, %v2535, %v2887
      %v3849 = vsel %vm1745, %v2536, %v2889
      %v3850 = vsel %vm1811, %v3818, %v2955
      %v3851 = vsel %vm1811, %v3819, %v2957
      %v3852 = vsel %vm1811, %v3820, %v2959
      %v3853 = vsel %vm1811, %v3821, %v2961
      %v3854 = vsel %vm1811, %v3822, %v2963
      %v3855 = vsel %vm1811, %v3823, %v2965
      %v3856 = vsel %vm1811, %v3824, %v2967
      %v3857 = vsel %vm1811, %v3825, %v2969
      %v3858 = vsel %vm1811, %v3826, %v2971
      %v3859 = vsel %vm1811, %v3827, %v2973
      %v3860 = vsel %vm1811, %v3828, %v2975
      %v3861 = vsel %vm1811, %v3829, %v2977
      %v3862 = vsel %vm1811, %v3830, %v2979
      %v3863 = vsel %vm1811, %v3831, %v2981
      %v3864 = vsel %vm1811, %v3832, %v2983
      %v3865 = vsel %vm1811, %v3833, %v2985
      %v3866 = vsel %vm1811, %v3834, %v2987
      %v3867 = vsel %vm1811, %v3835, %v2989
      %v3868 = vsel %vm1811, %v3836, %v2991
      %v3869 = vsel %vm1811, %v3837, %v2993
      %v3870 = vsel %vm1811, %v3838, %v2995
      %v3871 = vsel %vm1811, %v3839, %v2997
      %v3872 = vsel %vm1811, %v3840, %v2999
      %v3873 = vsel %vm1811, %v3841, %v3001
      %v3874 = vsel %vm1811, %v3842, %v3003
      %v3875 = vsel %vm1811, %v3843, %v3005
      %v3876 = vsel %vm1811, %v3844, %v3007
      %v3877 = vsel %vm1811, %v3845, %v3009
      %v3878 = vsel %vm1811, %v3846, %v3011
      %v3879 = vsel %vm1811, %v3847, %v3013
      %v3880 = vsel %vm1811, %v3848, %v3015
      %v3881 = vsel %vm1811, %v3849, %v3017
      %v3882 = vsel %vm1877, %v3850, %v3083
      %v3883 = vsel %vm1877, %v3851, %v3085
      %v3884 = vsel %vm1877, %v3852, %v3087
      %v3885 = vsel %vm1877, %v3853, %v3089
      %v3886 = vsel %vm1877, %v3854, %v3091
      %v3887 = vsel %vm1877, %v3855, %v3093
      %v3888 = vsel %vm1877, %v3856, %v3095
      %v3889 = vsel %vm1877, %v3857, %v3097
      %v3890 = vsel %vm1877, %v3858, %v3099
      %v3891 = vsel %vm1877, %v3859, %v3101
      %v3892 = vsel %vm1877, %v3860, %v3103
      %v3893 = vsel %vm1877, %v3861, %v3105
      %v3894 = vsel %vm1877, %v3862, %v3107
      %v3895 = vsel %vm1877, %v3863, %v3109
      %v3896 = vsel %vm1877, %v3864, %v3111
      %v3897 = vsel %vm1877, %v3865, %v3113
      %v3898 = vsel %vm1877, %v3866, %v3115
      %v3899 = vsel %vm1877, %v3867, %v3117
      %v3900 = vsel %vm1877, %v3868, %v3119
      %v3901 = vsel %vm1877, %v3869, %v3121
      %v3902 = vsel %vm1877, %v3870, %v3123
      %v3903 = vsel %vm1877, %v3871, %v3125
      %v3904 = vsel %vm1877, %v3872, %v3127
      %v3905 = vsel %vm1877, %v3873, %v3129
      %v3906 = vsel %vm1877, %v3874, %v3131
      %v3907 = vsel %vm1877, %v3875, %v3133
      %v3908 = vsel %vm1877, %v3876, %v3135
      %v3909 = vsel %vm1877, %v3877, %v3137
      %v3910 = vsel %vm1877, %v3878, %v3139
      %v3911 = vsel %vm1877, %v3879, %v3141
      %v3912 = vsel %vm1877, %v3880, %v3143
      %v3913 = vsel %vm1877, %v3881, %v3145
      %v3914 = vsel %vm1943, %v3882, %v3211
      %v3915 = vsel %vm1943, %v3883, %v3213
      %v3916 = vsel %vm1943, %v3884, %v3215
      %v3917 = vsel %vm1943, %v3885, %v3217
      %v3918 = vsel %vm1943, %v3886, %v3219
      %v3919 = vsel %vm1943, %v3887, %v3221
      %v3920 = vsel %vm1943, %v3888, %v3223
      %v3921 = vsel %vm1943, %v3889, %v3225
      %v3922 = vsel %vm1943, %v3890, %v3227
      %v3923 = vsel %vm1943, %v3891, %v3229
      %v3924 = vsel %vm1943, %v3892, %v3231
      %v3925 = vsel %vm1943, %v3893, %v3233
      %v3926 = vsel %vm1943, %v3894, %v3235
      %v3927 = vsel %vm1943, %v3895, %v3237
      %v3928 = vsel %vm1943, %v3896, %v3239
      %v3929 = vsel %vm1943, %v3897, %v3241
      %v3930 = vsel %vm1943, %v3898, %v3243
      %v3931 = vsel %vm1943, %v3899, %v3245
      %v3932 = vsel %vm1943, %v3900, %v3247
      %v3933 = vsel %vm1943, %v3901, %v3249
      %v3934 = vsel %vm1943, %v3902, %v3251
      %v3935 = vsel %vm1943, %v3903, %v3253
      %v3936 = vsel %vm1943, %v3904, %v3255
      %v3937 = vsel %vm1943, %v3905, %v3257
      %v3938 = vsel %vm1943, %v3906, %v3259
      %v3939 = vsel %vm1943, %v3907, %v3261
      %v3940 = vsel %vm1943, %v3908, %v3263
      %v3941 = vsel %vm1943, %v3909, %v3265
      %v3942 = vsel %vm1943, %v3910, %v3267
      %v3943 = vsel %vm1943, %v3911, %v3269
      %v3944 = vsel %vm1943, %v3912, %v3271
      %v3945 = vsel %vm1943, %v3913, %v3273
      %vm3946 = vcmask 326656
      %v3947 = vsel %vm3946, %v3914, %v3339
      %v3948 = vsel %vm3946, %v3915, %v3341
      %v3949 = vsel %vm3946, %v3916, %v3343
      %v3950 = vsel %vm3946, %v3917, %v3345
      %v3951 = vsel %vm3946, %v3918, %v3347
      %v3952 = vsel %vm3946, %v3919, %v3349
      %v3953 = vsel %vm3946, %v3920, %v3351
      %v3954 = vsel %vm3946, %v3921, %v3353
      %v3955 = vsel %vm3946, %v3922, %v3355
      %v3956 = vsel %vm3946, %v3923, %v3357
      %v3957 = vsel %vm3946, %v3924, %v3359
      %v3958 = vsel %vm3946, %v3925, %v3361
      %v3959 = vsel %vm3946, %v3926, %v3363
      %v3960 = vsel %vm3946, %v3927, %v3365
      %v3961 = vsel %vm3946, %v3928, %v3367
      %v3962 = vsel %vm3946, %v3929, %v3369
      %v3963 = vsel %vm3946, %v3930, %v3371
      %v3964 = vsel %vm3946, %v3931, %v3373
      %v3965 = vsel %vm3946, %v3932, %v3375
      %v3966 = vsel %vm3946, %v3933, %v3377
      %v3967 = vsel %vm3946, %v3934, %v3379
      %v3968 = vsel %vm3946, %v3935, %v3381
      %v3969 = vsel %vm3946, %v3936, %v3383
      %v3970 = vsel %vm3946, %v3937, %v3385
      %v3971 = vsel %vm3946, %v3938, %v3387
      %v3972 = vsel %vm3946, %v3939, %v3389
      %v3973 = vsel %vm3946, %v3940, %v3391
      %v3974 = vsel %vm3946, %v3941, %v3393
      %v3975 = vsel %vm3946, %v3942, %v3395
      %v3976 = vsel %vm3946, %v3943, %v3397
      %v3977 = vsel %vm3946, %v3944, %v3399
      %v3978 = vsel %vm3946, %v3945, %v3401
      %vm3979 = vcmask 392192
      %v3980 = vsel %vm3979, %v3947, %v3467
      %v3981 = vsel %vm3979, %v3948, %v3469
      %v3982 = vsel %vm3979, %v3949, %v3471
      %v3983 = vsel %vm3979, %v3950, %v3473
      %v3984 = vsel %vm3979, %v3951, %v3475
      %v3985 = vsel %vm3979, %v3952, %v3477
      %v3986 = vsel %vm3979, %v3953, %v3479
      %v3987 = vsel %vm3979, %v3954, %v3481
      %v3988 = vsel %vm3979, %v3955, %v3483
      %v3989 = vsel %vm3979, %v3956, %v3485
      %v3990 = vsel %vm3979, %v3957, %v3487
      %v3991 = vsel %vm3979, %v3958, %v3489
      %v3992 = vsel %vm3979, %v3959, %v3491
      %v3993 = vsel %vm3979, %v3960, %v3493
      %v3994 = vsel %vm3979, %v3961, %v3495
      %v3995 = vsel %vm3979, %v3962, %v3497
      %v3996 = vsel %vm3979, %v3963, %v3499
      %v3997 = vsel %vm3979, %v3964, %v3501
      %v3998 = vsel %vm3979, %v3965, %v3503
      %v3999 = vsel %vm3979, %v3966, %v3505
      %v4000 = vsel %vm3979, %v3967, %v3507
      %v4001 = vsel %vm3979, %v3968, %v3509
      %v4002 = vsel %vm3979, %v3969, %v3511
      %v4003 = vsel %vm3979, %v3970, %v3513
      %v4004 = vsel %vm3979, %v3971, %v3515
      %v4005 = vsel %vm3979, %v3972, %v3517
      %v4006 = vsel %vm3979, %v3973, %v3519
      %v4007 = vsel %vm3979, %v3974, %v3521
      %v4008 = vsel %vm3979, %v3975, %v3523
      %v4009 = vsel %vm3979, %v3976, %v3525
      %v4010 = vsel %vm3979, %v3977, %v3527
      %v4011 = vsel %vm3979, %v3978, %v3529
      %vm4012 = vcmask 457728
      %v4013 = vsel %vm4012, %v3980, %v3595
      %v4014 = vsel %vm4012, %v3981, %v3597
      %v4015 = vsel %vm4012, %v3982, %v3599
      %v4016 = vsel %vm4012, %v3983, %v3601
      %v4017 = vsel %vm4012, %v3984, %v3603
      %v4018 = vsel %vm4012, %v3985, %v3605
      %v4019 = vsel %vm4012, %v3986, %v3607
      %v4020 = vsel %vm4012, %v3987, %v3609
      %v4021 = vsel %vm4012, %v3988, %v3611
      %v4022 = vsel %vm4012, %v3989, %v3613
      %v4023 = vsel %vm4012, %v3990, %v3615
      %v4024 = vsel %vm4012, %v3991, %v3617
      %v4025 = vsel %vm4012, %v3992, %v3619
      %v4026 = vsel %vm4012, %v3993, %v3621
      %v4027 = vsel %vm4012, %v3994, %v3623
      %v4028 = vsel %vm4012, %v3995, %v3625
      %v4029 = vsel %vm4012, %v3996, %v3627
      %v4030 = vsel %vm4012, %v3997, %v3629
      %v4031 = vsel %vm4012, %v3998, %v3631
      %v4032 = vsel %vm4012, %v3999, %v3633
      %v4033 = vsel %vm4012, %v4000, %v3635
      %v4034 = vsel %vm4012, %v4001, %v3637
      %v4035 = vsel %vm4012, %v4002, %v3639
      %v4036 = vsel %vm4012, %v4003, %v3641
      %v4037 = vsel %vm4012, %v4004, %v3643
      %v4038 = vsel %vm4012, %v4005, %v3645
      %v4039 = vsel %vm4012, %v4006, %v3647
      %v4040 = vsel %vm4012, %v4007, %v3649
      %v4041 = vsel %vm4012, %v4008, %v3651
      %v4042 = vsel %vm4012, %v4009, %v3653
      %v4043 = vsel %vm4012, %v4010, %v3655
      %v4044 = vsel %vm4012, %v4011, %v3657
      %vm4045 = vcmask 523264
      %v4046 = vsel %vm4045, %v4013, %v3723
      %v4047 = vsel %vm4045, %v4014, %v3725
      %v4048 = vsel %vm4045, %v4015, %v3727
      %v4049 = vsel %vm4045, %v4016, %v3729
      %v4050 = vsel %vm4045, %v4017, %v3731
      %v4051 = vsel %vm4045, %v4018, %v3733
      %v4052 = vsel %vm4045, %v4019, %v3735
      %v4053 = vsel %vm4045, %v4020, %v3737
      %v4054 = vsel %vm4045, %v4021, %v3739
      %v4055 = vsel %vm4045, %v4022, %v3741
      %v4056 = vsel %vm4045, %v4023, %v3743
      %v4057 = vsel %vm4045, %v4024, %v3745
      %v4058 = vsel %vm4045, %v4025, %v3747
      %v4059 = vsel %vm4045, %v4026, %v3749
      %v4060 = vsel %vm4045, %v4027, %v3751
      %v4061 = vsel %vm4045, %v4028, %v3753
      %v4062 = vsel %vm4045, %v4029, %v3755
      %v4063 = vsel %vm4045, %v4030, %v3757
      %v4064 = vsel %vm4045, %v4031, %v3759
      %v4065 = vsel %vm4045, %v4032, %v3761
      %v4066 = vsel %vm4045, %v4033, %v3763
      %v4067 = vsel %vm4045, %v4034, %v3765
      %v4068 = vsel %vm4045, %v4035, %v3767
      %v4069 = vsel %vm4045, %v4036, %v3769
      %v4070 = vsel %vm4045, %v4037, %v3771
      %v4071 = vsel %vm4045, %v4038, %v3773
      %v4072 = vsel %vm4045, %v4039, %v3775
      %v4073 = vsel %vm4045, %v4040, %v3777
      %v4074 = vsel %vm4045, %v4041, %v3779
      %v4075 = vsel %vm4045, %v4042, %v3781
      %v4076 = vsel %vm4045, %v4043, %v3783
      %v4077 = vsel %vm4045, %v4044, %v3785
      %v4078 = vld [vmem:[%s4] sm:$0xff]
      %v4079 = vld [vmem:[%s4 + $0x8] sm:$0xff]
      %v4080 = vld [vmem:[%s4 + $0x10] sm:$0xff]
      %v4081 = vld [vmem:[%s4 + $0x18] sm:$0xff]
      %v4082 = vld [vmem:[%s4 + $0x20] sm:$0xff]
      %v4083 = vld [vmem:[%s4 + $0x28] sm:$0xff]
      %v4084 = vld [vmem:[%s4 + $0x30] sm:$0xff]
      %v4085 = vld [vmem:[%s4 + $0x38] sm:$0xff]
      %v4086 = vld [vmem:[%s4 + $0x40] sm:$0xff]
      %vm4087 = vcmask 588800
      %v4089 = vsel %vm4087, %v4046, 0
      %v4092 = vsel %vm4087, %v4047, 0
      %v4095 = vsel %vm4087, %v4048, 0
      %v4098 = vsel %vm4087, %v4049, 0
      %v4101 = vsel %vm4087, %v4050, 0
      %v4104 = vsel %vm4087, %v4051, 0
      %v4107 = vsel %vm4087, %v4052, 0
      %v4110 = vsel %vm4087, %v4053, 0
      %v4113 = vsel %vm4087, %v4054, 0
      %v4116 = vsel %vm4087, %v4055, 0
      %v4119 = vsel %vm4087, %v4056, 0
      %v4122 = vsel %vm4087, %v4057, 0
      %v4125 = vsel %vm4087, %v4058, 0
      %v4128 = vsel %vm4087, %v4059, 0
      %v4131 = vsel %vm4087, %v4060, 0
      %v4134 = vsel %vm4087, %v4061, 0
      %v4137 = vsel %vm4087, %v4062, 0
      %v4140 = vsel %vm4087, %v4063, 0
      %v4143 = vsel %vm4087, %v4064, 0
      %v4146 = vsel %vm4087, %v4065, 0
      %v4149 = vsel %vm4087, %v4066, 0
      %v4152 = vsel %vm4087, %v4067, 0
      %v4155 = vsel %vm4087, %v4068, 0
      %v4158 = vsel %vm4087, %v4069, 0
      %v4161 = vsel %vm4087, %v4070, 0
      %v4164 = vsel %vm4087, %v4071, 0
      %v4167 = vsel %vm4087, %v4072, 0
      %v4170 = vsel %vm4087, %v4073, 0
      %v4173 = vsel %vm4087, %v4074, 0
      %v4176 = vsel %vm4087, %v4075, 0
      %v4179 = vsel %vm4087, %v4076, 0
      %v4182 = vsel %vm4087, %v4077, 0
      %4184 = vmatprep.subr.mxu0 0.0
      %4185 = vmatpush1.msra.mxu0 %v4078
      %4186 = vmatprep.subr.mxu0 0.0
      %4187 = vmatpush1.msra.mxu0 %v4079
      %4188 = vmatprep.subr.mxu0 0.0
      %4189 = vmatpush1.msra.mxu0 %v4080
      %4190 = vmatprep.subr.mxu0 0.0
      %4191 = vmatpush1.msra.mxu0 %v4081
      %4192 = vmatprep.subr.mxu0 0.0
      %4193 = vmatpush1.msra.mxu0 %v4082
      %4194 = vmatprep.subr.mxu0 0.0
      %4195 = vmatpush1.msra.mxu0 %v4083
      %4196 = vmatprep.subr.mxu0 0.0
      %4197 = vmatpush1.msra.mxu0 %v4084
      %4198 = vmatprep.subr.mxu0 0.0
      %4199 = vmatpush1.msra.mxu0 %v4085
      %4200 = vmatprep.subr.mxu0 0.0
      %4201 = vmatpush1.msra.mxu0 %v4086
      %4202 = vmatprep.subr.mxu0 0.0
      %4203 = vmatpush1.msra.mxu0 0.0
      %4204 = vmatprep.subr.mxu0 0.0
      %4205 = vmatpush1.msra.mxu0 0.0
      %4206 = vmatprep.subr.mxu0 0.0
      %4207 = vmatpush1.msra.mxu0 0.0
      %4208 = vmatprep.subr.mxu0 0.0
      %4209 = vmatpush1.msra.mxu0 0.0
      %4210 = vmatprep.subr.mxu0 0.0
      %4211 = vmatpush1.msra.mxu0 0.0
      %4212 = vmatprep.subr.mxu0 0.0
      %4213 = vmatpush1.msra.mxu0 0.0
      %4214 = vmatprep.subr.mxu0 0.0
      %4215 = vmatpush1.msra.mxu0 0.0
      %4216 = vmatprep.subr.mxu0 0.0
      %4217 = vmatpush1.msra.mxu0 0.0
      %4218 = vmatprep.subr.mxu0 0.0
      %4219 = vmatpush1.msra.mxu0 0.0
      %4220 = vmatprep.subr.mxu0 0.0
      %4221 = vmatpush1.msra.mxu0 0.0
      %4222 = vmatprep.subr.mxu0 0.0
      %4223 = vmatpush1.msra.mxu0 0.0
      %4224 = vmatprep.subr.mxu0 0.0
      %4225 = vmatpush1.msra.mxu0 0.0
      %4226 = vmatprep.subr.mxu0 0.0
      %4227 = vmatpush1.msra.mxu0 0.0
      %4228 = vmatprep.subr.mxu0 0.0
      %4229 = vmatpush1.msra.mxu0 0.0
      %4230 = vmatprep.subr.mxu0 0.0
      %4231 = vmatpush1.msra.mxu0 0.0
      %4232 = vmatprep.subr.mxu0 0.0
      %4233 = vmatpush1.msra.mxu0 0.0
      %4234 = vmatprep.subr.mxu0 0.0
      %4235 = vmatpush1.msra.mxu0 0.0
      %4236 = vmatprep.subr.mxu0 0.0
      %4237 = vmatpush1.msra.mxu0 0.0
      %4238 = vmatprep.subr.mxu0 0.0
      %4239 = vmatpush1.msra.mxu0 0.0
      %4240 = vmatprep.subr.mxu0 0.0
      %4241 = vmatpush1.msra.mxu0 0.0
      %4242 = vmatprep.subr.mxu0 0.0
      %4243 = vmatpush1.msra.mxu0 0.0
      %4244 = vmatprep.subr.mxu0 0.0
      %4245 = vmatpush1.msra.mxu0 0.0
      %4246 = vmatprep.subr.mxu0 0.0
      %4247 = vmatpush1.msra.mxu0 0.0
      %4248 = vmatprep.mubr.f32.mxu0 0.0
      %4249 = vmatmul.mubr.f32.gmra.mrb[0].mxu0 %v4089
      %v4250 = vpop.f32.mrb[0].mxu0
      %v4251 = vadd.f32 0.0, %v4250
      %v4252 = vpop.f32.mrb[0].mxu0
      %4253 = vmatprep.mubr.f32.mxu0 0.0
      %4254 = vmatmul.mubr.f32.gmra.mrb[0].mxu0 %v4092
      %v4255 = vpop.f32.mrb[0].mxu0
      %v4256 = vadd.f32 0.0, %v4255
      %v4257 = vpop.f32.mrb[0].mxu0
      %4258 = vmatprep.mubr.f32.mxu0 0.0
      %4259 = vmatmul.mubr.f32.gmra.mrb[0].mxu0 %v4095
      %v4260 = vpop.f32.mrb[0].mxu0
      %v4261 = vadd.f32 0.0, %v4260
      %v4262 = vpop.f32.mrb[0].mxu0
      %4263 = vmatprep.mubr.f32.mxu0 0.0
      %4264 = vmatmul.mubr.f32.gmra.mrb[0].mxu0 %v4098
      %v4265 = vpop.f32.mrb[0].mxu0
      %v4266 = vadd.f32 0.0, %v4265
      %v4267 = vpop.f32.mrb[0].mxu0
      %4268 = vmatprep.mubr.f32.mxu0 0.0
      %4269 = vmatmul.mubr.f32.gmra.mrb[0].mxu0 %v4101
      %v4270 = vpop.f32.mrb[0].mxu0
      %v4271 = vadd.f32 0.0, %v4270
      %v4272 = vpop.f32.mrb[0].mxu0
      %4273 = vmatprep.mubr.f32.mxu0 0.0
      %4274 = vmatmul.mubr.f32.gmra.mrb[0].mxu0 %v4104
      %v4275 = vpop.f32.mrb[0].mxu0
      %v4276 = vadd.f32 0.0, %v4275
      %v4277 = vpop.f32.mrb[0].mxu0
      %4278 = vmatprep.mubr.f32.mxu0 0.0
      %4279 = vmatmul.mubr.f32.gmra.mrb[0].mxu0 %v4107
      %v4280 = vpop.f32.mrb[0].mxu0
      %v4281 = vadd.f32 0.0, %v4280
      %v4282 = vpop.f32.mrb[0].mxu0
      %4283 = vmatprep.mubr.f32.mxu0 0.0
      %4284 = vmatmul.mubr.f32.gmra.mrb[0].mxu0 %v4110
      %v4285 = vpop.f32.mrb[0].mxu0
      %v4286 = vadd.f32 0.0, %v4285
      %v4287 = vpop.f32.mrb[0].mxu0
      %4288 = vmatprep.mubr.f32.mxu0 0.0
      %4289 = vmatmul.mubr.f32.gmra.mrb[0].mxu0 %v4113
      %v4290 = vpop.f32.mrb[0].mxu0
      %v4291 = vadd.f32 0.0, %v4290
      %v4292 = vpop.f32.mrb[0].mxu0
      %4293 = vmatprep.mubr.f32.mxu0 0.0
      %4294 = vmatmul.mubr.f32.gmra.mrb[0].mxu0 %v4116
      %v4295 = vpop.f32.mrb[0].mxu0
      %v4296 = vadd.f32 0.0, %v4295
      %v4297 = vpop.f32.mrb[0].mxu0
      %4298 = vmatprep.mubr.f32.mxu0 0.0
      %4299 = vmatmul.mubr.f32.gmra.mrb[0].mxu0 %v4119
      %v4300 = vpop.f32.mrb[0].mxu0
      %v4301 = vadd.f32 0.0, %v4300
      %v4302 = vpop.f32.mrb[0].mxu0
      %4303 = vmatprep.mubr.f32.mxu0 0.0
      %4304 = vmatmul.mubr.f32.gmra.mrb[0].mxu0 %v4122
      %v4305 = vpop.f32.mrb[0].mxu0
      %v4306 = vadd.f32 0.0, %v4305
      %v4307 = vpop.f32.mrb[0].mxu0
      %4308 = vmatprep.mubr.f32.mxu0 0.0
      %4309 = vmatmul.mubr.f32.gmra.mrb[0].mxu0 %v4125
      %v4310 = vpop.f32.mrb[0].mxu0
      %v4311 = vadd.f32 0.0, %v4310
      %v4312 = vpop.f32.mrb[0].mxu0
      %4313 = vmatprep.mubr.f32.mxu0 0.0
      %4314 = vmatmul.mubr.f32.gmra.mrb[0].mxu0 %v4128
      %v4315 = vpop.f32.mrb[0].mxu0
      %v4316 = vadd.f32 0.0, %v4315
      %v4317 = vpop.f32.mrb[0].mxu0
      %4318 = vmatprep.mubr.f32.mxu0 0.0
      %4319 = vmatmul.mubr.f32.gmra.mrb[0].mxu0 %v4131
      %v4320 = vpop.f32.mrb[0].mxu0
      %v4321 = vadd.f32 0.0, %v4320
      %v4322 = vpop.f32.mrb[0].mxu0
      %4323 = vmatprep.mubr.f32.mxu0 0.0
      %4324 = vmatmul.mubr.f32.gmra.mrb[0].mxu0 %v4134
      %v4325 = vpop.f32.mrb[0].mxu0
      %v4326 = vadd.f32 0.0, %v4325
      %v4327 = vpop.f32.mrb[0].mxu0
      %4328 = vmatprep.mubr.f32.mxu0 0.0
      %4329 = vmatmul.mubr.f32.gmra.mrb[0].mxu0 %v4137
      %v4330 = vpop.f32.mrb[0].mxu0
      %v4331 = vadd.f32 0.0, %v4330
      %v4332 = vpop.f32.mrb[0].mxu0
      %4333 = vmatprep.mubr.f32.mxu0 0.0
      %4334 = vmatmul.mubr.f32.gmra.mrb[0].mxu0 %v4140
      %v4335 = vpop.f32.mrb[0].mxu0
      %v4336 = vadd.f32 0.0, %v4335
      %v4337 = vpop.f32.mrb[0].mxu0
      %4338 = vmatprep.mubr.f32.mxu0 0.0
      %4339 = vmatmul.mubr.f32.gmra.mrb[0].mxu0 %v4143
      %v4340 = vpop.f32.mrb[0].mxu0
      %v4341 = vadd.f32 0.0, %v4340
      %v4342 = vpop.f32.mrb[0].mxu0
      %4343 = vmatprep.mubr.f32.mxu0 0.0
      %4344 = vmatmul.mubr.f32.gmra.mrb[0].mxu0 %v4146
      %v4345 = vpop.f32.mrb[0].mxu0
      %v4346 = vadd.f32 0.0, %v4345
      %v4347 = vpop.f32.mrb[0].mxu0
      %4348 = vmatprep.mubr.f32.mxu0 0.0
      %4349 = vmatmul.mubr.f32.gmra.mrb[0].mxu0 %v4149
      %v4350 = vpop.f32.mrb[0].mxu0
      %v4351 = vadd.f32 0.0, %v4350
      %v4352 = vpop.f32.mrb[0].mxu0
      %4353 = vmatprep.mubr.f32.mxu0 0.0
      %4354 = vmatmul.mubr.f32.gmra.mrb[0].mxu0 %v4152
      %v4355 = vpop.f32.mrb[0].mxu0
      %v4356 = vadd.f32 0.0, %v4355
      %v4357 = vpop.f32.mrb[0].mxu0
      %4358 = vmatprep.mubr.f32.mxu0 0.0
      %4359 = vmatmul.mubr.f32.gmra.mrb[0].mxu0 %v4155
      %v4360 = vpop.f32.mrb[0].mxu0
      %v4361 = vadd.f32 0.0, %v4360
      %v4362 = vpop.f32.mrb[0].mxu0
      %4363 = vmatprep.mubr.f32.mxu0 0.0
      %4364 = vmatmul.mubr.f32.gmra.mrb[0].mxu0 %v4158
      %v4365 = vpop.f32.mrb[0].mxu0
      %v4366 = vadd.f32 0.0, %v4365
      %v4367 = vpop.f32.mrb[0].mxu0
      %4368 = vmatprep.mubr.f32.mxu0 0.0
      %4369 = vmatmul.mubr.f32.gmra.mrb[0].mxu0 %v4161
      %v4370 = vpop.f32.mrb[0].mxu0
      %v4371 = vadd.f32 0.0, %v4370
      %v4372 = vpop.f32.mrb[0].mxu0
      %4373 = vmatprep.mubr.f32.mxu0 0.0
      %4374 = vmatmul.mubr.f32.gmra.mrb[0].mxu0 %v4164
      %v4375 = vpop.f32.mrb[0].mxu0
      %v4376 = vadd.f32 0.0, %v4375
      %v4377 = vpop.f32.mrb[0].mxu0
      %4378 = vmatprep.mubr.f32.mxu0 0.0
      %4379 = vmatmul.mubr.f32.gmra.mrb[0].mxu0 %v4167
      %v4380 = vpop.f32.mrb[0].mxu0
      %v4381 = vadd.f32 0.0, %v4380
      %v4382 = vpop.f32.mrb[0].mxu0
      %4383 = vmatprep.mubr.f32.mxu0 0.0
      %4384 = vmatmul.mubr.f32.gmra.mrb[0].mxu0 %v4170
      %v4385 = vpop.f32.mrb[0].mxu0
      %v4386 = vadd.f32 0.0, %v4385
      %v4387 = vpop.f32.mrb[0].mxu0
      %4388 = vmatprep.mubr.f32.mxu0 0.0
      %4389 = vmatmul.mubr.f32.gmra.mrb[0].mxu0 %v4173
      %v4390 = vpop.f32.mrb[0].mxu0
      %v4391 = vadd.f32 0.0, %v4390
      %v4392 = vpop.f32.mrb[0].mxu0
      %4393 = vmatprep.mubr.f32.mxu0 0.0
      %4394 = vmatmul.mubr.f32.gmra.mrb[0].mxu0 %v4176
      %v4395 = vpop.f32.mrb[0].mxu0
      %v4396 = vadd.f32 0.0, %v4395
      %v4397 = vpop.f32.mrb[0].mxu0
      %4398 = vmatprep.mubr.f32.mxu0 0.0
      %4399 = vmatmul.mubr.f32.gmra.mrb[0].mxu0 %v4179
      %v4400 = vpop.f32.mrb[0].mxu0
      %v4401 = vadd.f32 0.0, %v4400
      %v4402 = vpop.f32.mrb[0].mxu0
      %4403 = vmatprep.mubr.f32.mxu0 0.0
      %4404 = vmatmul.mubr.f32.gmra.mrb[0].mxu0 %v4182
      %v4405 = vpop.f32.mrb[0].mxu0
      %v4406 = vadd.f32 0.0, %v4405
      %v4407 = vpop.f32.mrb[0].mxu0
      %4408 = vdwg.mxu0
      %v4409 = vld [vmem:[%s5] sm:$0x1]
      %v4411 = vlaneseq
      %v4412 = vshrl.u32 %v4411, 7
      %v4413 = vsub.s32 0, %v4412
      %v4414 = vrot.slane %v4409, %v4413
      %v4416 = vmul.f32 %v4251, %v4414
      %v4417 = vmul.f32 %v4256, %v4414
      %v4418 = vmul.f32 %v4261, %v4414
      %v4419 = vmul.f32 %v4266, %v4414
      %v4420 = vmul.f32 %v4271, %v4414
      %v4421 = vmul.f32 %v4276, %v4414
      %v4422 = vmul.f32 %v4281, %v4414
      %v4423 = vmul.f32 %v4286, %v4414
      %v4424 = vmul.f32 %v4291, %v4414
      %v4425 = vmul.f32 %v4296, %v4414
      %v4426 = vmul.f32 %v4301, %v4414
      %v4427 = vmul.f32 %v4306, %v4414
      %v4428 = vmul.f32 %v4311, %v4414
      %v4429 = vmul.f32 %v4316, %v4414
      %v4430 = vmul.f32 %v4321, %v4414
      %v4431 = vmul.f32 %v4326, %v4414
      %v4432 = vmul.f32 %v4331, %v4414
      %v4433 = vmul.f32 %v4336, %v4414
      %v4434 = vmul.f32 %v4341, %v4414
      %v4435 = vmul.f32 %v4346, %v4414
      %v4436 = vmul.f32 %v4351, %v4414
      %v4437 = vmul.f32 %v4356, %v4414
      %v4438 = vmul.f32 %v4361, %v4414
      %v4439 = vmul.f32 %v4366, %v4414
      %v4440 = vmul.f32 %v4371, %v4414
      %v4441 = vmul.f32 %v4376, %v4414
      %v4442 = vmul.f32 %v4381, %v4414
      %v4443 = vmul.f32 %v4386, %v4414
      %v4444 = vmul.f32 %v4391, %v4414
      %v4445 = vmul.f32 %v4396, %v4414
      %v4446 = vmul.f32 %v4401, %v4414
      %v4447 = vmul.f32 %v4406, %v4414
      %v4448 = vld [vmem:[%s6] sm:$0x1]
      %v4450 = vlaneseq
      %v4451 = vshrl.u32 %v4450, 7
      %v4452 = vsub.s32 0, %v4451
      %v4453 = vrot.slane %v4448, %v4452
      %v4455 = vadd.f32 %v4416, %v4453
      %v4456 = vadd.f32 %v4417, %v4453
      %v4457 = vadd.f32 %v4418, %v4453
      %v4458 = vadd.f32 %v4419, %v4453
      %v4459 = vadd.f32 %v4420, %v4453
      %v4460 = vadd.f32 %v4421, %v4453
      %v4461 = vadd.f32 %v4422, %v4453
      %v4462 = vadd.f32 %v4423, %v4453
      %v4463 = vadd.f32 %v4424, %v4453
      %v4464 = vadd.f32 %v4425, %v4453
      %v4465 = vadd.f32 %v4426, %v4453
      %v4466 = vadd.f32 %v4427, %v4453
      %v4467 = vadd.f32 %v4428, %v4453
      %v4468 = vadd.f32 %v4429, %v4453
      %v4469 = vadd.f32 %v4430, %v4453
      %v4470 = vadd.f32 %v4431, %v4453
      %v4471 = vadd.f32 %v4432, %v4453
      %v4472 = vadd.f32 %v4433, %v4453
      %v4473 = vadd.f32 %v4434, %v4453
      %v4474 = vadd.f32 %v4435, %v4453
      %v4475 = vadd.f32 %v4436, %v4453
      %v4476 = vadd.f32 %v4437, %v4453
      %v4477 = vadd.f32 %v4438, %v4453
      %v4478 = vadd.f32 %v4439, %v4453
      %v4479 = vadd.f32 %v4440, %v4453
      %v4480 = vadd.f32 %v4441, %v4453
      %v4481 = vadd.f32 %v4442, %v4453
      %v4482 = vadd.f32 %v4443, %v4453
      %v4483 = vadd.f32 %v4444, %v4453
      %v4484 = vadd.f32 %v4445, %v4453
      %v4485 = vadd.f32 %v4446, %v4453
      %v4486 = vadd.f32 %v4447, %v4453
      %v4487 = vmax.f32 %v4455, 0.0
      %v4488 = vmax.f32 %v4456, 0.0
      %v4489 = vmax.f32 %v4457, 0.0
      %v4490 = vmax.f32 %v4458, 0.0
      %v4491 = vmax.f32 %v4459, 0.0
      %v4492 = vmax.f32 %v4460, 0.0
      %v4493 = vmax.f32 %v4461, 0.0
      %v4494 = vmax.f32 %v4462, 0.0
      %v4495 = vmax.f32 %v4463, 0.0
      %v4496 = vmax.f32 %v4464, 0.0
      %v4497 = vmax.f32 %v4465, 0.0
      %v4498 = vmax.f32 %v4466, 0.0
      %v4499 = vmax.f32 %v4467, 0.0
      %v4500 = vmax.f32 %v4468, 0.0
      %v4501 = vmax.f32 %v4469, 0.0
      %v4502 = vmax.f32 %v4470, 0.0
      %v4503 = vmax.f32 %v4471, 0.0
      %v4504 = vmax.f32 %v4472, 0.0
      %v4505 = vmax.f32 %v4473, 0.0
      %v4506 = vmax.f32 %v4474, 0.0
      %v4507 = vmax.f32 %v4475, 0.0
      %v4508 = vmax.f32 %v4476, 0.0
      %v4509 = vmax.f32 %v4477, 0.0
      %v4510 = vmax.f32 %v4478, 0.0
      %v4511 = vmax.f32 %v4479, 0.0
      %v4512 = vmax.f32 %v4480, 0.0
      %v4513 = vmax.f32 %v4481, 0.0
      %v4514 = vmax.f32 %v4482, 0.0
      %v4515 = vmax.f32 %v4483, 0.0
      %v4516 = vmax.f32 %v4484, 0.0
      %v4517 = vmax.f32 %v4485, 0.0
      %v4518 = vmax.f32 %v4486, 0.0
      %4519 = vxpose.xlu0.b32.start [1/16] %v4487, 128
      %4520 = vxpose.xlu0.b32.cont [2/16] %v4488, 128
      %4521 = vxpose.xlu0.b32.cont [3/16] %v4489, 128
      %4522 = vxpose.xlu0.b32.cont [4/16] %v4490, 128
      %4523 = vxpose.xlu0.b32.cont [5/16] %v4491, 128
      %4524 = vxpose.xlu0.b32.cont [6/16] %v4492, 128
      %4525 = vxpose.xlu0.b32.cont [7/16] %v4493, 128
      %4526 = vxpose.xlu0.b32.cont [8/16] %v4494, 128
      %4527 = vxpose.xlu0.b32.cont [9/16] %v4495, 128
      %4528 = vxpose.xlu0.b32.cont [10/16] %v4496, 128
      %4529 = vxpose.xlu0.b32.cont [11/16] %v4497, 128
      %4530 = vxpose.xlu0.b32.cont [12/16] %v4498, 128
      %4531 = vxpose.xlu0.b32.cont [13/16] %v4499, 128
      %4532 = vxpose.xlu0.b32.cont [14/16] %v4500, 128
      %4533 = vxpose.xlu0.b32.cont [15/16] %v4501, 128
      %4534 = vxpose.xlu0.b32.end [16/16] %v4502, 128
      %v4535 = vpop.trf.xlu0
      %v4536 = vpop.trf.xlu0
      %v4537 = vpop.trf.xlu0
      %v4538 = vpop.trf.xlu0
      %v4539 = vpop.trf.xlu0
      %v4540 = vpop.trf.xlu0
      %v4541 = vpop.trf.xlu0
      %v4542 = vpop.trf.xlu0
      %v4543 = vpop.trf.xlu0
      %v4544 = vpop.trf.xlu0
      %v4545 = vpop.trf.xlu0
      %v4546 = vpop.trf.xlu0
      %v4547 = vpop.trf.xlu0
      %v4548 = vpop.trf.xlu0
      %v4549 = vpop.trf.xlu0
      %v4550 = vpop.trf.xlu0
      %4551 = vxpose.xlu0.b32.start [1/16] %v4503, 128
      %4552 = vxpose.xlu0.b32.cont [2/16] %v4504, 128
      %4553 = vxpose.xlu0.b32.cont [3/16] %v4505, 128
      %4554 = vxpose.xlu0.b32.cont [4/16] %v4506, 128
      %4555 = vxpose.xlu0.b32.cont [5/16] %v4507, 128
      %4556 = vxpose.xlu0.b32.cont [6/16] %v4508, 128
      %4557 = vxpose.xlu0.b32.cont [7/16] %v4509, 128
      %4558 = vxpose.xlu0.b32.cont [8/16] %v4510, 128
      %4559 = vxpose.xlu0.b32.cont [9/16] %v4511, 128
      %4560 = vxpose.xlu0.b32.cont [10/16] %v4512, 128
      %4561 = vxpose.xlu0.b32.cont [11/16] %v4513, 128
      %4562 = vxpose.xlu0.b32.cont [12/16] %v4514, 128
      %4563 = vxpose.xlu0.b32.cont [13/16] %v4515, 128
      %4564 = vxpose.xlu0.b32.cont [14/16] %v4516, 128
      %4565 = vxpose.xlu0.b32.cont [15/16] %v4517, 128
      %4566 = vxpose.xlu0.b32.end [16/16] %v4518, 128
      %v4567 = vpop.trf.xlu0
      %v4568 = vpop.trf.xlu0
      %v4569 = vpop.trf.xlu0
      %v4570 = vpop.trf.xlu0
      %v4571 = vpop.trf.xlu0
      %v4572 = vpop.trf.xlu0
      %v4573 = vpop.trf.xlu0
      %v4574 = vpop.trf.xlu0
      %v4575 = vpop.trf.xlu0
      %v4576 = vpop.trf.xlu0
      %v4577 = vpop.trf.xlu0
      %v4578 = vpop.trf.xlu0
      %v4579 = vpop.trf.xlu0
      %v4580 = vpop.trf.xlu0
      %v4581 = vpop.trf.xlu0
      %v4582 = vpop.trf.xlu0
      %4583 = vst [vmem:[%s278] sm:$0xff] %v4535
      %4584 = vst [vmem:[%s278 + $0x8] sm:$0xff] %v4567
      %p4585 = scmp.lt.s32.totalorder %s18, 1
      %s4586 = scalar_select %p4585, %s18, 1
      %s4587 = smul.addr %s4586, 2
      %s4588 = smul.addr %s4587, 8
      %s4589 = scalar_lea.vmem %s7, %s4588
      // Predicated region
      $region49: #{double_conv_forward.1} parent=47 // pred_check
        %p4590 = pneg %p188
      $region50: #{double_conv_forward.1} parent=47 // pred_check_branch
        %4592 = sbr.rel (%p4590) target = $region52
      $region51: #{double_conv_forward.1} parent=47 // pred_region
        _
      $region52: #{double_conv_forward.1} parent=47 // pred_fallthru
        _
    $region48: #{double_conv_forward.1} parent=5 // pred_fallthru
      _
    %p4593 = scmp.le.s32.totalorder 2, %s13
    // Predicated region
    $region53: #{double_conv_forward.1} parent=5 // pred_check
      %p4594 = pneg %p4593
    $region54: #{double_conv_forward.1} parent=5 // pred_check_branch
      %4596 = sbr.rel (%p4594) target = $region56
    $region55: #{double_conv_forward.1} parent=5 // pred_region
      %s4597 = ssub.s32 %s13, 2
      // Predicated region
      $region57: #{double_conv_forward.1} parent=55 // pred_check
        %p4598 = pneg %p194
      $region58: #{double_conv_forward.1} parent=55 // pred_check_branch
        %4600 = sbr.rel (%p4598) target = $region60
      $region59: #{double_conv_forward.1} parent=55 // pred_region
        %p4601 = scmp.lt.s32.totalorder %s19, 1
        %s4602 = scalar_select %p4601, %s19, 1
        %s4603 = smul.addr %s4602, 2
        %s4604 = smul.addr %s4603, 8
        %s4605 = scalar_lea.vmem %s7, %s4604
      $region60: #{double_conv_forward.1} parent=55 // pred_fallthru
        _
    $region56: #{double_conv_forward.1} parent=5 // pred_fallthru
      _
  $region6: #{double_conv_forward.1} parent=0 // loop_footer
    %s17 = sadd.s32 1, %s13
  $region7: #{double_conv_forward.1} parent=0 // loop_footer_branch
    %12 = sbr.rel target = $region3
  $region8: #{double_conv_forward.1} parent=0 // loop_exit
    _

</llo_original>
